<compile_context>
chip_gen: v7x
topology: tpu7x:2x2x1
jax: 0.10.0
libtpu: 0.0.40
codegen_flags: <defaults>
</compile_context>

<pallas_src>
import functools

import jax
import jax.numpy as jnp
from jax import lax
from jax.experimental import pallas as pl
from jax.experimental.pallas import tpu as pltpu

LANE = 128


def _silu(x):
    # x * sigmoid(x); sigmoid via tanh -> EUP slot, numerically stable.
    return x * (0.5 * jnp.tanh(0.5 * x) + 0.5)


def _round_up(n, m):
    return ((n + m - 1) // m) * m


# --------------------------------------------------------------------------
# Kernel 1: per-edge stage (lin_ji, lin_kj, rbf chain, *, lin_down)
# --------------------------------------------------------------------------
def edge1_kernel(x_ref, rbf_ref,
                 wji_ref, bji_ref, wkj_ref, bkj_ref,
                 wr1_ref, wr2_ref, wdn_ref,
                 xji_out, xkjd_out):
    x = x_ref[...]
    x_ji = _silu(jnp.dot(x, wji_ref[...], preferred_element_type=jnp.float32)
                 + bji_ref[...])
    x_kj = _silu(jnp.dot(x, wkj_ref[...], preferred_element_type=jnp.float32)
                 + bkj_ref[...])
    r = jnp.dot(rbf_ref[...], wr1_ref[...], preferred_element_type=jnp.float32)
    r = jnp.dot(r, wr2_ref[...], preferred_element_type=jnp.float32)
    x_kj = x_kj * r
    xji_out[...] = x_ji
    xkjd_out[...] = _silu(jnp.dot(x_kj, wdn_ref[...],
                                  preferred_element_type=jnp.float32))


# --------------------------------------------------------------------------
# Kernel 2: per-triplet stage.
# Grid = (edge tiles, triplet tiles); triplet axis last -> output edge tile is
# an accumulator.  Gather of x_kj_d[idx_kj] and the scatter-add over idx_ji are
# one-hot MXU matmuls (vectorized, no serialized RMW loop).
# --------------------------------------------------------------------------
def triplet_kernel(idx_kj_ref, idx_ji_ref, xkjd_ref, sbf_ref,
                   ws1_ref, ws2_ref, agg_ref):
    @pl.when(pl.program_id(1) == 0)
    def _():
        agg_ref[...] = jnp.zeros_like(agg_ref)

    TT = sbf_ref.shape[0]
    E_pad = xkjd_ref.shape[0]
    TE = agg_ref.shape[0]

    # sbf -> basis_emb -> int_emb for this triplet tile        [TT, I_pad]
    s = jnp.dot(sbf_ref[...], ws1_ref[...], preferred_element_type=jnp.float32)
    sbf2 = jnp.dot(s, ws2_ref[...], preferred_element_type=jnp.float32)

    # Gather x_kj_d[idx_kj] via one-hot matmul                 [TT, I_pad]
    gather_oh = (idx_kj_ref[...] ==
                 lax.broadcasted_iota(jnp.int32, (TT, E_pad), 1)
                 ).astype(jnp.float32)
    x_g = jnp.dot(gather_oh, xkjd_ref[...], preferred_element_type=jnp.float32)

    t = x_g * sbf2                                             # [TT, I_pad]

    # Scatter-add over idx_ji into the current edge tile via one-hot matmul.
    e0 = pl.program_id(0) * TE
    row_ids = e0 + lax.broadcasted_iota(jnp.int32, (TE, TT), 0)
    scatter_oh = (row_ids == idx_ji_ref[0]).astype(jnp.float32)  # [TE, TT]
    agg_ref[...] += jnp.dot(scatter_oh, t, preferred_element_type=jnp.float32)


# --------------------------------------------------------------------------
# Kernel 3: per-edge stage 2 (lin_up, residuals, skip, residuals)
# --------------------------------------------------------------------------
def edge2_kernel(x_ref, xji_ref, agg_ref, wup_ref,
                 wb_ref, bb_ref, wlin_ref, blin_ref, wa_ref, ba_ref,
                 out_ref):
    x = x_ref[...]
    x_kj = _silu(jnp.dot(agg_ref[...], wup_ref[...],
                         preferred_element_type=jnp.float32))
    h = xji_ref[...] + x_kj

    nb2 = wb_ref.shape[0]            # 2 * num_before_skip (small -> unrolled)
    for l in range(0, nb2, 2):
        t = _silu(jnp.dot(h, wb_ref[l], preferred_element_type=jnp.float32)
                  + bb_ref[l])
        t = _silu(jnp.dot(t, wb_ref[l + 1], preferred_element_type=jnp.float32)
                  + bb_ref[l + 1])
        h = h + t

    h = _silu(jnp.dot(h, wlin_ref[...], preferred_element_type=jnp.float32)
              + blin_ref[...]) + x

    na2 = wa_ref.shape[0]            # 2 * num_after_skip
    for l in range(0, na2, 2):
        t = _silu(jnp.dot(h, wa_ref[l], preferred_element_type=jnp.float32)
                  + ba_ref[l])
        t = _silu(jnp.dot(t, wa_ref[l + 1], preferred_element_type=jnp.float32)
                  + ba_ref[l + 1])
        h = h + t

    out_ref[...] = h


# --------------------------------------------------------------------------
# Wrapper: padding, tiling, three pipelined pallas_calls.
# --------------------------------------------------------------------------
def interaction_pp_block(x, rbf, sbf, idx_kj, idx_ji, p,
                         *, edge_tile=512, triplet_tile=512,
                         vmem_limit_bytes=48 * 1024 * 1024):
    E, H = x.shape
    T, SR = sbf.shape
    R = rbf.shape[1]
    I = p["W_down"].shape[1]
    B = p["W_rbf1"].shape[1]
    f32 = jnp.float32

    # ---- lane-friendly padding ------------------------------------------
    H_pad = _round_up(H, LANE)
    I_pad = _round_up(I, LANE)
    R_pad = _round_up(R, LANE)
    B_pad = _round_up(B, LANE)
    SR_pad = _round_up(SR, LANE)

    TE = min(edge_tile, _round_up(E, LANE))
    TT = min(triplet_tile, _round_up(T, LANE))
    E_pad = _round_up(E, TE)
    T_pad = _round_up(T, TT)
    n_e = E_pad // TE
    n_t = T_pad // TT

    def pad2(a, r, c):
        return jnp.pad(a.astype(f32),
                       ((0, r - a.shape[0]), (0, c - a.shape[1])))

    def pad3(a, r, c):
        return jnp.pad(a.astype(f32),
                       ((0, 0), (0, r - a.shape[1]), (0, c - a.shape[2])))

    x_p = pad2(x, E_pad, H_pad)
    rbf_p = pad2(rbf, E_pad, R_pad)
    sbf_p = pad2(sbf, T_pad, SR_pad)

    w_ji = pad2(p["W_ji"], H_pad, H_pad)
    b_ji = pad2(p["b_ji"], 1, H_pad)
    w_kj = pad2(p["W_kj"], H_pad, H_pad)
    b_kj = pad2(p["b_kj"], 1, H_pad)
    w_r1 = pad2(p["W_rbf1"], R_pad, B_pad)
    w_r2 = pad2(p["W_rbf2"], B_pad, H_pad)
    w_dn = pad2(p["W_down"], H_pad, I_pad)
    w_s1 = pad2(p["W_sbf1"], SR_pad, B_pad)
    w_s2 = pad2(p["W_sbf2"], B_pad, I_pad)
    w_up = pad2(p["W_up"], I_pad, H_pad)
    w_b = pad3(p["W_before"], H_pad, H_pad)
    b_b = pad3(p["b_before"], 1, H_pad)
    w_lin = pad2(p["W_lin"], H_pad, H_pad)
    b_lin = pad2(p["b_lin"], 1, H_pad)
    w_a = pad3(p["W_after"], H_pad, H_pad)
    b_a = pad3(p["b_after"], 1, H_pad)

    # Padded triplets: idx_ji = -1 matches no output row -> contributes 0.
    idx_kj_p = jnp.pad(idx_kj.astype(jnp.int32),
                       (0, T_pad - T)).reshape(T_pad, 1)
    idx_ji_p = jnp.pad(idx_ji.astype(jnp.int32), (0, T_pad - T),
                       constant_values=-1).reshape(n_t, 1, TT)

    def const_spec(shape):
        zeros = (0,) * len(shape)
        return pl.BlockSpec(shape, lambda *_: zeros)

    edge_spec_h = pl.BlockSpec((TE, H_pad), lambda i: (i, 0))
    edge_spec_r = pl.BlockSpec((TE, R_pad), lambda i: (i, 0))
    edge_spec_i = pl.BlockSpec((TE, I_pad), lambda i: (i, 0))

    # --- stage 1: per-edge -----------------------------------------------
    flops1 = 2 * E_pad * (2 * H_pad * H_pad + H_pad * I_pad
                          + R_pad * B_pad + B_pad * H_pad)
    x_ji, x_kj_d = pl.pallas_call(
        edge1_kernel,
        grid=(n_e,),
        out_shape=(jax.ShapeDtypeStruct((E_pad, H_pad), f32),
                   jax.ShapeDtypeStruct((E_pad, I_pad), f32)),
        in_specs=[edge_spec_h, edge_spec_r,
                  const_spec((H_pad, H_pad)), const_spec((1, H_pad)),
                  const_spec((H_pad, H_pad)), const_spec((1, H_pad)),
                  const_spec((R_pad, B_pad)), const_spec((B_pad, H_pad)),
                  const_spec((H_pad, I_pad))],
        out_specs=(edge_spec_h, edge_spec_i),
        compiler_params=pltpu.CompilerParams(
            dimension_semantics=("parallel",),
            vmem_limit_bytes=vmem_limit_bytes),
        cost_estimate=pl.CostEstimate(
            flops=flops1,
            transcendentals=E_pad * (2 * H_pad + I_pad),
            bytes_accessed=4 * E_pad * (2 * H_pad + R_pad + I_pad)),
    )(x_p, rbf_p, w_ji, b_ji, w_kj, b_kj, w_r1, w_r2, w_dn)

    # --- stage 2: triplet gather * sbf -> scatter-add (one-hot MXU) -------
    flops2 = 2 * n_e * n_t * TT * (SR_pad * B_pad + B_pad * I_pad
                                   + E_pad * I_pad + TE * I_pad)
    agg = pl.pallas_call(
        triplet_kernel,
        grid=(n_e, n_t),
        out_shape=jax.ShapeDtypeStruct((E_pad, I_pad), f32),
        in_specs=[
            pl.BlockSpec((TT, 1), lambda ei, ti: (ti, 0)),      # idx_kj
            pl.BlockSpec((1, 1, TT), lambda ei, ti: (ti, 0, 0)),  # idx_ji
            pl.BlockSpec((E_pad, I_pad), lambda ei, ti: (0, 0)),  # x_kj_d
            pl.BlockSpec((TT, SR_pad), lambda ei, ti: (ti, 0)),   # sbf
            const_spec((SR_pad, B_pad)),
            const_spec((B_pad, I_pad)),
        ],
        out_specs=pl.BlockSpec((TE, I_pad), lambda ei, ti: (ei, 0)),
        compiler_params=pltpu.CompilerParams(
            dimension_semantics=("parallel", "arbitrary"),
            vmem_limit_bytes=vmem_limit_bytes),
        cost_estimate=pl.CostEstimate(
            flops=flops2,
            transcendentals=0,
            bytes_accessed=4 * (n_e * n_t * TT * (SR_pad + 2)
                                + 2 * E_pad * I_pad)),
    )(idx_kj_p, idx_ji_p, x_kj_d, sbf_p, w_s1, w_s2)

    # --- stage 3: per-edge up-projection + residual stack -----------------
    n_layers = 2 + w_b.shape[0] + w_a.shape[0]
    flops3 = 2 * E_pad * H_pad * (I_pad + H_pad * (n_layers - 1))
    h_pad = pl.pallas_call(
        edge2_kernel,
        grid=(n_e,),
        out_shape=jax.ShapeDtypeStruct((E_pad, H_pad), f32),
        in_specs=[edge_spec_h, edge_spec_h, edge_spec_i,
                  const_spec((I_pad, H_pad)),
                  const_spec(w_b.shape), const_spec(b_b.shape),
                  const_spec((H_pad, H_pad)), const_spec((1, H_pad)),
                  const_spec(w_a.shape), const_spec(b_a.shape)],
        out_specs=edge_spec_h,
        compiler_params=pltpu.CompilerParams(
            dimension_semantics=("parallel",),
            vmem_limit_bytes=vmem_limit_bytes),
        cost_estimate=pl.CostEstimate(
            flops=flops3,
            transcendentals=E_pad * H_pad * n_layers,
            bytes_accessed=4 * E_pad * (3 * H_pad + I_pad)),
    )(x_p, x_ji, agg, w_up, w_b, b_b, w_lin, b_lin, w_a, b_a)

    return h_pad[:E, :H]


# --------------------------------------------------------------------------
# Pure-JAX reference for correctness checking
# --------------------------------------------------------------------------
def reference(x, rbf, sbf, idx_kj, idx_ji, p):
    act = jax.nn.silu
    E = x.shape[0]
    x_ji = act(x @ p["W_ji"] + p["b_ji"])
    x_kj = act(x @ p["W_kj"] + p["b_kj"])
    r = (rbf @ p["W_rbf1"]) @ p["W_rbf2"]
    x_kj = x_kj * r
    x_kj = act(x_kj @ p["W_down"])
    s = (sbf @ p["W_sbf1"]) @ p["W_sbf2"]
    t = x_kj[idx_kj] * s
    agg = jnp.zeros((E, t.shape[1]), jnp.float32).at[idx_ji].add(t)
    x_kj = act(agg @ p["W_up"])
    h = x_ji + x_kj
    for l in range(0, p["W_before"].shape[0], 2):
        u = act(h @ p["W_before"][l] + p["b_before"][l])
        u = act(u @ p["W_before"][l + 1] + p["b_before"][l + 1])
        h = h + u
    h = act(h @ p["W_lin"] + p["b_lin"]) + x
    for l in range(0, p["W_after"].shape[0], 2):
        u = act(h @ p["W_after"][l] + p["b_after"][l])
        u = act(u @ p["W_after"][l + 1] + p["b_after"][l + 1])
        h = h + u
    return h


if __name__ == "__main__":
    # Module hyper-parameters (small, DimeNet++-like)
    H = 32          # hidden_channels
    I = 16          # int_emb_size
    B = 8           # basis_emb_size
    NS, NR = 7, 6   # num_spherical, num_radial
    NB, NA = 1, 2   # num_before_skip, num_after_skip
    E = 8           # number of edges
    T = 16          # number of triplets

    key = jax.random.PRNGKey(0)
    ks = iter(jax.random.split(key, 32))

    def w(shape, scale=0.1):
        return (scale * jax.random.normal(next(ks), shape)).astype(jnp.float32)

    params = {
        "W_rbf1": w((NR, B)), "W_rbf2": w((B, H)),
        "W_sbf1": w((NS * NR, B)), "W_sbf2": w((B, I)),
        "W_kj": w((H, H)), "b_kj": jnp.zeros((1, H), jnp.float32),
        "W_ji": w((H, H)), "b_ji": jnp.zeros((1, H), jnp.float32),
        "W_down": w((H, I)), "W_up": w((I, H)),
        "W_before": w((2 * NB, H, H)),
        "b_before": w((2 * NB, 1, H), 0.01),
        "W_lin": w((H, H)), "b_lin": jnp.zeros((1, H), jnp.float32),
        "W_after": w((2 * NA, H, H)),
        "b_after": w((2 * NA, 1, H), 0.01),
    }

    x = w((E, H), 1.0)
    rbf = w((E, NR), 1.0)
    sbf = w((T, NS * NR), 1.0)
    idx_kj = jax.random.randint(next(ks), (T,), 0, E, dtype=jnp.int32)
    idx_ji = jax.random.randint(next(ks), (T,), 0, E, dtype=jnp.int32)

    out = jax.jit(interaction_pp_block)(x, rbf, sbf, idx_kj, idx_ji, params)
    out = jax.block_until_ready(out)

    ref = reference(x, rbf, sbf, idx_kj, idx_ji, params)
    assert out.shape == (E, H) and out.dtype == jnp.float32
    assert jnp.allclose(out, ref, rtol=1e-4, atol=1e-4), (
        float(jnp.max(jnp.abs(out - ref))))
    print("KERNEL_OK")
</pallas_src>

<mosaic_0001>
module attributes {stable_mosaic.version = 11 : i64} {
  func.func @edge1_kernel(%arg0: i32, %arg1: memref<128x128xf32, #tpu.memory_space<vmem>>, %arg2: memref<128x128xf32, #tpu.memory_space<vmem>>, %arg3: memref<128x128xf32, #tpu.memory_space<vmem>>, %arg4: memref<1x128xf32, #tpu.memory_space<vmem>>, %arg5: memref<128x128xf32, #tpu.memory_space<vmem>>, %arg6: memref<1x128xf32, #tpu.memory_space<vmem>>, %arg7: memref<128x128xf32, #tpu.memory_space<vmem>>, %arg8: memref<128x128xf32, #tpu.memory_space<vmem>>, %arg9: memref<128x128xf32, #tpu.memory_space<vmem>>, %arg10: memref<128x128xf32, #tpu.memory_space<vmem>>, %arg11: memref<128x128xf32, #tpu.memory_space<vmem>>) attributes {dimension_semantics = [#tpu.dimension_semantics<parallel>], iteration_bounds = array<i64: 1>, scalar_prefetch = 0 : i64, scratch_operands = 0 : i64, tpu.core_type = #tpu.core_type<tc>, window_params = [{transform_indices = @transform_0, window_bounds = array<i64: 128, 128>}, {transform_indices = @transform_1, window_bounds = array<i64: 128, 128>}, {pipeline_mode = #tpu.pipeline_mode<synchronous>, transform_indices = @transform_2, window_bounds = array<i64: 128, 128>}, {pipeline_mode = #tpu.pipeline_mode<synchronous>, transform_indices = @transform_3, window_bounds = array<i64: 1, 128>}, {pipeline_mode = #tpu.pipeline_mode<synchronous>, transform_indices = @transform_4, window_bounds = array<i64: 128, 128>}, {pipeline_mode = #tpu.pipeline_mode<synchronous>, transform_indices = @transform_5, window_bounds = array<i64: 1, 128>}, {pipeline_mode = #tpu.pipeline_mode<synchronous>, transform_indices = @transform_6, window_bounds = array<i64: 128, 128>}, {pipeline_mode = #tpu.pipeline_mode<synchronous>, transform_indices = @transform_7, window_bounds = array<i64: 128, 128>}, {pipeline_mode = #tpu.pipeline_mode<synchronous>, transform_indices = @transform_8, window_bounds = array<i64: 128, 128>}, {transform_indices = @transform_9, window_bounds = array<i64: 128, 128>}, {transform_indices = @transform_10, window_bounds = array<i64: 128, 128>}]} {
    %c0 = arith.constant 0 : index
    %c0_0 = arith.constant 0 : index
    %0 = vector.load %arg1[%c0, %c0_0] : memref<128x128xf32, #tpu.memory_space<vmem>>, vector<128x128xf32>
    %c0_1 = arith.constant 0 : index
    %c0_2 = arith.constant 0 : index
    %1 = vector.load %arg3[%c0_1, %c0_2] : memref<128x128xf32, #tpu.memory_space<vmem>>, vector<128x128xf32>
    %cst = arith.constant dense<0.000000e+00> : vector<128x128xf32>
    %2 = tpu.matmul %0, %1, %cst {dimension_numbers = #tpu.dot_dimension_numbers<[1], [0], [0], [1], [0, 0, 1, 1], [], []>} : vector<128x128xf32>, vector<128x128xf32>, vector<128x128xf32> -> vector<128x128xf32>
    %c0_3 = arith.constant 0 : index
    %c0_4 = arith.constant 0 : index
    %3 = vector.load %arg4[%c0_3, %c0_4] : memref<1x128xf32, #tpu.memory_space<vmem>>, vector<1x128xf32>
    %4 = vector.broadcast %3 : vector<1x128xf32> to vector<128x128xf32>
    %5 = arith.addf %2, %4 : vector<128x128xf32>
    %cst_5 = arith.constant 5.000000e-01 : f32
    %6 = vector.broadcast %cst_5 : f32 to vector<128x128xf32>
    %7 = arith.mulf %6, %5 : vector<128x128xf32>
    %8 = math.tanh %7 : vector<128x128xf32>
    %cst_6 = arith.constant 5.000000e-01 : f32
    %9 = vector.broadcast %cst_6 : f32 to vector<128x128xf32>
    %10 = arith.mulf %9, %8 : vector<128x128xf32>
    %cst_7 = arith.constant 5.000000e-01 : f32
    %11 = vector.broadcast %cst_7 : f32 to vector<128x128xf32>
    %12 = arith.addf %10, %11 : vector<128x128xf32>
    %13 = arith.mulf %5, %12 : vector<128x128xf32>
    %c0_8 = arith.constant 0 : index
    %c0_9 = arith.constant 0 : index
    %14 = vector.load %arg5[%c0_8, %c0_9] : memref<128x128xf32, #tpu.memory_space<vmem>>, vector<128x128xf32>
    %cst_10 = arith.constant dense<0.000000e+00> : vector<128x128xf32>
    %15 = tpu.matmul %0, %14, %cst_10 {dimension_numbers = #tpu.dot_dimension_numbers<[1], [0], [0], [1], [0, 0, 1, 1], [], []>} : vector<128x128xf32>, vector<128x128xf32>, vector<128x128xf32> -> vector<128x128xf32>
    %c0_11 = arith.constant 0 : index
    %c0_12 = arith.constant 0 : index
    %16 = vector.load %arg6[%c0_11, %c0_12] : memref<1x128xf32, #tpu.memory_space<vmem>>, vector<1x128xf32>
    %17 = vector.broadcast %16 : vector<1x128xf32> to vector<128x128xf32>
    %18 = arith.addf %15, %17 : vector<128x128xf32>
    %cst_13 = arith.constant 5.000000e-01 : f32
    %19 = vector.broadcast %cst_13 : f32 to vector<128x128xf32>
    %20 = arith.mulf %19, %18 : vector<128x128xf32>
    %21 = math.tanh %20 : vector<128x128xf32>
    %cst_14 = arith.constant 5.000000e-01 : f32
    %22 = vector.broadcast %cst_14 : f32 to vector<128x128xf32>
    %23 = arith.mulf %22, %21 : vector<128x128xf32>
    %cst_15 = arith.constant 5.000000e-01 : f32
    %24 = vector.broadcast %cst_15 : f32 to vector<128x128xf32>
    %25 = arith.addf %23, %24 : vector<128x128xf32>
    %26 = arith.mulf %18, %25 : vector<128x128xf32>
    %c0_16 = arith.constant 0 : index
    %c0_17 = arith.constant 0 : index
    %27 = vector.load %arg2[%c0_16, %c0_17] : memref<128x128xf32, #tpu.memory_space<vmem>>, vector<128x128xf32>
    %c0_18 = arith.constant 0 : index
    %c0_19 = arith.constant 0 : index
    %28 = vector.load %arg7[%c0_18, %c0_19] : memref<128x128xf32, #tpu.memory_space<vmem>>, vector<128x128xf32>
    %cst_20 = arith.constant dense<0.000000e+00> : vector<128x128xf32>
    %29 = tpu.matmul %27, %28, %cst_20 {dimension_numbers = #tpu.dot_dimension_numbers<[1], [0], [0], [1], [0, 0, 1, 1], [], []>} : vector<128x128xf32>, vector<128x128xf32>, vector<128x128xf32> -> vector<128x128xf32>
    %c0_21 = arith.constant 0 : index
    %c0_22 = arith.constant 0 : index
    %30 = vector.load %arg8[%c0_21, %c0_22] : memref<128x128xf32, #tpu.memory_space<vmem>>, vector<128x128xf32>
    %cst_23 = arith.constant dense<0.000000e+00> : vector<128x128xf32>
    %31 = tpu.matmul %29, %30, %cst_23 {dimension_numbers = #tpu.dot_dimension_numbers<[1], [0], [0], [1], [0, 0, 1, 1], [], []>} : vector<128x128xf32>, vector<128x128xf32>, vector<128x128xf32> -> vector<128x128xf32>
    %32 = arith.mulf %26, %31 : vector<128x128xf32>
    %c0_24 = arith.constant 0 : index
    %c0_25 = arith.constant 0 : index
    %33 = vector.load %arg10[%c0_24, %c0_25] : memref<128x128xf32, #tpu.memory_space<vmem>>, vector<128x128xf32>
    tpu.vector_store %arg10[%c0_24, %c0_25], %13 {strides = array<i32>} : memref<128x128xf32, #tpu.memory_space<vmem>>, vector<128x128xf32>,
    %c0_26 = arith.constant 0 : index
    %c0_27 = arith.constant 0 : index
    %34 = vector.load %arg9[%c0_26, %c0_27] : memref<128x128xf32, #tpu.memory_space<vmem>>, vector<128x128xf32>
    %cst_28 = arith.constant dense<0.000000e+00> : vector<128x128xf32>
    %35 = tpu.matmul %32, %34, %cst_28 {dimension_numbers = #tpu.dot_dimension_numbers<[1], [0], [0], [1], [0, 0, 1, 1], [], []>} : vector<128x128xf32>, vector<128x128xf32>, vector<128x128xf32> -> vector<128x128xf32>
    %cst_29 = arith.constant 5.000000e-01 : f32
    %36 = vector.broadcast %cst_29 : f32 to vector<128x128xf32>
    %37 = arith.mulf %36, %35 : vector<128x128xf32>
    %38 = math.tanh %37 : vector<128x128xf32>
    %cst_30 = arith.constant 5.000000e-01 : f32
    %39 = vector.broadcast %cst_30 : f32 to vector<128x128xf32>
    %40 = arith.mulf %39, %38 : vector<128x128xf32>
    %cst_31 = arith.constant 5.000000e-01 : f32
    %41 = vector.broadcast %cst_31 : f32 to vector<128x128xf32>
    %42 = arith.addf %40, %41 : vector<128x128xf32>
    %43 = arith.mulf %35, %42 : vector<128x128xf32>
    %c0_32 = arith.constant 0 : index
    %c0_33 = arith.constant 0 : index
    %44 = vector.load %arg11[%c0_32, %c0_33] : memref<128x128xf32, #tpu.memory_space<vmem>>, vector<128x128xf32>
    tpu.vector_store %arg11[%c0_32, %c0_33], %43 {strides = array<i32>} : memref<128x128xf32, #tpu.memory_space<vmem>>, vector<128x128xf32>,
    return
  }
  func.func @transform_0(%arg0: i32) -> (i32, i32) {
    %c0_i32 = arith.constant 0 : i32
    %c0_i32_0 = arith.constant 0 : i32
    return %arg0, %c0_i32 : i32, i32
  }
  func.func @transform_1(%arg0: i32) -> (i32, i32) {
    %c0_i32 = arith.constant 0 : i32
    %c0_i32_0 = arith.constant 0 : i32
    return %arg0, %c0_i32 : i32, i32
  }
  func.func @transform_2(%arg0: i32) -> (i32, i32) {
    %c0_i32 = arith.constant 0 : i32
    %c0_i32_0 = arith.constant 0 : i32
    %c0_i32_1 = arith.constant 0 : i32
    return %c0_i32, %c0_i32_0 : i32, i32
  }
  func.func @transform_3(%arg0: i32) -> (i32, i32) {
    %c0_i32 = arith.constant 0 : i32
    %c0_i32_0 = arith.constant 0 : i32
    %c0_i32_1 = arith.constant 0 : i32
    return %c0_i32, %c0_i32_0 : i32, i32
  }
  func.func @transform_4(%arg0: i32) -> (i32, i32) {
    %c0_i32 = arith.constant 0 : i32
    %c0_i32_0 = arith.constant 0 : i32
    %c0_i32_1 = arith.constant 0 : i32
    return %c0_i32, %c0_i32_0 : i32, i32
  }
  func.func @transform_5(%arg0: i32) -> (i32, i32) {
    %c0_i32 = arith.constant 0 : i32
    %c0_i32_0 = arith.constant 0 : i32
    %c0_i32_1 = arith.constant 0 : i32
    return %c0_i32, %c0_i32_0 : i32, i32
  }
  func.func @transform_6(%arg0: i32) -> (i32, i32) {
    %c0_i32 = arith.constant 0 : i32
    %c0_i32_0 = arith.constant 0 : i32
    %c0_i32_1 = arith.constant 0 : i32
    return %c0_i32, %c0_i32_0 : i32, i32
  }
  func.func @transform_7(%arg0: i32) -> (i32, i32) {
    %c0_i32 = arith.constant 0 : i32
    %c0_i32_0 = arith.constant 0 : i32
    %c0_i32_1 = arith.constant 0 : i32
    return %c0_i32, %c0_i32_0 : i32, i32
  }
  func.func @transform_8(%arg0: i32) -> (i32, i32) {
    %c0_i32 = arith.constant 0 : i32
    %c0_i32_0 = arith.constant 0 : i32
    %c0_i32_1 = arith.constant 0 : i32
    return %c0_i32, %c0_i32_0 : i32, i32
  }
  func.func @transform_9(%arg0: i32) -> (i32, i32) {
    %c0_i32 = arith.constant 0 : i32
    %c0_i32_0 = arith.constant 0 : i32
    return %arg0, %c0_i32 : i32, i32
  }
  func.func @transform_10(%arg0: i32) -> (i32, i32) {
    %c0_i32 = arith.constant 0 : i32
    %c0_i32_0 = arith.constant 0 : i32
    return %arg0, %c0_i32 : i32, i32
  }
}

module attributes {stable_mosaic.version = 11 : i64} {
  func.func @triplet_kernel(%arg0: i32, %arg1: i32, %arg2: memref<128x1xi32, #tpu.memory_space<vmem>>, %arg3: memref<1x1x128xi32, #tpu.memory_space<vmem>>, %arg4: memref<128x128xf32, #tpu.memory_space<vmem>>, %arg5: memref<128x128xf32, #tpu.memory_space<vmem>>, %arg6: memref<128x128xf32, #tpu.memory_space<vmem>>, %arg7: memref<128x128xf32, #tpu.memory_space<vmem>>, %arg8: memref<128x128xf32, #tpu.memory_space<vmem>>) attributes {dimension_semantics = [#tpu.dimension_semantics<parallel>, #tpu.dimension_semantics<arbitrary>], iteration_bounds = array<i64: 1, 1>, scalar_prefetch = 0 : i64, scratch_operands = 0 : i64, tpu.core_type = #tpu.core_type<tc>, window_params = [{transform_indices = @transform_0, window_bounds = array<i64: 128, 1>}, {transform_indices = @transform_1, window_bounds = array<i64: 1, 1, 128>}, {pipeline_mode = #tpu.pipeline_mode<synchronous>, transform_indices = @transform_2, window_bounds = array<i64: 128, 128>}, {transform_indices = @transform_3, window_bounds = array<i64: 128, 128>}, {pipeline_mode = #tpu.pipeline_mode<synchronous>, transform_indices = @transform_4, window_bounds = array<i64: 128, 128>}, {pipeline_mode = #tpu.pipeline_mode<synchronous>, transform_indices = @transform_5, window_bounds = array<i64: 128, 128>}, {transform_indices = @transform_6, window_bounds = array<i64: 128, 128>}]} {
    %c0_i32 = arith.constant 0 : i32
    %0 = arith.cmpi eq, %arg1, %c0_i32 : i32
    %1 = arith.extui %0 : i1 to i32
    %c0_i32_0 = arith.constant 0 : i32
    %2 = arith.cmpi ne, %1, %c0_i32_0 : i32
    scf.if %2 {
      %cst_20 = arith.constant 0.000000e+00 : f32
      %31 = vector.broadcast %cst_20 : f32 to vector<128x128xf32>
      %c0_21 = arith.constant 0 : index
      %c0_22 = arith.constant 0 : index
      %32 = vector.load %arg8[%c0_21, %c0_22] : memref<128x128xf32, #tpu.memory_space<vmem>>, vector<128x128xf32>
      tpu.vector_store %arg8[%c0_21, %c0_22], %31 {strides = array<i32>} : memref<128x128xf32, #tpu.memory_space<vmem>>, vector<128x128xf32>,
    } else {
    }
    %c0 = arith.constant 0 : index
    %c0_1 = arith.constant 0 : index
    %3 = vector.load %arg5[%c0, %c0_1] : memref<128x128xf32, #tpu.memory_space<vmem>>, vector<128x128xf32>
    %c0_2 = arith.constant 0 : index
    %c0_3 = arith.constant 0 : index
    %4 = vector.load %arg6[%c0_2, %c0_3] : memref<128x128xf32, #tpu.memory_space<vmem>>, vector<128x128xf32>
    %cst = arith.constant dense<0.000000e+00> : vector<128x128xf32>
    %5 = tpu.matmul %3, %4, %cst {dimension_numbers = #tpu.dot_dimension_numbers<[1], [0], [0], [1], [0, 0, 1, 1], [], []>} : vector<128x128xf32>, vector<128x128xf32>, vector<128x128xf32> -> vector<128x128xf32>
    %c0_4 = arith.constant 0 : index
    %c0_5 = arith.constant 0 : index
    %6 = vector.load %arg7[%c0_4, %c0_5] : memref<128x128xf32, #tpu.memory_space<vmem>>, vector<128x128xf32>
    %cst_6 = arith.constant dense<0.000000e+00> : vector<128x128xf32>
    %7 = tpu.matmul %5, %6, %cst_6 {dimension_numbers = #tpu.dot_dimension_numbers<[1], [0], [0], [1], [0, 0, 1, 1], [], []>} : vector<128x128xf32>, vector<128x128xf32>, vector<128x128xf32> -> vector<128x128xf32>
    %c0_7 = arith.constant 0 : index
    %c0_8 = arith.constant 0 : index
    %8 = vector.load %arg2[%c0_7, %c0_8] : memref<128x1xi32, #tpu.memory_space<vmem>>, vector<128x1xi32>
    %9 = tpu.iota {dimensions = array<i32: 1>} : vector<128x128xi32>
    %10 = vector.broadcast %8 : vector<128x1xi32> to vector<128x128xi32>
    %11 = arith.cmpi eq, %10, %9 : vector<128x128xi32>
    %12 = arith.extui %11 : vector<128x128xi1> to vector<128x128xi32>
    %13 = arith.sitofp %12 : vector<128x128xi32> to vector<128x128xf32>
    %c0_9 = arith.constant 0 : index
    %c0_10 = arith.constant 0 : index
    %14 = vector.load %arg4[%c0_9, %c0_10] : memref<128x128xf32, #tpu.memory_space<vmem>>, vector<128x128xf32>
    %cst_11 = arith.constant dense<0.000000e+00> : vector<128x128xf32>
    %15 = tpu.matmul %13, %14, %cst_11 {dimension_numbers = #tpu.dot_dimension_numbers<[1], [0], [0], [1], [0, 0, 1, 1], [], []>} : vector<128x128xf32>, vector<128x128xf32>, vector<128x128xf32> -> vector<128x128xf32>
    %16 = arith.mulf %15, %7 : vector<128x128xf32>
    %c128_i32 = arith.constant 128 : i32
    %17 = arith.muli %arg0, %c128_i32 : i32
    %18 = tpu.iota {dimensions = array<i32: 0>} : vector<128x128xi32>
    %19 = vector.broadcast %17 : i32 to vector<128x128xi32>
    %20 = arith.addi %19, %18 : vector<128x128xi32>
    %c0_12 = arith.constant 0 : index
    %c0_13 = arith.constant 0 : index
    %c0_14 = arith.constant 0 : index
    %21 = vector.load %arg3[%c0_12, %c0_13, %c0_14] : memref<1x1x128xi32, #tpu.memory_space<vmem>>, vector<1x1x128xi32>
    %22 = vector.shape_cast %21 : vector<1x1x128xi32> to vector<1x128xi32>
    %23 = vector.broadcast %22 : vector<1x128xi32> to vector<128x128xi32>
    %24 = arith.cmpi eq, %20, %23 : vector<128x128xi32>
    %25 = arith.extui %24 : vector<128x128xi1> to vector<128x128xi32>
    %26 = arith.sitofp %25 : vector<128x128xi32> to vector<128x128xf32>
    %c0_15 = arith.constant 0 : index
    %c0_16 = arith.constant 0 : index
    %27 = vector.load %arg8[%c0_15, %c0_16] : memref<128x128xf32, #tpu.memory_space<vmem>>, vector<128x128xf32>
    %cst_17 = arith.constant dense<0.000000e+00> : vector<128x128xf32>
    %28 = tpu.matmul %26, %16, %cst_17 {dimension_numbers = #tpu.dot_dimension_numbers<[1], [0], [0], [1], [0, 0, 1, 1], [], []>} : vector<128x128xf32>, vector<128x128xf32>, vector<128x128xf32> -> vector<128x128xf32>
    %29 = arith.addf %27, %28 : vector<128x128xf32>
    %c0_18 = arith.constant 0 : index
    %c0_19 = arith.constant 0 : index
    %30 = vector.load %arg8[%c0_18, %c0_19] : memref<128x128xf32, #tpu.memory_space<vmem>>, vector<128x128xf32>
    tpu.vector_store %arg8[%c0_18, %c0_19], %29 {strides = array<i32>} : memref<128x128xf32, #tpu.memory_space<vmem>>, vector<128x128xf32>,
    return
  }
  func.func @transform_0(%arg0: i32, %arg1: i32) -> (i32, i32) {
    %c0_i32 = arith.constant 0 : i32
    %c0_i32_0 = arith.constant 0 : i32
    return %arg1, %c0_i32 : i32, i32
  }
  func.func @transform_1(%arg0: i32, %arg1: i32) -> (i32, i32, i32) {
    %c0_i32 = arith.constant 0 : i32
    %c0_i32_0 = arith.constant 0 : i32
    %c0_i32_1 = arith.constant 0 : i32
    return %arg1, %c0_i32, %c0_i32_0 : i32, i32, i32
  }
  func.func @transform_2(%arg0: i32, %arg1: i32) -> (i32, i32) {
    %c0_i32 = arith.constant 0 : i32
    %c0_i32_0 = arith.constant 0 : i32
    %c0_i32_1 = arith.constant 0 : i32
    return %c0_i32, %c0_i32_0 : i32, i32
  }
  func.func @transform_3(%arg0: i32, %arg1: i32) -> (i32, i32) {
    %c0_i32 = arith.constant 0 : i32
    %c0_i32_0 = arith.constant 0 : i32
    return %arg1, %c0_i32 : i32, i32
  }
  func.func @transform_4(%arg0: i32, %arg1: i32) -> (i32, i32) {
    %c0_i32 = arith.constant 0 : i32
    %c0_i32_0 = arith.constant 0 : i32
    %c0_i32_1 = arith.constant 0 : i32
    return %c0_i32, %c0_i32_0 : i32, i32
  }
  func.func @transform_5(%arg0: i32, %arg1: i32) -> (i32, i32) {
    %c0_i32 = arith.constant 0 : i32
    %c0_i32_0 = arith.constant 0 : i32
    %c0_i32_1 = arith.constant 0 : i32
    return %c0_i32, %c0_i32_0 : i32, i32
  }
  func.func @transform_6(%arg0: i32, %arg1: i32) -> (i32, i32) {
    %c0_i32 = arith.constant 0 : i32
    %c0_i32_0 = arith.constant 0 : i32
    return %arg0, %c0_i32 : i32, i32
  }
}

module attributes {stable_mosaic.version = 11 : i64} {
  func.func @edge2_kernel(%arg0: i32, %arg1: memref<128x128xf32, #tpu.memory_space<vmem>>, %arg2: memref<128x128xf32, #tpu.memory_space<vmem>>, %arg3: memref<128x128xf32, #tpu.memory_space<vmem>>, %arg4: memref<128x128xf32, #tpu.memory_space<vmem>>, %arg5: memref<2x128x128xf32, #tpu.memory_space<vmem>>, %arg6: memref<2x1x128xf32, #tpu.memory_space<vmem>>, %arg7: memref<128x128xf32, #tpu.memory_space<vmem>>, %arg8: memref<1x128xf32, #tpu.memory_space<vmem>>, %arg9: memref<4x128x128xf32, #tpu.memory_space<vmem>>, %arg10: memref<4x1x128xf32, #tpu.memory_space<vmem>>, %arg11: memref<128x128xf32, #tpu.memory_space<vmem>>) attributes {dimension_semantics = [#tpu.dimension_semantics<parallel>], iteration_bounds = array<i64: 1>, scalar_prefetch = 0 : i64, scratch_operands = 0 : i64, tpu.core_type = #tpu.core_type<tc>, window_params = [{transform_indices = @transform_0, window_bounds = array<i64: 128, 128>}, {transform_indices = @transform_1, window_bounds = array<i64: 128, 128>}, {transform_indices = @transform_2, window_bounds = array<i64: 128, 128>}, {pipeline_mode = #tpu.pipeline_mode<synchronous>, transform_indices = @transform_3, window_bounds = array<i64: 128, 128>}, {pipeline_mode = #tpu.pipeline_mode<synchronous>, transform_indices = @transform_4, window_bounds = array<i64: 2, 128, 128>}, {pipeline_mode = #tpu.pipeline_mode<synchronous>, transform_indices = @transform_5, window_bounds = array<i64: 2, 1, 128>}, {pipeline_mode = #tpu.pipeline_mode<synchronous>, transform_indices = @transform_6, window_bounds = array<i64: 128, 128>}, {pipeline_mode = #tpu.pipeline_mode<synchronous>, transform_indices = @transform_7, window_bounds = array<i64: 1, 128>}, {pipeline_mode = #tpu.pipeline_mode<synchronous>, transform_indices = @transform_8, window_bounds = array<i64: 4, 128, 128>}, {pipeline_mode = #tpu.pipeline_mode<synchronous>, transform_indices = @transform_9, window_bounds = array<i64: 4, 1, 128>}, {transform_indices = @transform_10, window_bounds = array<i64: 128, 128>}]} {
    %c0 = arith.constant 0 : index
    %c0_0 = arith.constant 0 : index
    %0 = vector.load %arg1[%c0, %c0_0] : memref<128x128xf32, #tpu.memory_space<vmem>>, vector<128x128xf32>
    %c0_1 = arith.constant 0 : index
    %c0_2 = arith.constant 0 : index
    %1 = vector.load %arg3[%c0_1, %c0_2] : memref<128x128xf32, #tpu.memory_space<vmem>>, vector<128x128xf32>
    %c0_3 = arith.constant 0 : index
    %c0_4 = arith.constant 0 : index
    %2 = vector.load %arg4[%c0_3, %c0_4] : memref<128x128xf32, #tpu.memory_space<vmem>>, vector<128x128xf32>
    %cst = arith.constant dense<0.000000e+00> : vector<128x128xf32>
    %3 = tpu.matmul %1, %2, %cst {dimension_numbers = #tpu.dot_dimension_numbers<[1], [0], [0], [1], [0, 0, 1, 1], [], []>} : vector<128x128xf32>, vector<128x128xf32>, vector<128x128xf32> -> vector<128x128xf32>
    %cst_5 = arith.constant 5.000000e-01 : f32
    %4 = vector.broadcast %cst_5 : f32 to vector<128x128xf32>
    %5 = arith.mulf %4, %3 : vector<128x128xf32>
    %6 = math.tanh %5 : vector<128x128xf32>
    %cst_6 = arith.constant 5.000000e-01 : f32
    %7 = vector.broadcast %cst_6 : f32 to vector<128x128xf32>
    %8 = arith.mulf %7, %6 : vector<128x128xf32>
    %cst_7 = arith.constant 5.000000e-01 : f32
    %9 = vector.broadcast %cst_7 : f32 to vector<128x128xf32>
    %10 = arith.addf %8, %9 : vector<128x128xf32>
    %11 = arith.mulf %3, %10 : vector<128x128xf32>
    %c0_8 = arith.constant 0 : index
    %c0_9 = arith.constant 0 : index
    %12 = vector.load %arg2[%c0_8, %c0_9] : memref<128x128xf32, #tpu.memory_space<vmem>>, vector<128x128xf32>
    %13 = arith.addf %12, %11 : vector<128x128xf32>
    %c0_10 = arith.constant 0 : index
    %c0_11 = arith.constant 0 : index
    %c0_12 = arith.constant 0 : index
    %14 = vector.load %arg5[%c0_10, %c0_11, %c0_12] : memref<2x128x128xf32, #tpu.memory_space<vmem>>, vector<1x128x128xf32>
    %15 = vector.shape_cast %14 : vector<1x128x128xf32> to vector<128x128xf32>
    %cst_13 = arith.constant dense<0.000000e+00> : vector<128x128xf32>
    %16 = tpu.matmul %13, %15, %cst_13 {dimension_numbers = #tpu.dot_dimension_numbers<[1], [0], [0], [1], [0, 0, 1, 1], [], []>} : vector<128x128xf32>, vector<128x128xf32>, vector<128x128xf32> -> vector<128x128xf32>
    %c0_14 = arith.constant 0 : index
    %c0_15 = arith.constant 0 : index
    %c0_16 = arith.constant 0 : index
    %17 = vector.load %arg6[%c0_14, %c0_15, %c0_16] : memref<2x1x128xf32, #tpu.memory_space<vmem>>, vector<1x1x128xf32>
    %18 = vector.shape_cast %17 : vector<1x1x128xf32> to vector<1x128xf32>
    %19 = vector.broadcast %18 : vector<1x128xf32> to vector<128x128xf32>
    %20 = arith.addf %16, %19 : vector<128x128xf32>
    %cst_17 = arith.constant 5.000000e-01 : f32
    %21 = vector.broadcast %cst_17 : f32 to vector<128x128xf32>
    %22 = arith.mulf %21, %20 : vector<128x128xf32>
    %23 = math.tanh %22 : vector<128x128xf32>
    %cst_18 = arith.constant 5.000000e-01 : f32
    %24 = vector.broadcast %cst_18 : f32 to vector<128x128xf32>
    %25 = arith.mulf %24, %23 : vector<128x128xf32>
    %cst_19 = arith.constant 5.000000e-01 : f32
    %26 = vector.broadcast %cst_19 : f32 to vector<128x128xf32>
    %27 = arith.addf %25, %26 : vector<128x128xf32>
    %28 = arith.mulf %20, %27 : vector<128x128xf32>
    %c1 = arith.constant 1 : index
    %c0_20 = arith.constant 0 : index
    %c0_21 = arith.constant 0 : index
    %29 = vector.load %arg5[%c1, %c0_20, %c0_21] : memref<2x128x128xf32, #tpu.memory_space<vmem>>, vector<1x128x128xf32>
    %30 = vector.shape_cast %29 : vector<1x128x128xf32> to vector<128x128xf32>
    %cst_22 = arith.constant dense<0.000000e+00> : vector<128x128xf32>
    %31 = tpu.matmul %28, %30, %cst_22 {dimension_numbers = #tpu.dot_dimension_numbers<[1], [0], [0], [1], [0, 0, 1, 1], [], []>} : vector<128x128xf32>, vector<128x128xf32>, vector<128x128xf32> -> vector<128x128xf32>
    %c1_23 = arith.constant 1 : index
    %c0_24 = arith.constant 0 : index
    %c0_25 = arith.constant 0 : index
    %32 = vector.load %arg6[%c1_23, %c0_24, %c0_25] : memref<2x1x128xf32, #tpu.memory_space<vmem>>, vector<1x1x128xf32>
    %33 = vector.shape_cast %32 : vector<1x1x128xf32> to vector<1x128xf32>
    %34 = vector.broadcast %33 : vector<1x128xf32> to vector<128x128xf32>
    %35 = arith.addf %31, %34 : vector<128x128xf32>
    %cst_26 = arith.constant 5.000000e-01 : f32
    %36 = vector.broadcast %cst_26 : f32 to vector<128x128xf32>
    %37 = arith.mulf %36, %35 : vector<128x128xf32>
    %38 = math.tanh %37 : vector<128x128xf32>
    %cst_27 = arith.constant 5.000000e-01 : f32
    %39 = vector.broadcast %cst_27 : f32 to vector<128x128xf32>
    %40 = arith.mulf %39, %38 : vector<128x128xf32>
    %cst_28 = arith.constant 5.000000e-01 : f32
    %41 = vector.broadcast %cst_28 : f32 to vector<128x128xf32>
    %42 = arith.addf %40, %41 : vector<128x128xf32>
    %43 = arith.mulf %35, %42 : vector<128x128xf32>
    %44 = arith.addf %13, %43 : vector<128x128xf32>
    %c0_29 = arith.constant 0 : index
    %c0_30 = arith.constant 0 : index
    %45 = vector.load %arg7[%c0_29, %c0_30] : memref<128x128xf32, #tpu.memory_space<vmem>>, vector<128x128xf32>
    %cst_31 = arith.constant dense<0.000000e+00> : vector<128x128xf32>
    %46 = tpu.matmul %44, %45, %cst_31 {dimension_numbers = #tpu.dot_dimension_numbers<[1], [0], [0], [1], [0, 0, 1, 1], [], []>} : vector<128x128xf32>, vector<128x128xf32>, vector<128x128xf32> -> vector<128x128xf32>
    %c0_32 = arith.constant 0 : index
    %c0_33 = arith.constant 0 : index
    %47 = vector.load %arg8[%c0_32, %c0_33] : memref<1x128xf32, #tpu.memory_space<vmem>>, vector<1x128xf32>
    %48 = vector.broadcast %47 : vector<1x128xf32> to vector<128x128xf32>
    %49 = arith.addf %46, %48 : vector<128x128xf32>
    %cst_34 = arith.constant 5.000000e-01 : f32
    %50 = vector.broadcast %cst_34 : f32 to vector<128x128xf32>
    %51 = arith.mulf %50, %49 : vector<128x128xf32>
    %52 = math.tanh %51 : vector<128x128xf32>
    %cst_35 = arith.constant 5.000000e-01 : f32
    %53 = vector.broadcast %cst_35 : f32 to vector<128x128xf32>
    %54 = arith.mulf %53, %52 : vector<128x128xf32>
    %cst_36 = arith.constant 5.000000e-01 : f32
    %55 = vector.broadcast %cst_36 : f32 to vector<128x128xf32>
    %56 = arith.addf %54, %55 : vector<128x128xf32>
    %57 = arith.mulf %49, %56 : vector<128x128xf32>
    %58 = arith.addf %57, %0 : vector<128x128xf32>
    %c0_37 = arith.constant 0 : index
    %c0_38 = arith.constant 0 : index
    %c0_39 = arith.constant 0 : index
    %59 = vector.load %arg9[%c0_37, %c0_38, %c0_39] : memref<4x128x128xf32, #tpu.memory_space<vmem>>, vector<1x128x128xf32>
    %60 = vector.shape_cast %59 : vector<1x128x128xf32> to vector<128x128xf32>
    %cst_40 = arith.constant dense<0.000000e+00> : vector<128x128xf32>
    %61 = tpu.matmul %58, %60, %cst_40 {dimension_numbers = #tpu.dot_dimension_numbers<[1], [0], [0], [1], [0, 0, 1, 1], [], []>} : vector<128x128xf32>, vector<128x128xf32>, vector<128x128xf32> -> vector<128x128xf32>
    %c0_41 = arith.constant 0 : index
    %c0_42 = arith.constant 0 : index
    %c0_43 = arith.constant 0 : index
    %62 = vector.load %arg10[%c0_41, %c0_42, %c0_43] : memref<4x1x128xf32, #tpu.memory_space<vmem>>, vector<1x1x128xf32>
    %63 = vector.shape_cast %62 : vector<1x1x128xf32> to vector<1x128xf32>
    %64 = vector.broadcast %63 : vector<1x128xf32> to vector<128x128xf32>
    %65 = arith.addf %61, %64 : vector<128x128xf32>
    %cst_44 = arith.constant 5.000000e-01 : f32
    %66 = vector.broadcast %cst_44 : f32 to vector<128x128xf32>
    %67 = arith.mulf %66, %65 : vector<128x128xf32>
    %68 = math.tanh %67 : vector<128x128xf32>
    %cst_45 = arith.constant 5.000000e-01 : f32
    %69 = vector.broadcast %cst_45 : f32 to vector<128x128xf32>
    %70 = arith.mulf %69, %68 : vector<128x128xf32>
    %cst_46 = arith.constant 5.000000e-01 : f32
    %71 = vector.broadcast %cst_46 : f32 to vector<128x128xf32>
    %72 = arith.addf %70, %71 : vector<128x128xf32>
    %73 = arith.mulf %65, %72 : vector<128x128xf32>
    %c1_47 = arith.constant 1 : index
    %c0_48 = arith.constant 0 : index
    %c0_49 = arith.constant 0 : index
    %74 = vector.load %arg9[%c1_47, %c0_48, %c0_49] : memref<4x128x128xf32, #tpu.memory_space<vmem>>, vector<1x128x128xf32>
    %75 = vector.shape_cast %74 : vector<1x128x128xf32> to vector<128x128xf32>
    %cst_50 = arith.constant dense<0.000000e+00> : vector<128x128xf32>
    %76 = tpu.matmul %73, %75, %cst_50 {dimension_numbers = #tpu.dot_dimension_numbers<[1], [0], [0], [1], [0, 0, 1, 1], [], []>} : vector<128x128xf32>, vector<128x128xf32>, vector<128x128xf32> -> vector<128x128xf32>
    %c1_51 = arith.constant 1 : index
    %c0_52 = arith.constant 0 : index
    %c0_53 = arith.constant 0 : index
    %77 = vector.load %arg10[%c1_51, %c0_52, %c0_53] : memref<4x1x128xf32, #tpu.memory_space<vmem>>, vector<1x1x128xf32>
    %78 = vector.shape_cast %77 : vector<1x1x128xf32> to vector<1x128xf32>
    %79 = vector.broadcast %78 : vector<1x128xf32> to vector<128x128xf32>
    %80 = arith.addf %76, %79 : vector<128x128xf32>
    %cst_54 = arith.constant 5.000000e-01 : f32
    %81 = vector.broadcast %cst_54 : f32 to vector<128x128xf32>
    %82 = arith.mulf %81, %80 : vector<128x128xf32>
    %83 = math.tanh %82 : vector<128x128xf32>
    %cst_55 = arith.constant 5.000000e-01 : f32
    %84 = vector.broadcast %cst_55 : f32 to vector<128x128xf32>
    %85 = arith.mulf %84, %83 : vector<128x128xf32>
    %cst_56 = arith.constant 5.000000e-01 : f32
    %86 = vector.broadcast %cst_56 : f32 to vector<128x128xf32>
    %87 = arith.addf %85, %86 : vector<128x128xf32>
    %88 = arith.mulf %80, %87 : vector<128x128xf32>
    %89 = arith.addf %58, %88 : vector<128x128xf32>
    %c2 = arith.constant 2 : index
    %c0_57 = arith.constant 0 : index
    %c0_58 = arith.constant 0 : index
    %90 = vector.load %arg9[%c2, %c0_57, %c0_58] : memref<4x128x128xf32, #tpu.memory_space<vmem>>, vector<1x128x128xf32>
    %91 = vector.shape_cast %90 : vector<1x128x128xf32> to vector<128x128xf32>
    %cst_59 = arith.constant dense<0.000000e+00> : vector<128x128xf32>
    %92 = tpu.matmul %89, %91, %cst_59 {dimension_numbers = #tpu.dot_dimension_numbers<[1], [0], [0], [1], [0, 0, 1, 1], [], []>} : vector<128x128xf32>, vector<128x128xf32>, vector<128x128xf32> -> vector<128x128xf32>
    %c2_60 = arith.constant 2 : index
    %c0_61 = arith.constant 0 : index
    %c0_62 = arith.constant 0 : index
    %93 = vector.load %arg10[%c2_60, %c0_61, %c0_62] : memref<4x1x128xf32, #tpu.memory_space<vmem>>, vector<1x1x128xf32>
    %94 = vector.shape_cast %93 : vector<1x1x128xf32> to vector<1x128xf32>
    %95 = vector.broadcast %94 : vector<1x128xf32> to vector<128x128xf32>
    %96 = arith.addf %92, %95 : vector<128x128xf32>
    %cst_63 = arith.constant 5.000000e-01 : f32
    %97 = vector.broadcast %cst_63 : f32 to vector<128x128xf32>
    %98 = arith.mulf %97, %96 : vector<128x128xf32>
    %99 = math.tanh %98 : vector<128x128xf32>
    %cst_64 = arith.constant 5.000000e-01 : f32
    %100 = vector.broadcast %cst_64 : f32 to vector<128x128xf32>
    %101 = arith.mulf %100, %99 : vector<128x128xf32>
    %cst_65 = arith.constant 5.000000e-01 : f32
    %102 = vector.broadcast %cst_65 : f32 to vector<128x128xf32>
    %103 = arith.addf %101, %102 : vector<128x128xf32>
    %104 = arith.mulf %96, %103 : vector<128x128xf32>
    %c3 = arith.constant 3 : index
    %c0_66 = arith.constant 0 : index
    %c0_67 = arith.constant 0 : index
    %105 = vector.load %arg9[%c3, %c0_66, %c0_67] : memref<4x128x128xf32, #tpu.memory_space<vmem>>, vector<1x128x128xf32>
    %106 = vector.shape_cast %105 : vector<1x128x128xf32> to vector<128x128xf32>
    %cst_68 = arith.constant dense<0.000000e+00> : vector<128x128xf32>
    %107 = tpu.matmul %104, %106, %cst_68 {dimension_numbers = #tpu.dot_dimension_numbers<[1], [0], [0], [1], [0, 0, 1, 1], [], []>} : vector<128x128xf32>, vector<128x128xf32>, vector<128x128xf32> -> vector<128x128xf32>
    %c3_69 = arith.constant 3 : index
    %c0_70 = arith.constant 0 : index
    %c0_71 = arith.constant 0 : index
    %108 = vector.load %arg10[%c3_69, %c0_70, %c0_71] : memref<4x1x128xf32, #tpu.memory_space<vmem>>, vector<1x1x128xf32>
    %109 = vector.shape_cast %108 : vector<1x1x128xf32> to vector<1x128xf32>
    %110 = vector.broadcast %109 : vector<1x128xf32> to vector<128x128xf32>
    %111 = arith.addf %107, %110 : vector<128x128xf32>
    %cst_72 = arith.constant 5.000000e-01 : f32
    %112 = vector.broadcast %cst_72 : f32 to vector<128x128xf32>
    %113 = arith.mulf %112, %111 : vector<128x128xf32>
    %114 = math.tanh %113 : vector<128x128xf32>
    %cst_73 = arith.constant 5.000000e-01 : f32
    %115 = vector.broadcast %cst_73 : f32 to vector<128x128xf32>
    %116 = arith.mulf %115, %114 : vector<128x128xf32>
    %cst_74 = arith.constant 5.000000e-01 : f32
    %117 = vector.broadcast %cst_74 : f32 to vector<128x128xf32>
    %118 = arith.addf %116, %117 : vector<128x128xf32>
    %119 = arith.mulf %111, %118 : vector<128x128xf32>
    %120 = arith.addf %89, %119 : vector<128x128xf32>
    %c0_75 = arith.constant 0 : index
    %c0_76 = arith.constant 0 : index
    %121 = vector.load %arg11[%c0_75, %c0_76] : memref<128x128xf32, #tpu.memory_space<vmem>>, vector<128x128xf32>
    tpu.vector_store %arg11[%c0_75, %c0_76], %120 {strides = array<i32>} : memref<128x128xf32, #tpu.memory_space<vmem>>, vector<128x128xf32>,
    return
  }
  func.func @transform_0(%arg0: i32) -> (i32, i32) {
    %c0_i32 = arith.constant 0 : i32
    %c0_i32_0 = arith.constant 0 : i32
    return %arg0, %c0_i32 : i32, i32
  }
  func.func @transform_1(%arg0: i32) -> (i32, i32) {
    %c0_i32 = arith.constant 0 : i32
    %c0_i32_0 = arith.constant 0 : i32
    return %arg0, %c0_i32 : i32, i32
  }
  func.func @transform_2(%arg0: i32) -> (i32, i32) {
    %c0_i32 = arith.constant 0 : i32
    %c0_i32_0 = arith.constant 0 : i32
    return %arg0, %c0_i32 : i32, i32
  }
  func.func @transform_3(%arg0: i32) -> (i32, i32) {
    %c0_i32 = arith.constant 0 : i32
    %c0_i32_0 = arith.constant 0 : i32
    %c0_i32_1 = arith.constant 0 : i32
    return %c0_i32, %c0_i32_0 : i32, i32
  }
  func.func @transform_4(%arg0: i32) -> (i32, i32, i32) {
    %c0_i32 = arith.constant 0 : i32
    %c0_i32_0 = arith.constant 0 : i32
    %c0_i32_1 = arith.constant 0 : i32
    %c0_i32_2 = arith.constant 0 : i32
    return %c0_i32, %c0_i32_0, %c0_i32_1 : i32, i32, i32
  }
  func.func @transform_5(%arg0: i32) -> (i32, i32, i32) {
    %c0_i32 = arith.constant 0 : i32
    %c0_i32_0 = arith.constant 0 : i32
    %c0_i32_1 = arith.constant 0 : i32
    %c0_i32_2 = arith.constant 0 : i32
    return %c0_i32, %c0_i32_0, %c0_i32_1 : i32, i32, i32
  }
  func.func @transform_6(%arg0: i32) -> (i32, i32) {
    %c0_i32 = arith.constant 0 : i32
    %c0_i32_0 = arith.constant 0 : i32
    %c0_i32_1 = arith.constant 0 : i32
    return %c0_i32, %c0_i32_0 : i32, i32
  }
  func.func @transform_7(%arg0: i32) -> (i32, i32) {
    %c0_i32 = arith.constant 0 : i32
    %c0_i32_0 = arith.constant 0 : i32
    %c0_i32_1 = arith.constant 0 : i32
    return %c0_i32, %c0_i32_0 : i32, i32
  }
  func.func @transform_8(%arg0: i32) -> (i32, i32, i32) {
    %c0_i32 = arith.constant 0 : i32
    %c0_i32_0 = arith.constant 0 : i32
    %c0_i32_1 = arith.constant 0 : i32
    %c0_i32_2 = arith.constant 0 : i32
    return %c0_i32, %c0_i32_0, %c0_i32_1 : i32, i32, i32
  }
  func.func @transform_9(%arg0: i32) -> (i32, i32, i32) {
    %c0_i32 = arith.constant 0 : i32
    %c0_i32_0 = arith.constant 0 : i32
    %c0_i32_1 = arith.constant 0 : i32
    %c0_i32_2 = arith.constant 0 : i32
    return %c0_i32, %c0_i32_0, %c0_i32_1 : i32, i32, i32
  }
  func.func @transform_10(%arg0: i32) -> (i32, i32) {
    %c0_i32 = arith.constant 0 : i32
    %c0_i32_0 = arith.constant 0 : i32
    return %arg0, %c0_i32 : i32, i32
  }
}

</mosaic_0001>

<llo_original>
// kernel: interaction_pp_block.3
$region0: #{interaction_pp_block.3}
  #allocation0 [shape = 'u32[]', space=smem, size = 0x4, offset = 0x4, fixed_abs, tag = 'smem constant byte address 0x4 - core index']
  #allocation1 [shape = 'u32[144,128]{1,0:T(1,128)}', space=vmem, size = 0x12000, scoped, tag = 'internal scratch']
  %s0 = inlined_call_operand.vmem [shape: f32[128,128], index: 0, kind: input, shape index: {}]
  %s1 = inlined_call_operand.vmem [shape: f32[128,128], index: 1, kind: input, shape index: {}]
  %s2 = inlined_call_operand.vmem [shape: f32[128,128], index: 2, kind: input, shape index: {}]
  %s3 = inlined_call_operand.vmem [shape: f32[1,128], index: 3, kind: input, shape index: {}]
  %s4 = inlined_call_operand.vmem [shape: f32[128,128], index: 4, kind: input, shape index: {}]
  %s5 = inlined_call_operand.vmem [shape: f32[1,128], index: 5, kind: input, shape index: {}]
  %s6 = inlined_call_operand.vmem [shape: f32[128,128], index: 6, kind: input, shape index: {}]
  %s7 = inlined_call_operand.vmem [shape: f32[128,128], index: 7, kind: input, shape index: {}]
  %s8 = inlined_call_operand.vmem [shape: f32[128,128], index: 8, kind: input, shape index: {}]
  %s9 = inlined_call_operand.vmem [shape: f32[128,128], index: 9, kind: output, shape index: {0}]
  %s10 = inlined_call_operand.vmem [shape: f32[128,128], index: 10, kind: output, shape index: {1}]
  %11 = xla_tuple %s9, %s10
  %s12 = sld [smem:[#allocation0]]
  $region54: #{interaction_pp_block.3} parent=0
    _
  %s14 = ssub.s32 1, %s12
  %s15 = scalar_select 0, %s14, %s12
  // Predicated region
  $region2: #{interaction_pp_block.3} parent=0 // pred_check
    _
  $region3: #{interaction_pp_block.3} parent=0 // pred_check_branch
    %17 = sbr.rel (0) target = $region5
  $region4: #{interaction_pp_block.3} parent=0 // pred_region
    _
  $region5: #{interaction_pp_block.3} parent=0 // pred_fallthru
    _
  // Predicated region
  $region6: #{interaction_pp_block.3} parent=0 // pred_check
    _
  $region7: #{interaction_pp_block.3} parent=0 // pred_check_branch
    %19 = sbr.rel (0) target = $region9
  $region8: #{interaction_pp_block.3} parent=0 // pred_region
    _
  $region9: #{interaction_pp_block.3} parent=0 // pred_fallthru
    _
  // Predicated region
  $region10: #{interaction_pp_block.3} parent=0 // pred_check
    _
  $region11: #{interaction_pp_block.3} parent=0 // pred_check_branch
    %21 = sbr.rel (0) target = $region13
  $region12: #{interaction_pp_block.3} parent=0 // pred_region
    _
  $region13: #{interaction_pp_block.3} parent=0 // pred_fallthru
    _
  // Predicated region
  $region14: #{interaction_pp_block.3} parent=0 // pred_check
    _
  $region15: #{interaction_pp_block.3} parent=0 // pred_check_branch
    %23 = sbr.rel (0) target = $region17
  $region16: #{interaction_pp_block.3} parent=0 // pred_region
    _
  $region17: #{interaction_pp_block.3} parent=0 // pred_fallthru
    _
  // Predicated region
  $region18: #{interaction_pp_block.3} parent=0 // pred_check
    _
  $region19: #{interaction_pp_block.3} parent=0 // pred_check_branch
    %25 = sbr.rel (0) target = $region21
  $region20: #{interaction_pp_block.3} parent=0 // pred_region
    _
  $region21: #{interaction_pp_block.3} parent=0 // pred_fallthru
    _
  // Predicated region
  $region22: #{interaction_pp_block.3} parent=0 // pred_check
    _
  $region23: #{interaction_pp_block.3} parent=0 // pred_check_branch
    %27 = sbr.rel (0) target = $region25
  $region24: #{interaction_pp_block.3} parent=0 // pred_region
    _
  $region25: #{interaction_pp_block.3} parent=0 // pred_fallthru
    _
  // Predicated region
  $region26: #{interaction_pp_block.3} parent=0 // pred_check
    _
  $region27: #{interaction_pp_block.3} parent=0 // pred_check_branch
    %29 = sbr.rel (0) target = $region29
  $region28: #{interaction_pp_block.3} parent=0 // pred_region
    _
  $region29: #{interaction_pp_block.3} parent=0 // pred_fallthru
    _
  // Predicated region
  $region30: #{interaction_pp_block.3} parent=0 // pred_check
    _
  $region31: #{interaction_pp_block.3} parent=0 // pred_check_branch
    %31 = sbr.rel (0) target = $region33
  $region32: #{interaction_pp_block.3} parent=0 // pred_region
    _
  $region33: #{interaction_pp_block.3} parent=0 // pred_fallthru
    _
  // Predicated region
  $region34: #{interaction_pp_block.3} parent=0 // pred_check
    _
  $region35: #{interaction_pp_block.3} parent=0 // pred_check_branch
    %33 = sbr.rel (0) target = $region37
  $region36: #{interaction_pp_block.3} parent=0 // pred_region
    _
  $region37: #{interaction_pp_block.3} parent=0 // pred_fallthru
    _
  %v34 = vld [vmem:[%s0] sm:$0xff]
  %v35 = vld [vmem:[%s0 + $0x8] sm:$0xff]
  %v36 = vld [vmem:[%s0 + $0x10] sm:$0xff]
  %v37 = vld [vmem:[%s0 + $0x18] sm:$0xff]
  %v38 = vld [vmem:[%s0 + $0x20] sm:$0xff]
  %v39 = vld [vmem:[%s0 + $0x28] sm:$0xff]
  %v40 = vld [vmem:[%s0 + $0x30] sm:$0xff]
  %v41 = vld [vmem:[%s0 + $0x38] sm:$0xff]
  %v42 = vld [vmem:[%s0 + $0x40] sm:$0xff]
  %v43 = vld [vmem:[%s0 + $0x48] sm:$0xff]
  %v44 = vld [vmem:[%s0 + $0x50] sm:$0xff]
  %v45 = vld [vmem:[%s0 + $0x58] sm:$0xff]
  %v46 = vld [vmem:[%s0 + $0x60] sm:$0xff]
  %v47 = vld [vmem:[%s0 + $0x68] sm:$0xff]
  %v48 = vld [vmem:[%s0 + $0x70] sm:$0xff]
  %v49 = vld [vmem:[%s0 + $0x78] sm:$0xff]
  %v50 = vld [vmem:[%s2] sm:$0xff]
  %v51 = vld [vmem:[%s2 + $0x8] sm:$0xff]
  %v52 = vld [vmem:[%s2 + $0x10] sm:$0xff]
  %v53 = vld [vmem:[%s2 + $0x18] sm:$0xff]
  %v54 = vld [vmem:[%s2 + $0x20] sm:$0xff]
  %v55 = vld [vmem:[%s2 + $0x28] sm:$0xff]
  %v56 = vld [vmem:[%s2 + $0x30] sm:$0xff]
  %v57 = vld [vmem:[%s2 + $0x38] sm:$0xff]
  %v58 = vld [vmem:[%s2 + $0x40] sm:$0xff]
  %v59 = vld [vmem:[%s2 + $0x48] sm:$0xff]
  %v60 = vld [vmem:[%s2 + $0x50] sm:$0xff]
  %v61 = vld [vmem:[%s2 + $0x58] sm:$0xff]
  %v62 = vld [vmem:[%s2 + $0x60] sm:$0xff]
  %v63 = vld [vmem:[%s2 + $0x68] sm:$0xff]
  %v64 = vld [vmem:[%s2 + $0x70] sm:$0xff]
  %v65 = vld [vmem:[%s2 + $0x78] sm:$0xff]
  %v66 = vld [vmem:[%s3] sm:$0x1]
  %v68 = vlaneseq
  %v69 = vshrl.u32 %v68, 7
  %v70 = vsub.s32 0, %v69
  %v71 = vrot.slane %v66, %v70
  %73 = vmatprep.subr.mxu0 0.0
  %74 = vmatpush1.msra.mxu0 %v50
  %75 = vmatprep.subr.mxu0 0.0
  %76 = vmatpush1.msra.mxu0 %v51
  %77 = vmatprep.subr.mxu0 0.0
  %78 = vmatpush1.msra.mxu0 %v52
  %79 = vmatprep.subr.mxu0 0.0
  %80 = vmatpush1.msra.mxu0 %v53
  %81 = vmatprep.subr.mxu0 0.0
  %82 = vmatpush1.msra.mxu0 %v54
  %83 = vmatprep.subr.mxu0 0.0
  %84 = vmatpush1.msra.mxu0 %v55
  %85 = vmatprep.subr.mxu0 0.0
  %86 = vmatpush1.msra.mxu0 %v56
  %87 = vmatprep.subr.mxu0 0.0
  %88 = vmatpush1.msra.mxu0 %v57
  %89 = vmatprep.subr.mxu0 0.0
  %90 = vmatpush1.msra.mxu0 %v58
  %91 = vmatprep.subr.mxu0 0.0
  %92 = vmatpush1.msra.mxu0 %v59
  %93 = vmatprep.subr.mxu0 0.0
  %94 = vmatpush1.msra.mxu0 %v60
  %95 = vmatprep.subr.mxu0 0.0
  %96 = vmatpush1.msra.mxu0 %v61
  %97 = vmatprep.subr.mxu0 0.0
  %98 = vmatpush1.msra.mxu0 %v62
  %99 = vmatprep.subr.mxu0 0.0
  %100 = vmatpush1.msra.mxu0 %v63
  %101 = vmatprep.subr.mxu0 0.0
  %102 = vmatpush1.msra.mxu0 %v64
  %103 = vmatprep.subr.mxu0 0.0
  %104 = vmatpush1.msra.mxu0 %v65
  %105 = vmatprep.subr.mxu0 0.0
  %106 = vmatpush1.msra.mxu0 0.0
  %107 = vmatprep.subr.mxu0 0.0
  %108 = vmatpush1.msra.mxu0 0.0
  %109 = vmatprep.subr.mxu0 0.0
  %110 = vmatpush1.msra.mxu0 0.0
  %111 = vmatprep.subr.mxu0 0.0
  %112 = vmatpush1.msra.mxu0 0.0
  %113 = vmatprep.subr.mxu0 0.0
  %114 = vmatpush1.msra.mxu0 0.0
  %115 = vmatprep.subr.mxu0 0.0
  %116 = vmatpush1.msra.mxu0 0.0
  %117 = vmatprep.subr.mxu0 0.0
  %118 = vmatpush1.msra.mxu0 0.0
  %119 = vmatprep.subr.mxu0 0.0
  %120 = vmatpush1.msra.mxu0 0.0
  %121 = vmatprep.subr.mxu0 0.0
  %122 = vmatpush1.msra.mxu0 0.0
  %123 = vmatprep.subr.mxu0 0.0
  %124 = vmatpush1.msra.mxu0 0.0
  %125 = vmatprep.subr.mxu0 0.0
  %126 = vmatpush1.msra.mxu0 0.0
  %127 = vmatprep.subr.mxu0 0.0
  %128 = vmatpush1.msra.mxu0 0.0
  %129 = vmatprep.subr.mxu0 0.0
  %130 = vmatpush1.msra.mxu0 0.0
  %131 = vmatprep.subr.mxu0 0.0
  %132 = vmatpush1.msra.mxu0 0.0
  %133 = vmatprep.subr.mxu0 0.0
  %134 = vmatpush1.msra.mxu0 0.0
  %135 = vmatprep.subr.mxu0 0.0
  %136 = vmatpush1.msra.mxu0 0.0
  %137 = vmatprep.mubr.f32.mxu0 0.0
  %138 = vmatmul.mubr.f32.gmra.mrb[0].mxu0 %v34
  %v139 = vpop.f32.mrb[0].mxu0
  %v140 = vadd.f32 %v71, %v139
  %v141 = vpop.f32.mrb[0].mxu0
  %142 = vmatprep.mubr.f32.mxu0 0.0
  %143 = vmatmul.mubr.f32.gmra.mrb[0].mxu0 %v35
  %v144 = vpop.f32.mrb[0].mxu0
  %v145 = vadd.f32 %v71, %v144
  %v146 = vpop.f32.mrb[0].mxu0
  %147 = vmatprep.mubr.f32.mxu0 0.0
  %148 = vmatmul.mubr.f32.gmra.mrb[0].mxu0 %v36
  %v149 = vpop.f32.mrb[0].mxu0
  %v150 = vadd.f32 %v71, %v149
  %v151 = vpop.f32.mrb[0].mxu0
  %152 = vmatprep.mubr.f32.mxu0 0.0
  %153 = vmatmul.mubr.f32.gmra.mrb[0].mxu0 %v37
  %v154 = vpop.f32.mrb[0].mxu0
  %v155 = vadd.f32 %v71, %v154
  %v156 = vpop.f32.mrb[0].mxu0
  %157 = vmatprep.mubr.f32.mxu0 0.0
  %158 = vmatmul.mubr.f32.gmra.mrb[0].mxu0 %v38
  %v159 = vpop.f32.mrb[0].mxu0
  %v160 = vadd.f32 %v71, %v159
  %v161 = vpop.f32.mrb[0].mxu0
  %162 = vmatprep.mubr.f32.mxu0 0.0
  %163 = vmatmul.mubr.f32.gmra.mrb[0].mxu0 %v39
  %v164 = vpop.f32.mrb[0].mxu0
  %v165 = vadd.f32 %v71, %v164
  %v166 = vpop.f32.mrb[0].mxu0
  %167 = vmatprep.mubr.f32.mxu0 0.0
  %168 = vmatmul.mubr.f32.gmra.mrb[0].mxu0 %v40
  %v169 = vpop.f32.mrb[0].mxu0
  %v170 = vadd.f32 %v71, %v169
  %v171 = vpop.f32.mrb[0].mxu0
  %172 = vmatprep.mubr.f32.mxu0 0.0
  %173 = vmatmul.mubr.f32.gmra.mrb[0].mxu0 %v41
  %v174 = vpop.f32.mrb[0].mxu0
  %v175 = vadd.f32 %v71, %v174
  %v176 = vpop.f32.mrb[0].mxu0
  %177 = vmatprep.mubr.f32.mxu0 0.0
  %178 = vmatmul.mubr.f32.gmra.mrb[0].mxu0 %v42
  %v179 = vpop.f32.mrb[0].mxu0
  %v180 = vadd.f32 %v71, %v179
  %v181 = vpop.f32.mrb[0].mxu0
  %182 = vmatprep.mubr.f32.mxu0 0.0
  %183 = vmatmul.mubr.f32.gmra.mrb[0].mxu0 %v43
  %v184 = vpop.f32.mrb[0].mxu0
  %v185 = vadd.f32 %v71, %v184
  %v186 = vpop.f32.mrb[0].mxu0
  %187 = vmatprep.mubr.f32.mxu0 0.0
  %188 = vmatmul.mubr.f32.gmra.mrb[0].mxu0 %v44
  %v189 = vpop.f32.mrb[0].mxu0
  %v190 = vadd.f32 %v71, %v189
  %v191 = vpop.f32.mrb[0].mxu0
  %192 = vmatprep.mubr.f32.mxu0 0.0
  %193 = vmatmul.mubr.f32.gmra.mrb[0].mxu0 %v45
  %v194 = vpop.f32.mrb[0].mxu0
  %v195 = vadd.f32 %v71, %v194
  %v196 = vpop.f32.mrb[0].mxu0
  %197 = vmatprep.mubr.f32.mxu0 0.0
  %198 = vmatmul.mubr.f32.gmra.mrb[0].mxu0 %v46
  %v199 = vpop.f32.mrb[0].mxu0
  %v200 = vadd.f32 %v71, %v199
  %v201 = vpop.f32.mrb[0].mxu0
  %202 = vmatprep.mubr.f32.mxu0 0.0
  %203 = vmatmul.mubr.f32.gmra.mrb[0].mxu0 %v47
  %v204 = vpop.f32.mrb[0].mxu0
  %v205 = vadd.f32 %v71, %v204
  %v206 = vpop.f32.mrb[0].mxu0
  %207 = vmatprep.mubr.f32.mxu0 0.0
  %208 = vmatmul.mubr.f32.gmra.mrb[0].mxu0 %v48
  %v209 = vpop.f32.mrb[0].mxu0
  %v210 = vadd.f32 %v71, %v209
  %v211 = vpop.f32.mrb[0].mxu0
  %212 = vmatprep.mubr.f32.mxu0 0.0
  %213 = vmatmul.mubr.f32.gmra.mrb[0].mxu0 %v49
  %v214 = vpop.f32.mrb[0].mxu0
  %v215 = vadd.f32 %v71, %v214
  %v216 = vpop.f32.mrb[0].mxu0
  %217 = vdwg.mxu0
  %v218 = vmul.f32 %v140, 0.5
  %v219 = vmul.f32 %v145, 0.5
  %v220 = vmul.f32 %v150, 0.5
  %v221 = vmul.f32 %v155, 0.5
  %v222 = vmul.f32 %v160, 0.5
  %v223 = vmul.f32 %v165, 0.5
  %v224 = vmul.f32 %v170, 0.5
  %v225 = vmul.f32 %v175, 0.5
  %v226 = vmul.f32 %v180, 0.5
  %v227 = vmul.f32 %v185, 0.5
  %v228 = vmul.f32 %v190, 0.5
  %v229 = vmul.f32 %v195, 0.5
  %v230 = vmul.f32 %v200, 0.5
  %v231 = vmul.f32 %v205, 0.5
  %v232 = vmul.f32 %v210, 0.5
  %v233 = vmul.f32 %v215, 0.5
  %v234 = vtanh.pop %v218
  %v235 = vtanh.pop %v219
  %v236 = vtanh.pop %v220
  %v237 = vtanh.pop %v221
  %v238 = vtanh.pop %v222
  %v239 = vtanh.pop %v223
  %v240 = vtanh.pop %v224
  %v241 = vtanh.pop %v225
  %v242 = vtanh.pop %v226
  %v243 = vtanh.pop %v227
  %v244 = vtanh.pop %v228
  %v245 = vtanh.pop %v229
  %v246 = vtanh.pop %v230
  %v247 = vtanh.pop %v231
  %v248 = vtanh.pop %v232
  %v249 = vtanh.pop %v233
  %v250 = vmul.f32 %v234, 0.5
  %v251 = vmul.f32 %v235, 0.5
  %v252 = vmul.f32 %v236, 0.5
  %v253 = vmul.f32 %v237, 0.5
  %v254 = vmul.f32 %v238, 0.5
  %v255 = vmul.f32 %v239, 0.5
  %v256 = vmul.f32 %v240, 0.5
  %v257 = vmul.f32 %v241, 0.5
  %v258 = vmul.f32 %v242, 0.5
  %v259 = vmul.f32 %v243, 0.5
  %v260 = vmul.f32 %v244, 0.5
  %v261 = vmul.f32 %v245, 0.5
  %v262 = vmul.f32 %v246, 0.5
  %v263 = vmul.f32 %v247, 0.5
  %v264 = vmul.f32 %v248, 0.5
  %v265 = vmul.f32 %v249, 0.5
  %v266 = vadd.f32 %v250, 0.5
  %v267 = vadd.f32 %v251, 0.5
  %v268 = vadd.f32 %v252, 0.5
  %v269 = vadd.f32 %v253, 0.5
  %v270 = vadd.f32 %v254, 0.5
  %v271 = vadd.f32 %v255, 0.5
  %v272 = vadd.f32 %v256, 0.5
  %v273 = vadd.f32 %v257, 0.5
  %v274 = vadd.f32 %v258, 0.5
  %v275 = vadd.f32 %v259, 0.5
  %v276 = vadd.f32 %v260, 0.5
  %v277 = vadd.f32 %v261, 0.5
  %v278 = vadd.f32 %v262, 0.5
  %v279 = vadd.f32 %v263, 0.5
  %v280 = vadd.f32 %v264, 0.5
  %v281 = vadd.f32 %v265, 0.5
  %v282 = vmul.f32 %v140, %v266
  %v283 = vmul.f32 %v145, %v267
  %v284 = vmul.f32 %v150, %v268
  %v285 = vmul.f32 %v155, %v269
  %v286 = vmul.f32 %v160, %v270
  %v287 = vmul.f32 %v165, %v271
  %v288 = vmul.f32 %v170, %v272
  %v289 = vmul.f32 %v175, %v273
  %v290 = vmul.f32 %v180, %v274
  %v291 = vmul.f32 %v185, %v275
  %v292 = vmul.f32 %v190, %v276
  %v293 = vmul.f32 %v195, %v277
  %v294 = vmul.f32 %v200, %v278
  %v295 = vmul.f32 %v205, %v279
  %v296 = vmul.f32 %v210, %v280
  %v297 = vmul.f32 %v215, %v281
  %v298 = vld [vmem:[%s4] sm:$0xff]
  %v299 = vld [vmem:[%s4 + $0x8] sm:$0xff]
  %v300 = vld [vmem:[%s4 + $0x10] sm:$0xff]
  %v301 = vld [vmem:[%s4 + $0x18] sm:$0xff]
  %v302 = vld [vmem:[%s4 + $0x20] sm:$0xff]
  %v303 = vld [vmem:[%s4 + $0x28] sm:$0xff]
  %v304 = vld [vmem:[%s4 + $0x30] sm:$0xff]
  %v305 = vld [vmem:[%s4 + $0x38] sm:$0xff]
  %v306 = vld [vmem:[%s4 + $0x40] sm:$0xff]
  %v307 = vld [vmem:[%s4 + $0x48] sm:$0xff]
  %v308 = vld [vmem:[%s4 + $0x50] sm:$0xff]
  %v309 = vld [vmem:[%s4 + $0x58] sm:$0xff]
  %v310 = vld [vmem:[%s4 + $0x60] sm:$0xff]
  %v311 = vld [vmem:[%s4 + $0x68] sm:$0xff]
  %v312 = vld [vmem:[%s4 + $0x70] sm:$0xff]
  %v313 = vld [vmem:[%s4 + $0x78] sm:$0xff]
  %v314 = vld [vmem:[%s5] sm:$0x1]
  %v316 = vlaneseq
  %v317 = vshrl.u32 %v316, 7
  %v318 = vsub.s32 0, %v317
  %v319 = vrot.slane %v314, %v318
  %321 = vmatprep.subr.mxu0 0.0
  %322 = vmatpush1.msra.mxu0 %v298
  %323 = vmatprep.subr.mxu0 0.0
  %324 = vmatpush1.msra.mxu0 %v299
  %325 = vmatprep.subr.mxu0 0.0
  %326 = vmatpush1.msra.mxu0 %v300
  %327 = vmatprep.subr.mxu0 0.0
  %328 = vmatpush1.msra.mxu0 %v301
  %329 = vmatprep.subr.mxu0 0.0
  %330 = vmatpush1.msra.mxu0 %v302
  %331 = vmatprep.subr.mxu0 0.0
  %332 = vmatpush1.msra.mxu0 %v303
  %333 = vmatprep.subr.mxu0 0.0
  %334 = vmatpush1.msra.mxu0 %v304
  %335 = vmatprep.subr.mxu0 0.0
  %336 = vmatpush1.msra.mxu0 %v305
  %337 = vmatprep.subr.mxu0 0.0
  %338 = vmatpush1.msra.mxu0 %v306
  %339 = vmatprep.subr.mxu0 0.0
  %340 = vmatpush1.msra.mxu0 %v307
  %341 = vmatprep.subr.mxu0 0.0
  %342 = vmatpush1.msra.mxu0 %v308
  %343 = vmatprep.subr.mxu0 0.0
  %344 = vmatpush1.msra.mxu0 %v309
  %345 = vmatprep.subr.mxu0 0.0
  %346 = vmatpush1.msra.mxu0 %v310
  %347 = vmatprep.subr.mxu0 0.0
  %348 = vmatpush1.msra.mxu0 %v311
  %349 = vmatprep.subr.mxu0 0.0
  %350 = vmatpush1.msra.mxu0 %v312
  %351 = vmatprep.subr.mxu0 0.0
  %352 = vmatpush1.msra.mxu0 %v313
  %353 = vmatprep.subr.mxu0 0.0
  %354 = vmatpush1.msra.mxu0 0.0
  %355 = vmatprep.subr.mxu0 0.0
  %356 = vmatpush1.msra.mxu0 0.0
  %357 = vmatprep.subr.mxu0 0.0
  %358 = vmatpush1.msra.mxu0 0.0
  %359 = vmatprep.subr.mxu0 0.0
  %360 = vmatpush1.msra.mxu0 0.0
  %361 = vmatprep.subr.mxu0 0.0
  %362 = vmatpush1.msra.mxu0 0.0
  %363 = vmatprep.subr.mxu0 0.0
  %364 = vmatpush1.msra.mxu0 0.0
  %365 = vmatprep.subr.mxu0 0.0
  %366 = vmatpush1.msra.mxu0 0.0
  %367 = vmatprep.subr.mxu0 0.0
  %368 = vmatpush1.msra.mxu0 0.0
  %369 = vmatprep.subr.mxu0 0.0
  %370 = vmatpush1.msra.mxu0 0.0
  %371 = vmatprep.subr.mxu0 0.0
  %372 = vmatpush1.msra.mxu0 0.0
  %373 = vmatprep.subr.mxu0 0.0
  %374 = vmatpush1.msra.mxu0 0.0
  %375 = vmatprep.subr.mxu0 0.0
  %376 = vmatpush1.msra.mxu0 0.0
  %377 = vmatprep.subr.mxu0 0.0
  %378 = vmatpush1.msra.mxu0 0.0
  %379 = vmatprep.subr.mxu0 0.0
  %380 = vmatpush1.msra.mxu0 0.0
  %381 = vmatprep.subr.mxu0 0.0
  %382 = vmatpush1.msra.mxu0 0.0
  %383 = vmatprep.subr.mxu0 0.0
  %384 = vmatpush1.msra.mxu0 0.0
  %385 = vmatprep.mubr.f32.mxu0 0.0
  %386 = vmatmul.mubr.f32.gmra.mrb[0].mxu0 %v34
  %v387 = vpop.f32.mrb[0].mxu0
  %v388 = vadd.f32 %v319, %v387
  %v389 = vpop.f32.mrb[0].mxu0
  %390 = vmatprep.mubr.f32.mxu0 0.0
  %391 = vmatmul.mubr.f32.gmra.mrb[0].mxu0 %v35
  %v392 = vpop.f32.mrb[0].mxu0
  %v393 = vadd.f32 %v319, %v392
  %v394 = vpop.f32.mrb[0].mxu0
  %395 = vmatprep.mubr.f32.mxu0 0.0
  %396 = vmatmul.mubr.f32.gmra.mrb[0].mxu0 %v36
  %v397 = vpop.f32.mrb[0].mxu0
  %v398 = vadd.f32 %v319, %v397
  %v399 = vpop.f32.mrb[0].mxu0
  %400 = vmatprep.mubr.f32.mxu0 0.0
  %401 = vmatmul.mubr.f32.gmra.mrb[0].mxu0 %v37
  %v402 = vpop.f32.mrb[0].mxu0
  %v403 = vadd.f32 %v319, %v402
  %v404 = vpop.f32.mrb[0].mxu0
  %405 = vmatprep.mubr.f32.mxu0 0.0
  %406 = vmatmul.mubr.f32.gmra.mrb[0].mxu0 %v38
  %v407 = vpop.f32.mrb[0].mxu0
  %v408 = vadd.f32 %v319, %v407
  %v409 = vpop.f32.mrb[0].mxu0
  %410 = vmatprep.mubr.f32.mxu0 0.0
  %411 = vmatmul.mubr.f32.gmra.mrb[0].mxu0 %v39
  %v412 = vpop.f32.mrb[0].mxu0
  %v413 = vadd.f32 %v319, %v412
  %v414 = vpop.f32.mrb[0].mxu0
  %415 = vmatprep.mubr.f32.mxu0 0.0
  %416 = vmatmul.mubr.f32.gmra.mrb[0].mxu0 %v40
  %v417 = vpop.f32.mrb[0].mxu0
  %v418 = vadd.f32 %v319, %v417
  %v419 = vpop.f32.mrb[0].mxu0
  %420 = vmatprep.mubr.f32.mxu0 0.0
  %421 = vmatmul.mubr.f32.gmra.mrb[0].mxu0 %v41
  %v422 = vpop.f32.mrb[0].mxu0
  %v423 = vadd.f32 %v319, %v422
  %v424 = vpop.f32.mrb[0].mxu0
  %425 = vmatprep.mubr.f32.mxu0 0.0
  %426 = vmatmul.mubr.f32.gmra.mrb[0].mxu0 %v42
  %v427 = vpop.f32.mrb[0].mxu0
  %v428 = vadd.f32 %v319, %v427
  %v429 = vpop.f32.mrb[0].mxu0
  %430 = vmatprep.mubr.f32.mxu0 0.0
  %431 = vmatmul.mubr.f32.gmra.mrb[0].mxu0 %v43
  %v432 = vpop.f32.mrb[0].mxu0
  %v433 = vadd.f32 %v319, %v432
  %v434 = vpop.f32.mrb[0].mxu0
  %435 = vmatprep.mubr.f32.mxu0 0.0
  %436 = vmatmul.mubr.f32.gmra.mrb[0].mxu0 %v44
  %v437 = vpop.f32.mrb[0].mxu0
  %v438 = vadd.f32 %v319, %v437
  %v439 = vpop.f32.mrb[0].mxu0
  %440 = vmatprep.mubr.f32.mxu0 0.0
  %441 = vmatmul.mubr.f32.gmra.mrb[0].mxu0 %v45
  %v442 = vpop.f32.mrb[0].mxu0
  %v443 = vadd.f32 %v319, %v442
  %v444 = vpop.f32.mrb[0].mxu0
  %445 = vmatprep.mubr.f32.mxu0 0.0
  %446 = vmatmul.mubr.f32.gmra.mrb[0].mxu0 %v46
  %v447 = vpop.f32.mrb[0].mxu0
  %v448 = vadd.f32 %v319, %v447
  %v449 = vpop.f32.mrb[0].mxu0
  %450 = vmatprep.mubr.f32.mxu0 0.0
  %451 = vmatmul.mubr.f32.gmra.mrb[0].mxu0 %v47
  %v452 = vpop.f32.mrb[0].mxu0
  %v453 = vadd.f32 %v319, %v452
  %v454 = vpop.f32.mrb[0].mxu0
  %455 = vmatprep.mubr.f32.mxu0 0.0
  %456 = vmatmul.mubr.f32.gmra.mrb[0].mxu0 %v48
  %v457 = vpop.f32.mrb[0].mxu0
  %v458 = vadd.f32 %v319, %v457
  %v459 = vpop.f32.mrb[0].mxu0
  %460 = vmatprep.mubr.f32.mxu0 0.0
  %461 = vmatmul.mubr.f32.gmra.mrb[0].mxu0 %v49
  %v462 = vpop.f32.mrb[0].mxu0
  %v463 = vadd.f32 %v319, %v462
  %v464 = vpop.f32.mrb[0].mxu0
  %465 = vdwg.mxu0
  %v466 = vmul.f32 %v388, 0.5
  %v467 = vmul.f32 %v393, 0.5
  %v468 = vmul.f32 %v398, 0.5
  %v469 = vmul.f32 %v403, 0.5
  %v470 = vmul.f32 %v408, 0.5
  %v471 = vmul.f32 %v413, 0.5
  %v472 = vmul.f32 %v418, 0.5
  %v473 = vmul.f32 %v423, 0.5
  %v474 = vmul.f32 %v428, 0.5
  %v475 = vmul.f32 %v433, 0.5
  %v476 = vmul.f32 %v438, 0.5
  %v477 = vmul.f32 %v443, 0.5
  %v478 = vmul.f32 %v448, 0.5
  %v479 = vmul.f32 %v453, 0.5
  %v480 = vmul.f32 %v458, 0.5
  %v481 = vmul.f32 %v463, 0.5
  %v482 = vtanh.pop %v466
  %v483 = vtanh.pop %v467
  %v484 = vtanh.pop %v468
  %v485 = vtanh.pop %v469
  %v486 = vtanh.pop %v470
  %v487 = vtanh.pop %v471
  %v488 = vtanh.pop %v472
  %v489 = vtanh.pop %v473
  %v490 = vtanh.pop %v474
  %v491 = vtanh.pop %v475
  %v492 = vtanh.pop %v476
  %v493 = vtanh.pop %v477
  %v494 = vtanh.pop %v478
  %v495 = vtanh.pop %v479
  %v496 = vtanh.pop %v480
  %v497 = vtanh.pop %v481
  %v498 = vmul.f32 %v482, 0.5
  %v499 = vmul.f32 %v483, 0.5
  %v500 = vmul.f32 %v484, 0.5
  %v501 = vmul.f32 %v485, 0.5
  %v502 = vmul.f32 %v486, 0.5
  %v503 = vmul.f32 %v487, 0.5
  %v504 = vmul.f32 %v488, 0.5
  %v505 = vmul.f32 %v489, 0.5
  %v506 = vmul.f32 %v490, 0.5
  %v507 = vmul.f32 %v491, 0.5
  %v508 = vmul.f32 %v492, 0.5
  %v509 = vmul.f32 %v493, 0.5
  %v510 = vmul.f32 %v494, 0.5
  %v511 = vmul.f32 %v495, 0.5
  %v512 = vmul.f32 %v496, 0.5
  %v513 = vmul.f32 %v497, 0.5
  %v514 = vadd.f32 %v498, 0.5
  %v515 = vadd.f32 %v499, 0.5
  %v516 = vadd.f32 %v500, 0.5
  %v517 = vadd.f32 %v501, 0.5
  %v518 = vadd.f32 %v502, 0.5
  %v519 = vadd.f32 %v503, 0.5
  %v520 = vadd.f32 %v504, 0.5
  %v521 = vadd.f32 %v505, 0.5
  %v522 = vadd.f32 %v506, 0.5
  %v523 = vadd.f32 %v507, 0.5
  %v524 = vadd.f32 %v508, 0.5
  %v525 = vadd.f32 %v509, 0.5
  %v526 = vadd.f32 %v510, 0.5
  %v527 = vadd.f32 %v511, 0.5
  %v528 = vadd.f32 %v512, 0.5
  %v529 = vadd.f32 %v513, 0.5
  %v530 = vmul.f32 %v388, %v514
  %v531 = vmul.f32 %v393, %v515
  %v532 = vmul.f32 %v398, %v516
  %v533 = vmul.f32 %v403, %v517
  %v534 = vmul.f32 %v408, %v518
  %v535 = vmul.f32 %v413, %v519
  %v536 = vmul.f32 %v418, %v520
  %v537 = vmul.f32 %v423, %v521
  %v538 = vmul.f32 %v428, %v522
  %v539 = vmul.f32 %v433, %v523
  %v540 = vmul.f32 %v438, %v524
  %v541 = vmul.f32 %v443, %v525
  %v542 = vmul.f32 %v448, %v526
  %v543 = vmul.f32 %v453, %v527
  %v544 = vmul.f32 %v458, %v528
  %v545 = vmul.f32 %v463, %v529
  %v546 = vld [vmem:[%s1] sm:$0xff]
  %v547 = vld [vmem:[%s1 + $0x8] sm:$0xff]
  %v548 = vld [vmem:[%s1 + $0x10] sm:$0xff]
  %v549 = vld [vmem:[%s1 + $0x18] sm:$0xff]
  %v550 = vld [vmem:[%s1 + $0x20] sm:$0xff]
  %v551 = vld [vmem:[%s1 + $0x28] sm:$0xff]
  %v552 = vld [vmem:[%s1 + $0x30] sm:$0xff]
  %v553 = vld [vmem:[%s1 + $0x38] sm:$0xff]
  %v554 = vld [vmem:[%s1 + $0x40] sm:$0xff]
  %v555 = vld [vmem:[%s1 + $0x48] sm:$0xff]
  %v556 = vld [vmem:[%s1 + $0x50] sm:$0xff]
  %v557 = vld [vmem:[%s1 + $0x58] sm:$0xff]
  %v558 = vld [vmem:[%s1 + $0x60] sm:$0xff]
  %v559 = vld [vmem:[%s1 + $0x68] sm:$0xff]
  %v560 = vld [vmem:[%s1 + $0x70] sm:$0xff]
  %v561 = vld [vmem:[%s1 + $0x78] sm:$0xff]
  %v562 = vld [vmem:[%s6] sm:$0xff]
  %v563 = vld [vmem:[%s6 + $0x8] sm:$0xff]
  %v564 = vld [vmem:[%s6 + $0x10] sm:$0xff]
  %v565 = vld [vmem:[%s6 + $0x18] sm:$0xff]
  %v566 = vld [vmem:[%s6 + $0x20] sm:$0xff]
  %v567 = vld [vmem:[%s6 + $0x28] sm:$0xff]
  %v568 = vld [vmem:[%s6 + $0x30] sm:$0xff]
  %v569 = vld [vmem:[%s6 + $0x38] sm:$0xff]
  %v570 = vld [vmem:[%s6 + $0x40] sm:$0xff]
  %v571 = vld [vmem:[%s6 + $0x48] sm:$0xff]
  %v572 = vld [vmem:[%s6 + $0x50] sm:$0xff]
  %v573 = vld [vmem:[%s6 + $0x58] sm:$0xff]
  %v574 = vld [vmem:[%s6 + $0x60] sm:$0xff]
  %v575 = vld [vmem:[%s6 + $0x68] sm:$0xff]
  %v576 = vld [vmem:[%s6 + $0x70] sm:$0xff]
  %v577 = vld [vmem:[%s6 + $0x78] sm:$0xff]
  %578 = vmatprep.subr.mxu0 0.0
  %579 = vmatpush1.msra.mxu0 %v562
  %580 = vmatprep.subr.mxu0 0.0
  %581 = vmatpush1.msra.mxu0 %v563
  %582 = vmatprep.subr.mxu0 0.0
  %583 = vmatpush1.msra.mxu0 %v564
  %584 = vmatprep.subr.mxu0 0.0
  %585 = vmatpush1.msra.mxu0 %v565
  %586 = vmatprep.subr.mxu0 0.0
  %587 = vmatpush1.msra.mxu0 %v566
  %588 = vmatprep.subr.mxu0 0.0
  %589 = vmatpush1.msra.mxu0 %v567
  %590 = vmatprep.subr.mxu0 0.0
  %591 = vmatpush1.msra.mxu0 %v568
  %592 = vmatprep.subr.mxu0 0.0
  %593 = vmatpush1.msra.mxu0 %v569
  %594 = vmatprep.subr.mxu0 0.0
  %595 = vmatpush1.msra.mxu0 %v570
  %596 = vmatprep.subr.mxu0 0.0
  %597 = vmatpush1.msra.mxu0 %v571
  %598 = vmatprep.subr.mxu0 0.0
  %599 = vmatpush1.msra.mxu0 %v572
  %600 = vmatprep.subr.mxu0 0.0
  %601 = vmatpush1.msra.mxu0 %v573
  %602 = vmatprep.subr.mxu0 0.0
  %603 = vmatpush1.msra.mxu0 %v574
  %604 = vmatprep.subr.mxu0 0.0
  %605 = vmatpush1.msra.mxu0 %v575
  %606 = vmatprep.subr.mxu0 0.0
  %607 = vmatpush1.msra.mxu0 %v576
  %608 = vmatprep.subr.mxu0 0.0
  %609 = vmatpush1.msra.mxu0 %v577
  %610 = vmatprep.subr.mxu0 0.0
  %611 = vmatpush1.msra.mxu0 0.0
  %612 = vmatprep.subr.mxu0 0.0
  %613 = vmatpush1.msra.mxu0 0.0
  %614 = vmatprep.subr.mxu0 0.0
  %615 = vmatpush1.msra.mxu0 0.0
  %616 = vmatprep.subr.mxu0 0.0
  %617 = vmatpush1.msra.mxu0 0.0
  %618 = vmatprep.subr.mxu0 0.0
  %619 = vmatpush1.msra.mxu0 0.0
  %620 = vmatprep.subr.mxu0 0.0
  %621 = vmatpush1.msra.mxu0 0.0
  %622 = vmatprep.subr.mxu0 0.0
  %623 = vmatpush1.msra.mxu0 0.0
  %624 = vmatprep.subr.mxu0 0.0
  %625 = vmatpush1.msra.mxu0 0.0
  %626 = vmatprep.subr.mxu0 0.0
  %627 = vmatpush1.msra.mxu0 0.0
  %628 = vmatprep.subr.mxu0 0.0
  %629 = vmatpush1.msra.mxu0 0.0
  %630 = vmatprep.subr.mxu0 0.0
  %631 = vmatpush1.msra.mxu0 0.0
  %632 = vmatprep.subr.mxu0 0.0
  %633 = vmatpush1.msra.mxu0 0.0
  %634 = vmatprep.subr.mxu0 0.0
  %635 = vmatpush1.msra.mxu0 0.0
  %636 = vmatprep.subr.mxu0 0.0
  %637 = vmatpush1.msra.mxu0 0.0
  %638 = vmatprep.subr.mxu0 0.0
  %639 = vmatpush1.msra.mxu0 0.0
  %640 = vmatprep.subr.mxu0 0.0
  %641 = vmatpush1.msra.mxu0 0.0
  %642 = vmatprep.mubr.f32.mxu0 0.0
  %643 = vmatmul.mubr.f32.gmra.mrb[0].mxu0 %v546
  %v644 = vpop.f32.mrb[0].mxu0
  %v645 = vadd.f32 0.0, %v644
  %v646 = vpop.f32.mrb[0].mxu0
  %647 = vmatprep.mubr.f32.mxu0 0.0
  %648 = vmatmul.mubr.f32.gmra.mrb[0].mxu0 %v547
  %v649 = vpop.f32.mrb[0].mxu0
  %v650 = vadd.f32 0.0, %v649
  %v651 = vpop.f32.mrb[0].mxu0
  %652 = vmatprep.mubr.f32.mxu0 0.0
  %653 = vmatmul.mubr.f32.gmra.mrb[0].mxu0 %v548
  %v654 = vpop.f32.mrb[0].mxu0
  %v655 = vadd.f32 0.0, %v654
  %v656 = vpop.f32.mrb[0].mxu0
  %657 = vmatprep.mubr.f32.mxu0 0.0
  %658 = vmatmul.mubr.f32.gmra.mrb[0].mxu0 %v549
  %v659 = vpop.f32.mrb[0].mxu0
  %v660 = vadd.f32 0.0, %v659
  %v661 = vpop.f32.mrb[0].mxu0
  %662 = vmatprep.mubr.f32.mxu0 0.0
  %663 = vmatmul.mubr.f32.gmra.mrb[0].mxu0 %v550
  %v664 = vpop.f32.mrb[0].mxu0
  %v665 = vadd.f32 0.0, %v664
  %v666 = vpop.f32.mrb[0].mxu0
  %667 = vmatprep.mubr.f32.mxu0 0.0
  %668 = vmatmul.mubr.f32.gmra.mrb[0].mxu0 %v551
  %v669 = vpop.f32.mrb[0].mxu0
  %v670 = vadd.f32 0.0, %v669
  %v671 = vpop.f32.mrb[0].mxu0
  %672 = vmatprep.mubr.f32.mxu0 0.0
  %673 = vmatmul.mubr.f32.gmra.mrb[0].mxu0 %v552
  %v674 = vpop.f32.mrb[0].mxu0
  %v675 = vadd.f32 0.0, %v674
  %v676 = vpop.f32.mrb[0].mxu0
  %677 = vmatprep.mubr.f32.mxu0 0.0
  %678 = vmatmul.mubr.f32.gmra.mrb[0].mxu0 %v553
  %v679 = vpop.f32.mrb[0].mxu0
  %v680 = vadd.f32 0.0, %v679
  %v681 = vpop.f32.mrb[0].mxu0
  %682 = vmatprep.mubr.f32.mxu0 0.0
  %683 = vmatmul.mubr.f32.gmra.mrb[0].mxu0 %v554
  %v684 = vpop.f32.mrb[0].mxu0
  %v685 = vadd.f32 0.0, %v684
  %v686 = vpop.f32.mrb[0].mxu0
  %687 = vmatprep.mubr.f32.mxu0 0.0
  %688 = vmatmul.mubr.f32.gmra.mrb[0].mxu0 %v555
  %v689 = vpop.f32.mrb[0].mxu0
  %v690 = vadd.f32 0.0, %v689
  %v691 = vpop.f32.mrb[0].mxu0
  %692 = vmatprep.mubr.f32.mxu0 0.0
  %693 = vmatmul.mubr.f32.gmra.mrb[0].mxu0 %v556
  %v694 = vpop.f32.mrb[0].mxu0
  %v695 = vadd.f32 0.0, %v694
  %v696 = vpop.f32.mrb[0].mxu0
  %697 = vmatprep.mubr.f32.mxu0 0.0
  %698 = vmatmul.mubr.f32.gmra.mrb[0].mxu0 %v557
  %v699 = vpop.f32.mrb[0].mxu0
  %v700 = vadd.f32 0.0, %v699
  %v701 = vpop.f32.mrb[0].mxu0
  %702 = vmatprep.mubr.f32.mxu0 0.0
  %703 = vmatmul.mubr.f32.gmra.mrb[0].mxu0 %v558
  %v704 = vpop.f32.mrb[0].mxu0
  %v705 = vadd.f32 0.0, %v704
  %v706 = vpop.f32.mrb[0].mxu0
  %707 = vmatprep.mubr.f32.mxu0 0.0
  %708 = vmatmul.mubr.f32.gmra.mrb[0].mxu0 %v559
  %v709 = vpop.f32.mrb[0].mxu0
  %v710 = vadd.f32 0.0, %v709
  %v711 = vpop.f32.mrb[0].mxu0
  %712 = vmatprep.mubr.f32.mxu0 0.0
  %713 = vmatmul.mubr.f32.gmra.mrb[0].mxu0 %v560
  %v714 = vpop.f32.mrb[0].mxu0
  %v715 = vadd.f32 0.0, %v714
  %v716 = vpop.f32.mrb[0].mxu0
  %717 = vmatprep.mubr.f32.mxu0 0.0
  %718 = vmatmul.mubr.f32.gmra.mrb[0].mxu0 %v561
  %v719 = vpop.f32.mrb[0].mxu0
  %v720 = vadd.f32 0.0, %v719
  %v721 = vpop.f32.mrb[0].mxu0
  %722 = vdwg.mxu0
  %v723 = vld [vmem:[%s7] sm:$0xff]
  %v724 = vld [vmem:[%s7 + $0x8] sm:$0xff]
  %v725 = vld [vmem:[%s7 + $0x10] sm:$0xff]
  %v726 = vld [vmem:[%s7 + $0x18] sm:$0xff]
  %v727 = vld [vmem:[%s7 + $0x20] sm:$0xff]
  %v728 = vld [vmem:[%s7 + $0x28] sm:$0xff]
  %v729 = vld [vmem:[%s7 + $0x30] sm:$0xff]
  %v730 = vld [vmem:[%s7 + $0x38] sm:$0xff]
  %v731 = vld [vmem:[%s7 + $0x40] sm:$0xff]
  %v732 = vld [vmem:[%s7 + $0x48] sm:$0xff]
  %v733 = vld [vmem:[%s7 + $0x50] sm:$0xff]
  %v734 = vld [vmem:[%s7 + $0x58] sm:$0xff]
  %v735 = vld [vmem:[%s7 + $0x60] sm:$0xff]
  %v736 = vld [vmem:[%s7 + $0x68] sm:$0xff]
  %v737 = vld [vmem:[%s7 + $0x70] sm:$0xff]
  %v738 = vld [vmem:[%s7 + $0x78] sm:$0xff]
  %739 = vmatprep.subr.mxu0 0.0
  %740 = vmatpush1.msra.mxu0 %v723
  %741 = vmatprep.subr.mxu0 0.0
  %742 = vmatpush1.msra.mxu0 %v724
  %743 = vmatprep.subr.mxu0 0.0
  %744 = vmatpush1.msra.mxu0 %v725
  %745 = vmatprep.subr.mxu0 0.0
  %746 = vmatpush1.msra.mxu0 %v726
  %747 = vmatprep.subr.mxu0 0.0
  %748 = vmatpush1.msra.mxu0 %v727
  %749 = vmatprep.subr.mxu0 0.0
  %750 = vmatpush1.msra.mxu0 %v728
  %751 = vmatprep.subr.mxu0 0.0
  %752 = vmatpush1.msra.mxu0 %v729
  %753 = vmatprep.subr.mxu0 0.0
  %754 = vmatpush1.msra.mxu0 %v730
  %755 = vmatprep.subr.mxu0 0.0
  %756 = vmatpush1.msra.mxu0 %v731
  %757 = vmatprep.subr.mxu0 0.0
  %758 = vmatpush1.msra.mxu0 %v732
  %759 = vmatprep.subr.mxu0 0.0
  %760 = vmatpush1.msra.mxu0 %v733
  %761 = vmatprep.subr.mxu0 0.0
  %762 = vmatpush1.msra.mxu0 %v734
  %763 = vmatprep.subr.mxu0 0.0
  %764 = vmatpush1.msra.mxu0 %v735
  %765 = vmatprep.subr.mxu0 0.0
  %766 = vmatpush1.msra.mxu0 %v736
  %767 = vmatprep.subr.mxu0 0.0
  %768 = vmatpush1.msra.mxu0 %v737
  %769 = vmatprep.subr.mxu0 0.0
  %770 = vmatpush1.msra.mxu0 %v738
  %771 = vmatprep.subr.mxu0 0.0
  %772 = vmatpush1.msra.mxu0 0.0
  %773 = vmatprep.subr.mxu0 0.0
  %774 = vmatpush1.msra.mxu0 0.0
  %775 = vmatprep.subr.mxu0 0.0
  %776 = vmatpush1.msra.mxu0 0.0
  %777 = vmatprep.subr.mxu0 0.0
  %778 = vmatpush1.msra.mxu0 0.0
  %779 = vmatprep.subr.mxu0 0.0
  %780 = vmatpush1.msra.mxu0 0.0
  %781 = vmatprep.subr.mxu0 0.0
  %782 = vmatpush1.msra.mxu0 0.0
  %783 = vmatprep.subr.mxu0 0.0
  %784 = vmatpush1.msra.mxu0 0.0
  %785 = vmatprep.subr.mxu0 0.0
  %786 = vmatpush1.msra.mxu0 0.0
  %787 = vmatprep.subr.mxu0 0.0
  %788 = vmatpush1.msra.mxu0 0.0
  %789 = vmatprep.subr.mxu0 0.0
  %790 = vmatpush1.msra.mxu0 0.0
  %791 = vmatprep.subr.mxu0 0.0
  %792 = vmatpush1.msra.mxu0 0.0
  %793 = vmatprep.subr.mxu0 0.0
  %794 = vmatpush1.msra.mxu0 0.0
  %795 = vmatprep.subr.mxu0 0.0
  %796 = vmatpush1.msra.mxu0 0.0
  %797 = vmatprep.subr.mxu0 0.0
  %798 = vmatpush1.msra.mxu0 0.0
  %799 = vmatprep.subr.mxu0 0.0
  %800 = vmatpush1.msra.mxu0 0.0
  %801 = vmatprep.subr.mxu0 0.0
  %802 = vmatpush1.msra.mxu0 0.0
  %803 = vmatprep.mubr.f32.mxu0 0.0
  %804 = vmatmul.mubr.f32.gmra.mrb[0].mxu0 %v645
  %v805 = vpop.f32.mrb[0].mxu0
  %v806 = vadd.f32 0.0, %v805
  %v807 = vpop.f32.mrb[0].mxu0
  %808 = vmatprep.mubr.f32.mxu0 0.0
  %809 = vmatmul.mubr.f32.gmra.mrb[0].mxu0 %v650
  %v810 = vpop.f32.mrb[0].mxu0
  %v811 = vadd.f32 0.0, %v810
  %v812 = vpop.f32.mrb[0].mxu0
  %813 = vmatprep.mubr.f32.mxu0 0.0
  %814 = vmatmul.mubr.f32.gmra.mrb[0].mxu0 %v655
  %v815 = vpop.f32.mrb[0].mxu0
  %v816 = vadd.f32 0.0, %v815
  %v817 = vpop.f32.mrb[0].mxu0
  %818 = vmatprep.mubr.f32.mxu0 0.0
  %819 = vmatmul.mubr.f32.gmra.mrb[0].mxu0 %v660
  %v820 = vpop.f32.mrb[0].mxu0
  %v821 = vadd.f32 0.0, %v820
  %v822 = vpop.f32.mrb[0].mxu0
  %823 = vmatprep.mubr.f32.mxu0 0.0
  %824 = vmatmul.mubr.f32.gmra.mrb[0].mxu0 %v665
  %v825 = vpop.f32.mrb[0].mxu0
  %v826 = vadd.f32 0.0, %v825
  %v827 = vpop.f32.mrb[0].mxu0
  %828 = vmatprep.mubr.f32.mxu0 0.0
  %829 = vmatmul.mubr.f32.gmra.mrb[0].mxu0 %v670
  %v830 = vpop.f32.mrb[0].mxu0
  %v831 = vadd.f32 0.0, %v830
  %v832 = vpop.f32.mrb[0].mxu0
  %833 = vmatprep.mubr.f32.mxu0 0.0
  %834 = vmatmul.mubr.f32.gmra.mrb[0].mxu0 %v675
  %v835 = vpop.f32.mrb[0].mxu0
  %v836 = vadd.f32 0.0, %v835
  %v837 = vpop.f32.mrb[0].mxu0
  %838 = vmatprep.mubr.f32.mxu0 0.0
  %839 = vmatmul.mubr.f32.gmra.mrb[0].mxu0 %v680
  %v840 = vpop.f32.mrb[0].mxu0
  %v841 = vadd.f32 0.0, %v840
  %v842 = vpop.f32.mrb[0].mxu0
  %843 = vmatprep.mubr.f32.mxu0 0.0
  %844 = vmatmul.mubr.f32.gmra.mrb[0].mxu0 %v685
  %v845 = vpop.f32.mrb[0].mxu0
  %v846 = vadd.f32 0.0, %v845
  %v847 = vpop.f32.mrb[0].mxu0
  %848 = vmatprep.mubr.f32.mxu0 0.0
  %849 = vmatmul.mubr.f32.gmra.mrb[0].mxu0 %v690
  %v850 = vpop.f32.mrb[0].mxu0
  %v851 = vadd.f32 0.0, %v850
  %v852 = vpop.f32.mrb[0].mxu0
  %853 = vmatprep.mubr.f32.mxu0 0.0
  %854 = vmatmul.mubr.f32.gmra.mrb[0].mxu0 %v695
  %v855 = vpop.f32.mrb[0].mxu0
  %v856 = vadd.f32 0.0, %v855
  %v857 = vpop.f32.mrb[0].mxu0
  %858 = vmatprep.mubr.f32.mxu0 0.0
  %859 = vmatmul.mubr.f32.gmra.mrb[0].mxu0 %v700
  %v860 = vpop.f32.mrb[0].mxu0
  %v861 = vadd.f32 0.0, %v860
  %v862 = vpop.f32.mrb[0].mxu0
  %863 = vmatprep.mubr.f32.mxu0 0.0
  %864 = vmatmul.mubr.f32.gmra.mrb[0].mxu0 %v705
  %v865 = vpop.f32.mrb[0].mxu0
  %v866 = vadd.f32 0.0, %v865
  %v867 = vpop.f32.mrb[0].mxu0
  %868 = vmatprep.mubr.f32.mxu0 0.0
  %869 = vmatmul.mubr.f32.gmra.mrb[0].mxu0 %v710
  %v870 = vpop.f32.mrb[0].mxu0
  %v871 = vadd.f32 0.0, %v870
  %v872 = vpop.f32.mrb[0].mxu0
  %873 = vmatprep.mubr.f32.mxu0 0.0
  %874 = vmatmul.mubr.f32.gmra.mrb[0].mxu0 %v715
  %v875 = vpop.f32.mrb[0].mxu0
  %v876 = vadd.f32 0.0, %v875
  %v877 = vpop.f32.mrb[0].mxu0
  %878 = vmatprep.mubr.f32.mxu0 0.0
  %879 = vmatmul.mubr.f32.gmra.mrb[0].mxu0 %v720
  %v880 = vpop.f32.mrb[0].mxu0
  %v881 = vadd.f32 0.0, %v880
  %v882 = vpop.f32.mrb[0].mxu0
  %883 = vdwg.mxu0
  %v884 = vmul.f32 %v530, %v806
  %v885 = vmul.f32 %v531, %v811
  %v886 = vmul.f32 %v532, %v816
  %v887 = vmul.f32 %v533, %v821
  %v888 = vmul.f32 %v534, %v826
  %v889 = vmul.f32 %v535, %v831
  %v890 = vmul.f32 %v536, %v836
  %v891 = vmul.f32 %v537, %v841
  %v892 = vmul.f32 %v538, %v846
  %v893 = vmul.f32 %v539, %v851
  %v894 = vmul.f32 %v540, %v856
  %v895 = vmul.f32 %v541, %v861
  %v896 = vmul.f32 %v542, %v866
  %v897 = vmul.f32 %v543, %v871
  %v898 = vmul.f32 %v544, %v876
  %v899 = vmul.f32 %v545, %v881
  %900 = vst [vmem:[%s9] sm:$0xff] %v282
  %901 = vst [vmem:[%s9 + $0x8] sm:$0xff] %v283
  %902 = vst [vmem:[%s9 + $0x10] sm:$0xff] %v284
  %903 = vst [vmem:[%s9 + $0x18] sm:$0xff] %v285
  %904 = vst [vmem:[%s9 + $0x20] sm:$0xff] %v286
  %905 = vst [vmem:[%s9 + $0x28] sm:$0xff] %v287
  %906 = vst [vmem:[%s9 + $0x30] sm:$0xff] %v288
  %907 = vst [vmem:[%s9 + $0x38] sm:$0xff] %v289
  %908 = vst [vmem:[%s9 + $0x40] sm:$0xff] %v290
  %909 = vst [vmem:[%s9 + $0x48] sm:$0xff] %v291
  %910 = vst [vmem:[%s9 + $0x50] sm:$0xff] %v292
  %911 = vst [vmem:[%s9 + $0x58] sm:$0xff] %v293
  %912 = vst [vmem:[%s9 + $0x60] sm:$0xff] %v294
  %913 = vst [vmem:[%s9 + $0x68] sm:$0xff] %v295
  %914 = vst [vmem:[%s9 + $0x70] sm:$0xff] %v296
  %915 = vst [vmem:[%s9 + $0x78] sm:$0xff] %v297
  %v916 = vld [vmem:[%s8] sm:$0xff]
  %v917 = vld [vmem:[%s8 + $0x8] sm:$0xff]
  %v918 = vld [vmem:[%s8 + $0x10] sm:$0xff]
  %v919 = vld [vmem:[%s8 + $0x18] sm:$0xff]
  %v920 = vld [vmem:[%s8 + $0x20] sm:$0xff]
  %v921 = vld [vmem:[%s8 + $0x28] sm:$0xff]
  %v922 = vld [vmem:[%s8 + $0x30] sm:$0xff]
  %v923 = vld [vmem:[%s8 + $0x38] sm:$0xff]
  %v924 = vld [vmem:[%s8 + $0x40] sm:$0xff]
  %v925 = vld [vmem:[%s8 + $0x48] sm:$0xff]
  %v926 = vld [vmem:[%s8 + $0x50] sm:$0xff]
  %v927 = vld [vmem:[%s8 + $0x58] sm:$0xff]
  %v928 = vld [vmem:[%s8 + $0x60] sm:$0xff]
  %v929 = vld [vmem:[%s8 + $0x68] sm:$0xff]
  %v930 = vld [vmem:[%s8 + $0x70] sm:$0xff]
  %v931 = vld [vmem:[%s8 + $0x78] sm:$0xff]
  %932 = vmatprep.subr.mxu0 0.0
  %933 = vmatpush1.msra.mxu0 %v916
  %934 = vmatprep.subr.mxu0 0.0
  %935 = vmatpush1.msra.mxu0 %v917
  %936 = vmatprep.subr.mxu0 0.0
  %937 = vmatpush1.msra.mxu0 %v918
  %938 = vmatprep.subr.mxu0 0.0
  %939 = vmatpush1.msra.mxu0 %v919
  %940 = vmatprep.subr.mxu0 0.0
  %941 = vmatpush1.msra.mxu0 %v920
  %942 = vmatprep.subr.mxu0 0.0
  %943 = vmatpush1.msra.mxu0 %v921
  %944 = vmatprep.subr.mxu0 0.0
  %945 = vmatpush1.msra.mxu0 %v922
  %946 = vmatprep.subr.mxu0 0.0
  %947 = vmatpush1.msra.mxu0 %v923
  %948 = vmatprep.subr.mxu0 0.0
  %949 = vmatpush1.msra.mxu0 %v924
  %950 = vmatprep.subr.mxu0 0.0
  %951 = vmatpush1.msra.mxu0 %v925
  %952 = vmatprep.subr.mxu0 0.0
  %953 = vmatpush1.msra.mxu0 %v926
  %954 = vmatprep.subr.mxu0 0.0
  %955 = vmatpush1.msra.mxu0 %v927
  %956 = vmatprep.subr.mxu0 0.0
  %957 = vmatpush1.msra.mxu0 %v928
  %958 = vmatprep.subr.mxu0 0.0
  %959 = vmatpush1.msra.mxu0 %v929
  %960 = vmatprep.subr.mxu0 0.0
  %961 = vmatpush1.msra.mxu0 %v930
  %962 = vmatprep.subr.mxu0 0.0
  %963 = vmatpush1.msra.mxu0 %v931
  %964 = vmatprep.subr.mxu0 0.0
  %965 = vmatpush1.msra.mxu0 0.0
  %966 = vmatprep.subr.mxu0 0.0
  %967 = vmatpush1.msra.mxu0 0.0
  %968 = vmatprep.subr.mxu0 0.0
  %969 = vmatpush1.msra.mxu0 0.0
  %970 = vmatprep.subr.mxu0 0.0
  %971 = vmatpush1.msra.mxu0 0.0
  %972 = vmatprep.subr.mxu0 0.0
  %973 = vmatpush1.msra.mxu0 0.0
  %974 = vmatprep.subr.mxu0 0.0
  %975 = vmatpush1.msra.mxu0 0.0
  %976 = vmatprep.subr.mxu0 0.0
  %977 = vmatpush1.msra.mxu0 0.0
  %978 = vmatprep.subr.mxu0 0.0
  %979 = vmatpush1.msra.mxu0 0.0
  %980 = vmatprep.subr.mxu0 0.0
  %981 = vmatpush1.msra.mxu0 0.0
  %982 = vmatprep.subr.mxu0 0.0
  %983 = vmatpush1.msra.mxu0 0.0
  %984 = vmatprep.subr.mxu0 0.0
  %985 = vmatpush1.msra.mxu0 0.0
  %986 = vmatprep.subr.mxu0 0.0
  %987 = vmatpush1.msra.mxu0 0.0
  %988 = vmatprep.subr.mxu0 0.0
  %989 = vmatpush1.msra.mxu0 0.0
  %990 = vmatprep.subr.mxu0 0.0
  %991 = vmatpush1.msra.mxu0 0.0
  %992 = vmatprep.subr.mxu0 0.0
  %993 = vmatpush1.msra.mxu0 0.0
  %994 = vmatprep.subr.mxu0 0.0
  %995 = vmatpush1.msra.mxu0 0.0
  %996 = vmatprep.mubr.f32.mxu0 0.0
  %997 = vmatmul.mubr.f32.gmra.mrb[0].mxu0 %v884
  %v998 = vpop.f32.mrb[0].mxu0
  %v999 = vadd.f32 0.0, %v998
  %v1000 = vpop.f32.mrb[0].mxu0
  %1001 = vmatprep.mubr.f32.mxu0 0.0
  %1002 = vmatmul.mubr.f32.gmra.mrb[0].mxu0 %v885
  %v1003 = vpop.f32.mrb[0].mxu0
  %v1004 = vadd.f32 0.0, %v1003
  %v1005 = vpop.f32.mrb[0].mxu0
  %1006 = vmatprep.mubr.f32.mxu0 0.0
  %1007 = vmatmul.mubr.f32.gmra.mrb[0].mxu0 %v886
  %v1008 = vpop.f32.mrb[0].mxu0
  %v1009 = vadd.f32 0.0, %v1008
  %v1010 = vpop.f32.mrb[0].mxu0
  %1011 = vmatprep.mubr.f32.mxu0 0.0
  %1012 = vmatmul.mubr.f32.gmra.mrb[0].mxu0 %v887
  %v1013 = vpop.f32.mrb[0].mxu0
  %v1014 = vadd.f32 0.0, %v1013
  %v1015 = vpop.f32.mrb[0].mxu0
  %1016 = vmatprep.mubr.f32.mxu0 0.0
  %1017 = vmatmul.mubr.f32.gmra.mrb[0].mxu0 %v888
  %v1018 = vpop.f32.mrb[0].mxu0
  %v1019 = vadd.f32 0.0, %v1018
  %v1020 = vpop.f32.mrb[0].mxu0
  %1021 = vmatprep.mubr.f32.mxu0 0.0
  %1022 = vmatmul.mubr.f32.gmra.mrb[0].mxu0 %v889
  %v1023 = vpop.f32.mrb[0].mxu0
  %v1024 = vadd.f32 0.0, %v1023
  %v1025 = vpop.f32.mrb[0].mxu0
  %1026 = vmatprep.mubr.f32.mxu0 0.0
  %1027 = vmatmul.mubr.f32.gmra.mrb[0].mxu0 %v890
  %v1028 = vpop.f32.mrb[0].mxu0
  %v1029 = vadd.f32 0.0, %v1028
  %v1030 = vpop.f32.mrb[0].mxu0
  %1031 = vmatprep.mubr.f32.mxu0 0.0
  %1032 = vmatmul.mubr.f32.gmra.mrb[0].mxu0 %v891
  %v1033 = vpop.f32.mrb[0].mxu0
  %v1034 = vadd.f32 0.0, %v1033
  %v1035 = vpop.f32.mrb[0].mxu0
  %1036 = vmatprep.mubr.f32.mxu0 0.0
  %1037 = vmatmul.mubr.f32.gmra.mrb[0].mxu0 %v892
  %v1038 = vpop.f32.mrb[0].mxu0
  %v1039 = vadd.f32 0.0, %v1038
  %v1040 = vpop.f32.mrb[0].mxu0
  %1041 = vmatprep.mubr.f32.mxu0 0.0
  %1042 = vmatmul.mubr.f32.gmra.mrb[0].mxu0 %v893
  %v1043 = vpop.f32.mrb[0].mxu0
  %v1044 = vadd.f32 0.0, %v1043
  %v1045 = vpop.f32.mrb[0].mxu0
  %1046 = vmatprep.mubr.f32.mxu0 0.0
  %1047 = vmatmul.mubr.f32.gmra.mrb[0].mxu0 %v894
  %v1048 = vpop.f32.mrb[0].mxu0
  %v1049 = vadd.f32 0.0, %v1048
  %v1050 = vpop.f32.mrb[0].mxu0
  %1051 = vmatprep.mubr.f32.mxu0 0.0
  %1052 = vmatmul.mubr.f32.gmra.mrb[0].mxu0 %v895
  %v1053 = vpop.f32.mrb[0].mxu0
  %v1054 = vadd.f32 0.0, %v1053
  %v1055 = vpop.f32.mrb[0].mxu0
  %1056 = vmatprep.mubr.f32.mxu0 0.0
  %1057 = vmatmul.mubr.f32.gmra.mrb[0].mxu0 %v896
  %v1058 = vpop.f32.mrb[0].mxu0
  %v1059 = vadd.f32 0.0, %v1058
  %v1060 = vpop.f32.mrb[0].mxu0
  %1061 = vmatprep.mubr.f32.mxu0 0.0
  %1062 = vmatmul.mubr.f32.gmra.mrb[0].mxu0 %v897
  %v1063 = vpop.f32.mrb[0].mxu0
  %v1064 = vadd.f32 0.0, %v1063
  %v1065 = vpop.f32.mrb[0].mxu0
  %1066 = vmatprep.mubr.f32.mxu0 0.0
  %1067 = vmatmul.mubr.f32.gmra.mrb[0].mxu0 %v898
  %v1068 = vpop.f32.mrb[0].mxu0
  %v1069 = vadd.f32 0.0, %v1068
  %v1070 = vpop.f32.mrb[0].mxu0
  %1071 = vmatprep.mubr.f32.mxu0 0.0
  %1072 = vmatmul.mubr.f32.gmra.mrb[0].mxu0 %v899
  %v1073 = vpop.f32.mrb[0].mxu0
  %v1074 = vadd.f32 0.0, %v1073
  %v1075 = vpop.f32.mrb[0].mxu0
  %1076 = vdwg.mxu0
  %v1077 = vmul.f32 %v999, 0.5
  %v1078 = vmul.f32 %v1004, 0.5
  %v1079 = vmul.f32 %v1009, 0.5
  %v1080 = vmul.f32 %v1014, 0.5
  %v1081 = vmul.f32 %v1019, 0.5
  %v1082 = vmul.f32 %v1024, 0.5
  %v1083 = vmul.f32 %v1029, 0.5
  %v1084 = vmul.f32 %v1034, 0.5
  %v1085 = vmul.f32 %v1039, 0.5
  %v1086 = vmul.f32 %v1044, 0.5
  %v1087 = vmul.f32 %v1049, 0.5
  %v1088 = vmul.f32 %v1054, 0.5
  %v1089 = vmul.f32 %v1059, 0.5
  %v1090 = vmul.f32 %v1064, 0.5
  %v1091 = vmul.f32 %v1069, 0.5
  %v1092 = vmul.f32 %v1074, 0.5
  %v1093 = vtanh.pop %v1077
  %v1094 = vtanh.pop %v1078
  %v1095 = vtanh.pop %v1079
  %v1096 = vtanh.pop %v1080
  %v1097 = vtanh.pop %v1081
  %v1098 = vtanh.pop %v1082
  %v1099 = vtanh.pop %v1083
  %v1100 = vtanh.pop %v1084
  %v1101 = vtanh.pop %v1085
  %v1102 = vtanh.pop %v1086
  %v1103 = vtanh.pop %v1087
  %v1104 = vtanh.pop %v1088
  %v1105 = vtanh.pop %v1089
  %v1106 = vtanh.pop %v1090
  %v1107 = vtanh.pop %v1091
  %v1108 = vtanh.pop %v1092
  %v1109 = vmul.f32 %v1093, 0.5
  %v1110 = vmul.f32 %v1094, 0.5
  %v1111 = vmul.f32 %v1095, 0.5
  %v1112 = vmul.f32 %v1096, 0.5
  %v1113 = vmul.f32 %v1097, 0.5
  %v1114 = vmul.f32 %v1098, 0.5
  %v1115 = vmul.f32 %v1099, 0.5
  %v1116 = vmul.f32 %v1100, 0.5
  %v1117 = vmul.f32 %v1101, 0.5
  %v1118 = vmul.f32 %v1102, 0.5
  %v1119 = vmul.f32 %v1103, 0.5
  %v1120 = vmul.f32 %v1104, 0.5
  %v1121 = vmul.f32 %v1105, 0.5
  %v1122 = vmul.f32 %v1106, 0.5
  %v1123 = vmul.f32 %v1107, 0.5
  %v1124 = vmul.f32 %v1108, 0.5
  %v1125 = vadd.f32 %v1109, 0.5
  %v1126 = vadd.f32 %v1110, 0.5
  %v1127 = vadd.f32 %v1111, 0.5
  %v1128 = vadd.f32 %v1112, 0.5
  %v1129 = vadd.f32 %v1113, 0.5
  %v1130 = vadd.f32 %v1114, 0.5
  %v1131 = vadd.f32 %v1115, 0.5
  %v1132 = vadd.f32 %v1116, 0.5
  %v1133 = vadd.f32 %v1117, 0.5
  %v1134 = vadd.f32 %v1118, 0.5
  %v1135 = vadd.f32 %v1119, 0.5
  %v1136 = vadd.f32 %v1120, 0.5
  %v1137 = vadd.f32 %v1121, 0.5
  %v1138 = vadd.f32 %v1122, 0.5
  %v1139 = vadd.f32 %v1123, 0.5
  %v1140 = vadd.f32 %v1124, 0.5
  %v1141 = vmul.f32 %v999, %v1125
  %v1142 = vmul.f32 %v1004, %v1126
  %v1143 = vmul.f32 %v1009, %v1127
  %v1144 = vmul.f32 %v1014, %v1128
  %v1145 = vmul.f32 %v1019, %v1129
  %v1146 = vmul.f32 %v1024, %v1130
  %v1147 = vmul.f32 %v1029, %v1131
  %v1148 = vmul.f32 %v1034, %v1132
  %v1149 = vmul.f32 %v1039, %v1133
  %v1150 = vmul.f32 %v1044, %v1134
  %v1151 = vmul.f32 %v1049, %v1135
  %v1152 = vmul.f32 %v1054, %v1136
  %v1153 = vmul.f32 %v1059, %v1137
  %v1154 = vmul.f32 %v1064, %v1138
  %v1155 = vmul.f32 %v1069, %v1139
  %v1156 = vmul.f32 %v1074, %v1140
  %1157 = vst [vmem:[%s10] sm:$0xff] %v1141
  %1158 = vst [vmem:[%s10 + $0x8] sm:$0xff] %v1142
  %1159 = vst [vmem:[%s10 + $0x10] sm:$0xff] %v1143
  %1160 = vst [vmem:[%s10 + $0x18] sm:$0xff] %v1144
  %1161 = vst [vmem:[%s10 + $0x20] sm:$0xff] %v1145
  %1162 = vst [vmem:[%s10 + $0x28] sm:$0xff] %v1146
  %1163 = vst [vmem:[%s10 + $0x30] sm:$0xff] %v1147
  %1164 = vst [vmem:[%s10 + $0x38] sm:$0xff] %v1148
  %1165 = vst [vmem:[%s10 + $0x40] sm:$0xff] %v1149
  %1166 = vst [vmem:[%s10 + $0x48] sm:$0xff] %v1150
  %1167 = vst [vmem:[%s10 + $0x50] sm:$0xff] %v1151
  %1168 = vst [vmem:[%s10 + $0x58] sm:$0xff] %v1152
  %1169 = vst [vmem:[%s10 + $0x60] sm:$0xff] %v1153
  %1170 = vst [vmem:[%s10 + $0x68] sm:$0xff] %v1154
  %1171 = vst [vmem:[%s10 + $0x70] sm:$0xff] %v1155
  %1172 = vst [vmem:[%s10 + $0x78] sm:$0xff] %v1156
  // Predicated region
  $region38: #{interaction_pp_block.3} parent=0 // pred_check
    _
  $region39: #{interaction_pp_block.3} parent=0 // pred_check_branch
    %1174 = sbr.rel (0) target = $region41
  $region40: #{interaction_pp_block.3} parent=0 // pred_region
    _
  $region41: #{interaction_pp_block.3} parent=0 // pred_fallthru
    _
  // Predicated region
  $region42: #{interaction_pp_block.3} parent=0 // pred_check
    _
  $region43: #{interaction_pp_block.3} parent=0 // pred_check_branch
    %1176 = sbr.rel (0) target = $region45
  $region44: #{interaction_pp_block.3} parent=0 // pred_region
    _
  $region45: #{interaction_pp_block.3} parent=0 // pred_fallthru
    _
  // Predicated region
  $region46: #{interaction_pp_block.3} parent=0 // pred_check
    _
  $region47: #{interaction_pp_block.3} parent=0 // pred_check_branch
    %1178 = sbr.rel (0) target = $region49
  $region48: #{interaction_pp_block.3} parent=0 // pred_region
    _
  $region49: #{interaction_pp_block.3} parent=0 // pred_fallthru
    _
  // Predicated region
  $region50: #{interaction_pp_block.3} parent=0 // pred_check
    _
  $region51: #{interaction_pp_block.3} parent=0 // pred_check_branch
    %1180 = sbr.rel (0) target = $region53
  $region52: #{interaction_pp_block.3} parent=0 // pred_region
    _
  $region53: #{interaction_pp_block.3} parent=0 // pred_fallthru
    _

// kernel: interaction_pp_block.4
$region0: #{interaction_pp_block.4}
  #allocation0 [shape = 'u32[]', space=smem, size = 0x4, offset = 0x4, fixed_abs, tag = 'smem constant byte address 0x4 - core index']
  #allocation1 [shape = 'u32[144,128]{1,0:T(1,128)}', space=vmem, size = 0x12000, scoped, tag = 'internal scratch']
  %s0 = inlined_call_operand.vmem [shape: s32[128,1], index: 0, kind: input, shape index: {}]
  %s1 = inlined_call_operand.vmem [shape: s32[1,1,128], index: 1, kind: input, shape index: {}]
  %s2 = inlined_call_operand.vmem [shape: f32[128,128], index: 2, kind: input, shape index: {}]
  %s3 = inlined_call_operand.vmem [shape: f32[128,128], index: 3, kind: input, shape index: {}]
  %s4 = inlined_call_operand.vmem [shape: f32[128,128], index: 4, kind: input, shape index: {}]
  %s5 = inlined_call_operand.vmem [shape: f32[128,128], index: 5, kind: input, shape index: {}]
  %s6 = inlined_call_operand.vmem [shape: f32[128,128], index: 6, kind: output, shape index: {}]
  %s7 = sld [smem:[#allocation0]]
  $region38: #{interaction_pp_block.4} parent=0
    _
  %s9 = ssub.s32 1, %s7
  %s10 = scalar_select 0, %s9, %s7
  // Predicated region
  $region2: #{interaction_pp_block.4} parent=0 // pred_check
    _
  $region3: #{interaction_pp_block.4} parent=0 // pred_check_branch
    %12 = sbr.rel (0) target = $region5
  $region4: #{interaction_pp_block.4} parent=0 // pred_region
    _
  $region5: #{interaction_pp_block.4} parent=0 // pred_fallthru
    _
  // Predicated region
  $region6: #{interaction_pp_block.4} parent=0 // pred_check
    _
  $region7: #{interaction_pp_block.4} parent=0 // pred_check_branch
    %14 = sbr.rel (0) target = $region9
  $region8: #{interaction_pp_block.4} parent=0 // pred_region
    _
  $region9: #{interaction_pp_block.4} parent=0 // pred_fallthru
    _
  // Predicated region
  $region10: #{interaction_pp_block.4} parent=0 // pred_check
    _
  $region11: #{interaction_pp_block.4} parent=0 // pred_check_branch
    %16 = sbr.rel (0) target = $region13
  $region12: #{interaction_pp_block.4} parent=0 // pred_region
    _
  $region13: #{interaction_pp_block.4} parent=0 // pred_fallthru
    _
  // Predicated region
  $region14: #{interaction_pp_block.4} parent=0 // pred_check
    _
  $region15: #{interaction_pp_block.4} parent=0 // pred_check_branch
    %18 = sbr.rel (0) target = $region17
  $region16: #{interaction_pp_block.4} parent=0 // pred_region
    _
  $region17: #{interaction_pp_block.4} parent=0 // pred_fallthru
    _
  // Predicated region
  $region18: #{interaction_pp_block.4} parent=0 // pred_check
    _
  $region19: #{interaction_pp_block.4} parent=0 // pred_check_branch
    %20 = sbr.rel (0) target = $region21
  $region20: #{interaction_pp_block.4} parent=0 // pred_region
    _
  $region21: #{interaction_pp_block.4} parent=0 // pred_fallthru
    _
  // Predicated region
  $region22: #{interaction_pp_block.4} parent=0 // pred_check
    _
  $region23: #{interaction_pp_block.4} parent=0 // pred_check_branch
    %22 = sbr.rel (0) target = $region25
  $region24: #{interaction_pp_block.4} parent=0 // pred_region
    _
  $region25: #{interaction_pp_block.4} parent=0 // pred_fallthru
    _
  %p23 = scmp.eq.s32.totalorder 0, 0
  // Predicated region
  $region26: #{interaction_pp_block.4} parent=0 // pred_check
    %p24 = pneg %p23
  $region27: #{interaction_pp_block.4} parent=0 // pred_check_branch
    %26 = sbr.rel (%p24) target = $region29
  $region28: #{interaction_pp_block.4} parent=0 // pred_region
    %27 = vst [vmem:[%s6] sm:$0xff] 0.0
    %28 = vst [vmem:[%s6 + $0x8] sm:$0xff] 0.0
    %29 = vst [vmem:[%s6 + $0x10] sm:$0xff] 0.0
    %30 = vst [vmem:[%s6 + $0x18] sm:$0xff] 0.0
    %31 = vst [vmem:[%s6 + $0x20] sm:$0xff] 0.0
    %32 = vst [vmem:[%s6 + $0x28] sm:$0xff] 0.0
    %33 = vst [vmem:[%s6 + $0x30] sm:$0xff] 0.0
    %34 = vst [vmem:[%s6 + $0x38] sm:$0xff] 0.0
    %35 = vst [vmem:[%s6 + $0x40] sm:$0xff] 0.0
    %36 = vst [vmem:[%s6 + $0x48] sm:$0xff] 0.0
    %37 = vst [vmem:[%s6 + $0x50] sm:$0xff] 0.0
    %38 = vst [vmem:[%s6 + $0x58] sm:$0xff] 0.0
    %39 = vst [vmem:[%s6 + $0x60] sm:$0xff] 0.0
    %40 = vst [vmem:[%s6 + $0x68] sm:$0xff] 0.0
    %41 = vst [vmem:[%s6 + $0x70] sm:$0xff] 0.0
    %42 = vst [vmem:[%s6 + $0x78] sm:$0xff] 0.0
  $region29: #{interaction_pp_block.4} parent=0 // pred_fallthru
    _
  %v43 = vld [vmem:[%s3] sm:$0xff]
  %v44 = vld [vmem:[%s3 + $0x8] sm:$0xff]
  %v45 = vld [vmem:[%s3 + $0x10] sm:$0xff]
  %v46 = vld [vmem:[%s3 + $0x18] sm:$0xff]
  %v47 = vld [vmem:[%s3 + $0x20] sm:$0xff]
  %v48 = vld [vmem:[%s3 + $0x28] sm:$0xff]
  %v49 = vld [vmem:[%s3 + $0x30] sm:$0xff]
  %v50 = vld [vmem:[%s3 + $0x38] sm:$0xff]
  %v51 = vld [vmem:[%s3 + $0x40] sm:$0xff]
  %v52 = vld [vmem:[%s3 + $0x48] sm:$0xff]
  %v53 = vld [vmem:[%s3 + $0x50] sm:$0xff]
  %v54 = vld [vmem:[%s3 + $0x58] sm:$0xff]
  %v55 = vld [vmem:[%s3 + $0x60] sm:$0xff]
  %v56 = vld [vmem:[%s3 + $0x68] sm:$0xff]
  %v57 = vld [vmem:[%s3 + $0x70] sm:$0xff]
  %v58 = vld [vmem:[%s3 + $0x78] sm:$0xff]
  %v59 = vld [vmem:[%s4] sm:$0xff]
  %v60 = vld [vmem:[%s4 + $0x8] sm:$0xff]
  %v61 = vld [vmem:[%s4 + $0x10] sm:$0xff]
  %v62 = vld [vmem:[%s4 + $0x18] sm:$0xff]
  %v63 = vld [vmem:[%s4 + $0x20] sm:$0xff]
  %v64 = vld [vmem:[%s4 + $0x28] sm:$0xff]
  %v65 = vld [vmem:[%s4 + $0x30] sm:$0xff]
  %v66 = vld [vmem:[%s4 + $0x38] sm:$0xff]
  %v67 = vld [vmem:[%s4 + $0x40] sm:$0xff]
  %v68 = vld [vmem:[%s4 + $0x48] sm:$0xff]
  %v69 = vld [vmem:[%s4 + $0x50] sm:$0xff]
  %v70 = vld [vmem:[%s4 + $0x58] sm:$0xff]
  %v71 = vld [vmem:[%s4 + $0x60] sm:$0xff]
  %v72 = vld [vmem:[%s4 + $0x68] sm:$0xff]
  %v73 = vld [vmem:[%s4 + $0x70] sm:$0xff]
  %v74 = vld [vmem:[%s4 + $0x78] sm:$0xff]
  %75 = vmatprep.subr.mxu0 0.0
  %76 = vmatpush1.msra.mxu0 %v59
  %77 = vmatprep.subr.mxu0 0.0
  %78 = vmatpush1.msra.mxu0 %v60
  %79 = vmatprep.subr.mxu0 0.0
  %80 = vmatpush1.msra.mxu0 %v61
  %81 = vmatprep.subr.mxu0 0.0
  %82 = vmatpush1.msra.mxu0 %v62
  %83 = vmatprep.subr.mxu0 0.0
  %84 = vmatpush1.msra.mxu0 %v63
  %85 = vmatprep.subr.mxu0 0.0
  %86 = vmatpush1.msra.mxu0 %v64
  %87 = vmatprep.subr.mxu0 0.0
  %88 = vmatpush1.msra.mxu0 %v65
  %89 = vmatprep.subr.mxu0 0.0
  %90 = vmatpush1.msra.mxu0 %v66
  %91 = vmatprep.subr.mxu0 0.0
  %92 = vmatpush1.msra.mxu0 %v67
  %93 = vmatprep.subr.mxu0 0.0
  %94 = vmatpush1.msra.mxu0 %v68
  %95 = vmatprep.subr.mxu0 0.0
  %96 = vmatpush1.msra.mxu0 %v69
  %97 = vmatprep.subr.mxu0 0.0
  %98 = vmatpush1.msra.mxu0 %v70
  %99 = vmatprep.subr.mxu0 0.0
  %100 = vmatpush1.msra.mxu0 %v71
  %101 = vmatprep.subr.mxu0 0.0
  %102 = vmatpush1.msra.mxu0 %v72
  %103 = vmatprep.subr.mxu0 0.0
  %104 = vmatpush1.msra.mxu0 %v73
  %105 = vmatprep.subr.mxu0 0.0
  %106 = vmatpush1.msra.mxu0 %v74
  %107 = vmatprep.subr.mxu0 0.0
  %108 = vmatpush1.msra.mxu0 0.0
  %109 = vmatprep.subr.mxu0 0.0
  %110 = vmatpush1.msra.mxu0 0.0
  %111 = vmatprep.subr.mxu0 0.0
  %112 = vmatpush1.msra.mxu0 0.0
  %113 = vmatprep.subr.mxu0 0.0
  %114 = vmatpush1.msra.mxu0 0.0
  %115 = vmatprep.subr.mxu0 0.0
  %116 = vmatpush1.msra.mxu0 0.0
  %117 = vmatprep.subr.mxu0 0.0
  %118 = vmatpush1.msra.mxu0 0.0
  %119 = vmatprep.subr.mxu0 0.0
  %120 = vmatpush1.msra.mxu0 0.0
  %121 = vmatprep.subr.mxu0 0.0
  %122 = vmatpush1.msra.mxu0 0.0
  %123 = vmatprep.subr.mxu0 0.0
  %124 = vmatpush1.msra.mxu0 0.0
  %125 = vmatprep.subr.mxu0 0.0
  %126 = vmatpush1.msra.mxu0 0.0
  %127 = vmatprep.subr.mxu0 0.0
  %128 = vmatpush1.msra.mxu0 0.0
  %129 = vmatprep.subr.mxu0 0.0
  %130 = vmatpush1.msra.mxu0 0.0
  %131 = vmatprep.subr.mxu0 0.0
  %132 = vmatpush1.msra.mxu0 0.0
  %133 = vmatprep.subr.mxu0 0.0
  %134 = vmatpush1.msra.mxu0 0.0
  %135 = vmatprep.subr.mxu0 0.0
  %136 = vmatpush1.msra.mxu0 0.0
  %137 = vmatprep.subr.mxu0 0.0
  %138 = vmatpush1.msra.mxu0 0.0
  %139 = vmatprep.mubr.f32.mxu0 0.0
  %140 = vmatmul.mubr.f32.gmra.mrb[0].mxu0 %v43
  %v141 = vpop.f32.mrb[0].mxu0
  %v142 = vadd.f32 0.0, %v141
  %v143 = vpop.f32.mrb[0].mxu0
  %144 = vmatprep.mubr.f32.mxu0 0.0
  %145 = vmatmul.mubr.f32.gmra.mrb[0].mxu0 %v44
  %v146 = vpop.f32.mrb[0].mxu0
  %v147 = vadd.f32 0.0, %v146
  %v148 = vpop.f32.mrb[0].mxu0
  %149 = vmatprep.mubr.f32.mxu0 0.0
  %150 = vmatmul.mubr.f32.gmra.mrb[0].mxu0 %v45
  %v151 = vpop.f32.mrb[0].mxu0
  %v152 = vadd.f32 0.0, %v151
  %v153 = vpop.f32.mrb[0].mxu0
  %154 = vmatprep.mubr.f32.mxu0 0.0
  %155 = vmatmul.mubr.f32.gmra.mrb[0].mxu0 %v46
  %v156 = vpop.f32.mrb[0].mxu0
  %v157 = vadd.f32 0.0, %v156
  %v158 = vpop.f32.mrb[0].mxu0
  %159 = vmatprep.mubr.f32.mxu0 0.0
  %160 = vmatmul.mubr.f32.gmra.mrb[0].mxu0 %v47
  %v161 = vpop.f32.mrb[0].mxu0
  %v162 = vadd.f32 0.0, %v161
  %v163 = vpop.f32.mrb[0].mxu0
  %164 = vmatprep.mubr.f32.mxu0 0.0
  %165 = vmatmul.mubr.f32.gmra.mrb[0].mxu0 %v48
  %v166 = vpop.f32.mrb[0].mxu0
  %v167 = vadd.f32 0.0, %v166
  %v168 = vpop.f32.mrb[0].mxu0
  %169 = vmatprep.mubr.f32.mxu0 0.0
  %170 = vmatmul.mubr.f32.gmra.mrb[0].mxu0 %v49
  %v171 = vpop.f32.mrb[0].mxu0
  %v172 = vadd.f32 0.0, %v171
  %v173 = vpop.f32.mrb[0].mxu0
  %174 = vmatprep.mubr.f32.mxu0 0.0
  %175 = vmatmul.mubr.f32.gmra.mrb[0].mxu0 %v50
  %v176 = vpop.f32.mrb[0].mxu0
  %v177 = vadd.f32 0.0, %v176
  %v178 = vpop.f32.mrb[0].mxu0
  %179 = vmatprep.mubr.f32.mxu0 0.0
  %180 = vmatmul.mubr.f32.gmra.mrb[0].mxu0 %v51
  %v181 = vpop.f32.mrb[0].mxu0
  %v182 = vadd.f32 0.0, %v181
  %v183 = vpop.f32.mrb[0].mxu0
  %184 = vmatprep.mubr.f32.mxu0 0.0
  %185 = vmatmul.mubr.f32.gmra.mrb[0].mxu0 %v52
  %v186 = vpop.f32.mrb[0].mxu0
  %v187 = vadd.f32 0.0, %v186
  %v188 = vpop.f32.mrb[0].mxu0
  %189 = vmatprep.mubr.f32.mxu0 0.0
  %190 = vmatmul.mubr.f32.gmra.mrb[0].mxu0 %v53
  %v191 = vpop.f32.mrb[0].mxu0
  %v192 = vadd.f32 0.0, %v191
  %v193 = vpop.f32.mrb[0].mxu0
  %194 = vmatprep.mubr.f32.mxu0 0.0
  %195 = vmatmul.mubr.f32.gmra.mrb[0].mxu0 %v54
  %v196 = vpop.f32.mrb[0].mxu0
  %v197 = vadd.f32 0.0, %v196
  %v198 = vpop.f32.mrb[0].mxu0
  %199 = vmatprep.mubr.f32.mxu0 0.0
  %200 = vmatmul.mubr.f32.gmra.mrb[0].mxu0 %v55
  %v201 = vpop.f32.mrb[0].mxu0
  %v202 = vadd.f32 0.0, %v201
  %v203 = vpop.f32.mrb[0].mxu0
  %204 = vmatprep.mubr.f32.mxu0 0.0
  %205 = vmatmul.mubr.f32.gmra.mrb[0].mxu0 %v56
  %v206 = vpop.f32.mrb[0].mxu0
  %v207 = vadd.f32 0.0, %v206
  %v208 = vpop.f32.mrb[0].mxu0
  %209 = vmatprep.mubr.f32.mxu0 0.0
  %210 = vmatmul.mubr.f32.gmra.mrb[0].mxu0 %v57
  %v211 = vpop.f32.mrb[0].mxu0
  %v212 = vadd.f32 0.0, %v211
  %v213 = vpop.f32.mrb[0].mxu0
  %214 = vmatprep.mubr.f32.mxu0 0.0
  %215 = vmatmul.mubr.f32.gmra.mrb[0].mxu0 %v58
  %v216 = vpop.f32.mrb[0].mxu0
  %v217 = vadd.f32 0.0, %v216
  %v218 = vpop.f32.mrb[0].mxu0
  %219 = vdwg.mxu0
  %v220 = vld [vmem:[%s5] sm:$0xff]
  %v221 = vld [vmem:[%s5 + $0x8] sm:$0xff]
  %v222 = vld [vmem:[%s5 + $0x10] sm:$0xff]
  %v223 = vld [vmem:[%s5 + $0x18] sm:$0xff]
  %v224 = vld [vmem:[%s5 + $0x20] sm:$0xff]
  %v225 = vld [vmem:[%s5 + $0x28] sm:$0xff]
  %v226 = vld [vmem:[%s5 + $0x30] sm:$0xff]
  %v227 = vld [vmem:[%s5 + $0x38] sm:$0xff]
  %v228 = vld [vmem:[%s5 + $0x40] sm:$0xff]
  %v229 = vld [vmem:[%s5 + $0x48] sm:$0xff]
  %v230 = vld [vmem:[%s5 + $0x50] sm:$0xff]
  %v231 = vld [vmem:[%s5 + $0x58] sm:$0xff]
  %v232 = vld [vmem:[%s5 + $0x60] sm:$0xff]
  %v233 = vld [vmem:[%s5 + $0x68] sm:$0xff]
  %v234 = vld [vmem:[%s5 + $0x70] sm:$0xff]
  %v235 = vld [vmem:[%s5 + $0x78] sm:$0xff]
  %236 = vmatprep.subr.mxu0 0.0
  %237 = vmatpush1.msra.mxu0 %v220
  %238 = vmatprep.subr.mxu0 0.0
  %239 = vmatpush1.msra.mxu0 %v221
  %240 = vmatprep.subr.mxu0 0.0
  %241 = vmatpush1.msra.mxu0 %v222
  %242 = vmatprep.subr.mxu0 0.0
  %243 = vmatpush1.msra.mxu0 %v223
  %244 = vmatprep.subr.mxu0 0.0
  %245 = vmatpush1.msra.mxu0 %v224
  %246 = vmatprep.subr.mxu0 0.0
  %247 = vmatpush1.msra.mxu0 %v225
  %248 = vmatprep.subr.mxu0 0.0
  %249 = vmatpush1.msra.mxu0 %v226
  %250 = vmatprep.subr.mxu0 0.0
  %251 = vmatpush1.msra.mxu0 %v227
  %252 = vmatprep.subr.mxu0 0.0
  %253 = vmatpush1.msra.mxu0 %v228
  %254 = vmatprep.subr.mxu0 0.0
  %255 = vmatpush1.msra.mxu0 %v229
  %256 = vmatprep.subr.mxu0 0.0
  %257 = vmatpush1.msra.mxu0 %v230
  %258 = vmatprep.subr.mxu0 0.0
  %259 = vmatpush1.msra.mxu0 %v231
  %260 = vmatprep.subr.mxu0 0.0
  %261 = vmatpush1.msra.mxu0 %v232
  %262 = vmatprep.subr.mxu0 0.0
  %263 = vmatpush1.msra.mxu0 %v233
  %264 = vmatprep.subr.mxu0 0.0
  %265 = vmatpush1.msra.mxu0 %v234
  %266 = vmatprep.subr.mxu0 0.0
  %267 = vmatpush1.msra.mxu0 %v235
  %268 = vmatprep.subr.mxu0 0.0
  %269 = vmatpush1.msra.mxu0 0.0
  %270 = vmatprep.subr.mxu0 0.0
  %271 = vmatpush1.msra.mxu0 0.0
  %272 = vmatprep.subr.mxu0 0.0
  %273 = vmatpush1.msra.mxu0 0.0
  %274 = vmatprep.subr.mxu0 0.0
  %275 = vmatpush1.msra.mxu0 0.0
  %276 = vmatprep.subr.mxu0 0.0
  %277 = vmatpush1.msra.mxu0 0.0
  %278 = vmatprep.subr.mxu0 0.0
  %279 = vmatpush1.msra.mxu0 0.0
  %280 = vmatprep.subr.mxu0 0.0
  %281 = vmatpush1.msra.mxu0 0.0
  %282 = vmatprep.subr.mxu0 0.0
  %283 = vmatpush1.msra.mxu0 0.0
  %284 = vmatprep.subr.mxu0 0.0
  %285 = vmatpush1.msra.mxu0 0.0
  %286 = vmatprep.subr.mxu0 0.0
  %287 = vmatpush1.msra.mxu0 0.0
  %288 = vmatprep.subr.mxu0 0.0
  %289 = vmatpush1.msra.mxu0 0.0
  %290 = vmatprep.subr.mxu0 0.0
  %291 = vmatpush1.msra.mxu0 0.0
  %292 = vmatprep.subr.mxu0 0.0
  %293 = vmatpush1.msra.mxu0 0.0
  %294 = vmatprep.subr.mxu0 0.0
  %295 = vmatpush1.msra.mxu0 0.0
  %296 = vmatprep.subr.mxu0 0.0
  %297 = vmatpush1.msra.mxu0 0.0
  %298 = vmatprep.subr.mxu0 0.0
  %299 = vmatpush1.msra.mxu0 0.0
  %300 = vmatprep.mubr.f32.mxu0 0.0
  %301 = vmatmul.mubr.f32.gmra.mrb[0].mxu0 %v142
  %v302 = vpop.f32.mrb[0].mxu0
  %v303 = vadd.f32 0.0, %v302
  %v304 = vpop.f32.mrb[0].mxu0
  %305 = vmatprep.mubr.f32.mxu0 0.0
  %306 = vmatmul.mubr.f32.gmra.mrb[0].mxu0 %v147
  %v307 = vpop.f32.mrb[0].mxu0
  %v308 = vadd.f32 0.0, %v307
  %v309 = vpop.f32.mrb[0].mxu0
  %310 = vmatprep.mubr.f32.mxu0 0.0
  %311 = vmatmul.mubr.f32.gmra.mrb[0].mxu0 %v152
  %v312 = vpop.f32.mrb[0].mxu0
  %v313 = vadd.f32 0.0, %v312
  %v314 = vpop.f32.mrb[0].mxu0
  %315 = vmatprep.mubr.f32.mxu0 0.0
  %316 = vmatmul.mubr.f32.gmra.mrb[0].mxu0 %v157
  %v317 = vpop.f32.mrb[0].mxu0
  %v318 = vadd.f32 0.0, %v317
  %v319 = vpop.f32.mrb[0].mxu0
  %320 = vmatprep.mubr.f32.mxu0 0.0
  %321 = vmatmul.mubr.f32.gmra.mrb[0].mxu0 %v162
  %v322 = vpop.f32.mrb[0].mxu0
  %v323 = vadd.f32 0.0, %v322
  %v324 = vpop.f32.mrb[0].mxu0
  %325 = vmatprep.mubr.f32.mxu0 0.0
  %326 = vmatmul.mubr.f32.gmra.mrb[0].mxu0 %v167
  %v327 = vpop.f32.mrb[0].mxu0
  %v328 = vadd.f32 0.0, %v327
  %v329 = vpop.f32.mrb[0].mxu0
  %330 = vmatprep.mubr.f32.mxu0 0.0
  %331 = vmatmul.mubr.f32.gmra.mrb[0].mxu0 %v172
  %v332 = vpop.f32.mrb[0].mxu0
  %v333 = vadd.f32 0.0, %v332
  %v334 = vpop.f32.mrb[0].mxu0
  %335 = vmatprep.mubr.f32.mxu0 0.0
  %336 = vmatmul.mubr.f32.gmra.mrb[0].mxu0 %v177
  %v337 = vpop.f32.mrb[0].mxu0
  %v338 = vadd.f32 0.0, %v337
  %v339 = vpop.f32.mrb[0].mxu0
  %340 = vmatprep.mubr.f32.mxu0 0.0
  %341 = vmatmul.mubr.f32.gmra.mrb[0].mxu0 %v182
  %v342 = vpop.f32.mrb[0].mxu0
  %v343 = vadd.f32 0.0, %v342
  %v344 = vpop.f32.mrb[0].mxu0
  %345 = vmatprep.mubr.f32.mxu0 0.0
  %346 = vmatmul.mubr.f32.gmra.mrb[0].mxu0 %v187
  %v347 = vpop.f32.mrb[0].mxu0
  %v348 = vadd.f32 0.0, %v347
  %v349 = vpop.f32.mrb[0].mxu0
  %350 = vmatprep.mubr.f32.mxu0 0.0
  %351 = vmatmul.mubr.f32.gmra.mrb[0].mxu0 %v192
  %v352 = vpop.f32.mrb[0].mxu0
  %v353 = vadd.f32 0.0, %v352
  %v354 = vpop.f32.mrb[0].mxu0
  %355 = vmatprep.mubr.f32.mxu0 0.0
  %356 = vmatmul.mubr.f32.gmra.mrb[0].mxu0 %v197
  %v357 = vpop.f32.mrb[0].mxu0
  %v358 = vadd.f32 0.0, %v357
  %v359 = vpop.f32.mrb[0].mxu0
  %360 = vmatprep.mubr.f32.mxu0 0.0
  %361 = vmatmul.mubr.f32.gmra.mrb[0].mxu0 %v202
  %v362 = vpop.f32.mrb[0].mxu0
  %v363 = vadd.f32 0.0, %v362
  %v364 = vpop.f32.mrb[0].mxu0
  %365 = vmatprep.mubr.f32.mxu0 0.0
  %366 = vmatmul.mubr.f32.gmra.mrb[0].mxu0 %v207
  %v367 = vpop.f32.mrb[0].mxu0
  %v368 = vadd.f32 0.0, %v367
  %v369 = vpop.f32.mrb[0].mxu0
  %370 = vmatprep.mubr.f32.mxu0 0.0
  %371 = vmatmul.mubr.f32.gmra.mrb[0].mxu0 %v212
  %v372 = vpop.f32.mrb[0].mxu0
  %v373 = vadd.f32 0.0, %v372
  %v374 = vpop.f32.mrb[0].mxu0
  %375 = vmatprep.mubr.f32.mxu0 0.0
  %376 = vmatmul.mubr.f32.gmra.mrb[0].mxu0 %v217
  %v377 = vpop.f32.mrb[0].mxu0
  %v378 = vadd.f32 0.0, %v377
  %v379 = vpop.f32.mrb[0].mxu0
  %380 = vdwg.mxu0
  %v381 = vld [vmem:[%s0] sm:$0xff]
  %v382 = vld [vmem:[%s0 + $0x8] sm:$0xff]
  %v383 = vld [vmem:[%s0 + $0x10] sm:$0xff]
  %v384 = vld [vmem:[%s0 + $0x18] sm:$0xff]
  %v385 = vld [vmem:[%s0 + $0x20] sm:$0xff]
  %v386 = vld [vmem:[%s0 + $0x28] sm:$0xff]
  %v387 = vld [vmem:[%s0 + $0x30] sm:$0xff]
  %v388 = vld [vmem:[%s0 + $0x38] sm:$0xff]
  %v389 = vld [vmem:[%s0 + $0x40] sm:$0xff]
  %v390 = vld [vmem:[%s0 + $0x48] sm:$0xff]
  %v391 = vld [vmem:[%s0 + $0x50] sm:$0xff]
  %v392 = vld [vmem:[%s0 + $0x58] sm:$0xff]
  %v393 = vld [vmem:[%s0 + $0x60] sm:$0xff]
  %v394 = vld [vmem:[%s0 + $0x68] sm:$0xff]
  %v395 = vld [vmem:[%s0 + $0x70] sm:$0xff]
  %v396 = vld [vmem:[%s0 + $0x78] sm:$0xff]
  %v397 = vlaneseq
  %v398 = vand.u32 %v397, 127
  %399 = vset.pattern.permute.xlu0 0
  %400 = vperm.xlu0 %399, %v381
  %v401 = vpop.permute.xlu0 %400
  %402 = vset.pattern.permute.xlu0 0
  %403 = vperm.xlu0 %402, %v382
  %v404 = vpop.permute.xlu0 %403
  %405 = vset.pattern.permute.xlu0 0
  %406 = vperm.xlu0 %405, %v383
  %v407 = vpop.permute.xlu0 %406
  %408 = vset.pattern.permute.xlu0 0
  %409 = vperm.xlu0 %408, %v384
  %v410 = vpop.permute.xlu0 %409
  %411 = vset.pattern.permute.xlu0 0
  %412 = vperm.xlu0 %411, %v385
  %v413 = vpop.permute.xlu0 %412
  %414 = vset.pattern.permute.xlu0 0
  %415 = vperm.xlu0 %414, %v386
  %v416 = vpop.permute.xlu0 %415
  %417 = vset.pattern.permute.xlu0 0
  %418 = vperm.xlu0 %417, %v387
  %v419 = vpop.permute.xlu0 %418
  %420 = vset.pattern.permute.xlu0 0
  %421 = vperm.xlu0 %420, %v388
  %v422 = vpop.permute.xlu0 %421
  %423 = vset.pattern.permute.xlu0 0
  %424 = vperm.xlu0 %423, %v389
  %v425 = vpop.permute.xlu0 %424
  %426 = vset.pattern.permute.xlu0 0
  %427 = vperm.xlu0 %426, %v390
  %v428 = vpop.permute.xlu0 %427
  %429 = vset.pattern.permute.xlu0 0
  %430 = vperm.xlu0 %429, %v391
  %v431 = vpop.permute.xlu0 %430
  %432 = vset.pattern.permute.xlu0 0
  %433 = vperm.xlu0 %432, %v392
  %v434 = vpop.permute.xlu0 %433
  %435 = vset.pattern.permute.xlu0 0
  %436 = vperm.xlu0 %435, %v393
  %v437 = vpop.permute.xlu0 %436
  %438 = vset.pattern.permute.xlu0 0
  %439 = vperm.xlu0 %438, %v394
  %v440 = vpop.permute.xlu0 %439
  %441 = vset.pattern.permute.xlu0 0
  %442 = vperm.xlu0 %441, %v395
  %v443 = vpop.permute.xlu0 %442
  %444 = vset.pattern.permute.xlu0 0
  %445 = vperm.xlu0 %444, %v396
  %v446 = vpop.permute.xlu0 %445
  %vm447 = vcmp.eq.s32.totalorder %v401, %v398
  %vm448 = vcmp.eq.s32.totalorder %v404, %v398
  %vm449 = vcmp.eq.s32.totalorder %v407, %v398
  %vm450 = vcmp.eq.s32.totalorder %v410, %v398
  %vm451 = vcmp.eq.s32.totalorder %v413, %v398
  %vm452 = vcmp.eq.s32.totalorder %v416, %v398
  %vm453 = vcmp.eq.s32.totalorder %v419, %v398
  %vm454 = vcmp.eq.s32.totalorder %v422, %v398
  %vm455 = vcmp.eq.s32.totalorder %v425, %v398
  %vm456 = vcmp.eq.s32.totalorder %v428, %v398
  %vm457 = vcmp.eq.s32.totalorder %v431, %v398
  %vm458 = vcmp.eq.s32.totalorder %v434, %v398
  %vm459 = vcmp.eq.s32.totalorder %v437, %v398
  %vm460 = vcmp.eq.s32.totalorder %v440, %v398
  %vm461 = vcmp.eq.s32.totalorder %v443, %v398
  %vm462 = vcmp.eq.s32.totalorder %v446, %v398
  %v463 = vsel %vm447, 1, 0
  %v464 = vsel %vm448, 1, 0
  %v465 = vsel %vm449, 1, 0
  %v466 = vsel %vm450, 1, 0
  %v467 = vsel %vm451, 1, 0
  %v468 = vsel %vm452, 1, 0
  %v469 = vsel %vm453, 1, 0
  %v470 = vsel %vm454, 1, 0
  %v471 = vsel %vm455, 1, 0
  %v472 = vsel %vm456, 1, 0
  %v473 = vsel %vm457, 1, 0
  %v474 = vsel %vm458, 1, 0
  %v475 = vsel %vm459, 1, 0
  %v476 = vsel %vm460, 1, 0
  %v477 = vsel %vm461, 1, 0
  %v478 = vsel %vm462, 1, 0
  %v479 = vcvt.s32.f32 %v463
  %v480 = vcvt.s32.f32 %v464
  %v481 = vcvt.s32.f32 %v465
  %v482 = vcvt.s32.f32 %v466
  %v483 = vcvt.s32.f32 %v467
  %v484 = vcvt.s32.f32 %v468
  %v485 = vcvt.s32.f32 %v469
  %v486 = vcvt.s32.f32 %v470
  %v487 = vcvt.s32.f32 %v471
  %v488 = vcvt.s32.f32 %v472
  %v489 = vcvt.s32.f32 %v473
  %v490 = vcvt.s32.f32 %v474
  %v491 = vcvt.s32.f32 %v475
  %v492 = vcvt.s32.f32 %v476
  %v493 = vcvt.s32.f32 %v477
  %v494 = vcvt.s32.f32 %v478
  %v495 = vld [vmem:[%s2] sm:$0xff]
  %v496 = vld [vmem:[%s2 + $0x8] sm:$0xff]
  %v497 = vld [vmem:[%s2 + $0x10] sm:$0xff]
  %v498 = vld [vmem:[%s2 + $0x18] sm:$0xff]
  %v499 = vld [vmem:[%s2 + $0x20] sm:$0xff]
  %v500 = vld [vmem:[%s2 + $0x28] sm:$0xff]
  %v501 = vld [vmem:[%s2 + $0x30] sm:$0xff]
  %v502 = vld [vmem:[%s2 + $0x38] sm:$0xff]
  %v503 = vld [vmem:[%s2 + $0x40] sm:$0xff]
  %v504 = vld [vmem:[%s2 + $0x48] sm:$0xff]
  %v505 = vld [vmem:[%s2 + $0x50] sm:$0xff]
  %v506 = vld [vmem:[%s2 + $0x58] sm:$0xff]
  %v507 = vld [vmem:[%s2 + $0x60] sm:$0xff]
  %v508 = vld [vmem:[%s2 + $0x68] sm:$0xff]
  %v509 = vld [vmem:[%s2 + $0x70] sm:$0xff]
  %v510 = vld [vmem:[%s2 + $0x78] sm:$0xff]
  %511 = vmatprep.subr.mxu0 0.0
  %512 = vmatpush1.msra.mxu0 %v495
  %513 = vmatprep.subr.mxu0 0.0
  %514 = vmatpush1.msra.mxu0 %v496
  %515 = vmatprep.subr.mxu0 0.0
  %516 = vmatpush1.msra.mxu0 %v497
  %517 = vmatprep.subr.mxu0 0.0
  %518 = vmatpush1.msra.mxu0 %v498
  %519 = vmatprep.subr.mxu0 0.0
  %520 = vmatpush1.msra.mxu0 %v499
  %521 = vmatprep.subr.mxu0 0.0
  %522 = vmatpush1.msra.mxu0 %v500
  %523 = vmatprep.subr.mxu0 0.0
  %524 = vmatpush1.msra.mxu0 %v501
  %525 = vmatprep.subr.mxu0 0.0
  %526 = vmatpush1.msra.mxu0 %v502
  %527 = vmatprep.subr.mxu0 0.0
  %528 = vmatpush1.msra.mxu0 %v503
  %529 = vmatprep.subr.mxu0 0.0
  %530 = vmatpush1.msra.mxu0 %v504
  %531 = vmatprep.subr.mxu0 0.0
  %532 = vmatpush1.msra.mxu0 %v505
  %533 = vmatprep.subr.mxu0 0.0
  %534 = vmatpush1.msra.mxu0 %v506
  %535 = vmatprep.subr.mxu0 0.0
  %536 = vmatpush1.msra.mxu0 %v507
  %537 = vmatprep.subr.mxu0 0.0
  %538 = vmatpush1.msra.mxu0 %v508
  %539 = vmatprep.subr.mxu0 0.0
  %540 = vmatpush1.msra.mxu0 %v509
  %541 = vmatprep.subr.mxu0 0.0
  %542 = vmatpush1.msra.mxu0 %v510
  %543 = vmatprep.subr.mxu0 0.0
  %544 = vmatpush1.msra.mxu0 0.0
  %545 = vmatprep.subr.mxu0 0.0
  %546 = vmatpush1.msra.mxu0 0.0
  %547 = vmatprep.subr.mxu0 0.0
  %548 = vmatpush1.msra.mxu0 0.0
  %549 = vmatprep.subr.mxu0 0.0
  %550 = vmatpush1.msra.mxu0 0.0
  %551 = vmatprep.subr.mxu0 0.0
  %552 = vmatpush1.msra.mxu0 0.0
  %553 = vmatprep.subr.mxu0 0.0
  %554 = vmatpush1.msra.mxu0 0.0
  %555 = vmatprep.subr.mxu0 0.0
  %556 = vmatpush1.msra.mxu0 0.0
  %557 = vmatprep.subr.mxu0 0.0
  %558 = vmatpush1.msra.mxu0 0.0
  %559 = vmatprep.subr.mxu0 0.0
  %560 = vmatpush1.msra.mxu0 0.0
  %561 = vmatprep.subr.mxu0 0.0
  %562 = vmatpush1.msra.mxu0 0.0
  %563 = vmatprep.subr.mxu0 0.0
  %564 = vmatpush1.msra.mxu0 0.0
  %565 = vmatprep.subr.mxu0 0.0
  %566 = vmatpush1.msra.mxu0 0.0
  %567 = vmatprep.subr.mxu0 0.0
  %568 = vmatpush1.msra.mxu0 0.0
  %569 = vmatprep.subr.mxu0 0.0
  %570 = vmatpush1.msra.mxu0 0.0
  %571 = vmatprep.subr.mxu0 0.0
  %572 = vmatpush1.msra.mxu0 0.0
  %573 = vmatprep.subr.mxu0 0.0
  %574 = vmatpush1.msra.mxu0 0.0
  %575 = vmatprep.mubr.f32.mxu0 0.0
  %576 = vmatmul.mubr.f32.gmra.mrb[0].mxu0 %v479
  %v577 = vpop.f32.mrb[0].mxu0
  %v578 = vadd.f32 0.0, %v577
  %v579 = vpop.f32.mrb[0].mxu0
  %580 = vmatprep.mubr.f32.mxu0 0.0
  %581 = vmatmul.mubr.f32.gmra.mrb[0].mxu0 %v480
  %v582 = vpop.f32.mrb[0].mxu0
  %v583 = vadd.f32 0.0, %v582
  %v584 = vpop.f32.mrb[0].mxu0
  %585 = vmatprep.mubr.f32.mxu0 0.0
  %586 = vmatmul.mubr.f32.gmra.mrb[0].mxu0 %v481
  %v587 = vpop.f32.mrb[0].mxu0
  %v588 = vadd.f32 0.0, %v587
  %v589 = vpop.f32.mrb[0].mxu0
  %590 = vmatprep.mubr.f32.mxu0 0.0
  %591 = vmatmul.mubr.f32.gmra.mrb[0].mxu0 %v482
  %v592 = vpop.f32.mrb[0].mxu0
  %v593 = vadd.f32 0.0, %v592
  %v594 = vpop.f32.mrb[0].mxu0
  %595 = vmatprep.mubr.f32.mxu0 0.0
  %596 = vmatmul.mubr.f32.gmra.mrb[0].mxu0 %v483
  %v597 = vpop.f32.mrb[0].mxu0
  %v598 = vadd.f32 0.0, %v597
  %v599 = vpop.f32.mrb[0].mxu0
  %600 = vmatprep.mubr.f32.mxu0 0.0
  %601 = vmatmul.mubr.f32.gmra.mrb[0].mxu0 %v484
  %v602 = vpop.f32.mrb[0].mxu0
  %v603 = vadd.f32 0.0, %v602
  %v604 = vpop.f32.mrb[0].mxu0
  %605 = vmatprep.mubr.f32.mxu0 0.0
  %606 = vmatmul.mubr.f32.gmra.mrb[0].mxu0 %v485
  %v607 = vpop.f32.mrb[0].mxu0
  %v608 = vadd.f32 0.0, %v607
  %v609 = vpop.f32.mrb[0].mxu0
  %610 = vmatprep.mubr.f32.mxu0 0.0
  %611 = vmatmul.mubr.f32.gmra.mrb[0].mxu0 %v486
  %v612 = vpop.f32.mrb[0].mxu0
  %v613 = vadd.f32 0.0, %v612
  %v614 = vpop.f32.mrb[0].mxu0
  %615 = vmatprep.mubr.f32.mxu0 0.0
  %616 = vmatmul.mubr.f32.gmra.mrb[0].mxu0 %v487
  %v617 = vpop.f32.mrb[0].mxu0
  %v618 = vadd.f32 0.0, %v617
  %v619 = vpop.f32.mrb[0].mxu0
  %620 = vmatprep.mubr.f32.mxu0 0.0
  %621 = vmatmul.mubr.f32.gmra.mrb[0].mxu0 %v488
  %v622 = vpop.f32.mrb[0].mxu0
  %v623 = vadd.f32 0.0, %v622
  %v624 = vpop.f32.mrb[0].mxu0
  %625 = vmatprep.mubr.f32.mxu0 0.0
  %626 = vmatmul.mubr.f32.gmra.mrb[0].mxu0 %v489
  %v627 = vpop.f32.mrb[0].mxu0
  %v628 = vadd.f32 0.0, %v627
  %v629 = vpop.f32.mrb[0].mxu0
  %630 = vmatprep.mubr.f32.mxu0 0.0
  %631 = vmatmul.mubr.f32.gmra.mrb[0].mxu0 %v490
  %v632 = vpop.f32.mrb[0].mxu0
  %v633 = vadd.f32 0.0, %v632
  %v634 = vpop.f32.mrb[0].mxu0
  %635 = vmatprep.mubr.f32.mxu0 0.0
  %636 = vmatmul.mubr.f32.gmra.mrb[0].mxu0 %v491
  %v637 = vpop.f32.mrb[0].mxu0
  %v638 = vadd.f32 0.0, %v637
  %v639 = vpop.f32.mrb[0].mxu0
  %640 = vmatprep.mubr.f32.mxu0 0.0
  %641 = vmatmul.mubr.f32.gmra.mrb[0].mxu0 %v492
  %v642 = vpop.f32.mrb[0].mxu0
  %v643 = vadd.f32 0.0, %v642
  %v644 = vpop.f32.mrb[0].mxu0
  %645 = vmatprep.mubr.f32.mxu0 0.0
  %646 = vmatmul.mubr.f32.gmra.mrb[0].mxu0 %v493
  %v647 = vpop.f32.mrb[0].mxu0
  %v648 = vadd.f32 0.0, %v647
  %v649 = vpop.f32.mrb[0].mxu0
  %650 = vmatprep.mubr.f32.mxu0 0.0
  %651 = vmatmul.mubr.f32.gmra.mrb[0].mxu0 %v494
  %v652 = vpop.f32.mrb[0].mxu0
  %v653 = vadd.f32 0.0, %v652
  %v654 = vpop.f32.mrb[0].mxu0
  %655 = vdwg.mxu0
  %v656 = vmul.f32 %v578, %v303
  %v657 = vmul.f32 %v583, %v308
  %v658 = vmul.f32 %v588, %v313
  %v659 = vmul.f32 %v593, %v318
  %v660 = vmul.f32 %v598, %v323
  %v661 = vmul.f32 %v603, %v328
  %v662 = vmul.f32 %v608, %v333
  %v663 = vmul.f32 %v613, %v338
  %v664 = vmul.f32 %v618, %v343
  %v665 = vmul.f32 %v623, %v348
  %v666 = vmul.f32 %v628, %v353
  %v667 = vmul.f32 %v633, %v358
  %v668 = vmul.f32 %v638, %v363
  %v669 = vmul.f32 %v643, %v368
  %v670 = vmul.f32 %v648, %v373
  %v671 = vmul.f32 %v653, %v378
  %s672 = smul.u32 0, 128
  %v673 = vlaneseq
  %v674 = vshrl.u32 %v673, 7
  %v675 = vadd.s32 %v674, 8
  %v676 = vadd.s32 %v674, 16
  %v677 = vadd.s32 %v674, 24
  %v678 = vadd.s32 %v674, 32
  %v679 = vadd.s32 %v674, 40
  %v680 = vadd.s32 %v674, 48
  %v681 = vadd.s32 %v674, 56
  %v682 = vadd.s32 %v674, 64
  %v683 = vadd.s32 %v674, 72
  %v684 = vadd.s32 %v674, 80
  %v685 = vadd.s32 %v674, 88
  %v686 = vadd.s32 %v674, 96
  %v687 = vadd.s32 %v674, 104
  %v688 = vadd.s32 %v674, 112
  %v689 = vadd.s32 %v674, 120
  %v690 = vstv %s672
  %v691 = vadd.s32 %v690, %v674
  %v692 = vadd.s32 %v690, %v675
  %v693 = vadd.s32 %v690, %v676
  %v694 = vadd.s32 %v690, %v677
  %v695 = vadd.s32 %v690, %v678
  %v696 = vadd.s32 %v690, %v679
  %v697 = vadd.s32 %v690, %v680
  %v698 = vadd.s32 %v690, %v681
  %v699 = vadd.s32 %v690, %v682
  %v700 = vadd.s32 %v690, %v683
  %v701 = vadd.s32 %v690, %v684
  %v702 = vadd.s32 %v690, %v685
  %v703 = vadd.s32 %v690, %v686
  %v704 = vadd.s32 %v690, %v687
  %v705 = vadd.s32 %v690, %v688
  %v706 = vadd.s32 %v690, %v689
  %v707 = vld [vmem:[%s1] sm:$0x1]
  %v708 = vlaneseq
  %v709 = vshrl.u32 %v708, 7
  %v710 = vsub.s32 0, %v709
  %v711 = vrot.slane %v707, %v710
  %vm712 = vcmp.eq.s32.totalorder %v691, %v711
  %vm713 = vcmp.eq.s32.totalorder %v692, %v711
  %vm714 = vcmp.eq.s32.totalorder %v693, %v711
  %vm715 = vcmp.eq.s32.totalorder %v694, %v711
  %vm716 = vcmp.eq.s32.totalorder %v695, %v711
  %vm717 = vcmp.eq.s32.totalorder %v696, %v711
  %vm718 = vcmp.eq.s32.totalorder %v697, %v711
  %vm719 = vcmp.eq.s32.totalorder %v698, %v711
  %vm720 = vcmp.eq.s32.totalorder %v699, %v711
  %vm721 = vcmp.eq.s32.totalorder %v700, %v711
  %vm722 = vcmp.eq.s32.totalorder %v701, %v711
  %vm723 = vcmp.eq.s32.totalorder %v702, %v711
  %vm724 = vcmp.eq.s32.totalorder %v703, %v711
  %vm725 = vcmp.eq.s32.totalorder %v704, %v711
  %vm726 = vcmp.eq.s32.totalorder %v705, %v711
  %vm727 = vcmp.eq.s32.totalorder %v706, %v711
  %v728 = vsel %vm712, 1, 0
  %v729 = vsel %vm713, 1, 0
  %v730 = vsel %vm714, 1, 0
  %v731 = vsel %vm715, 1, 0
  %v732 = vsel %vm716, 1, 0
  %v733 = vsel %vm717, 1, 0
  %v734 = vsel %vm718, 1, 0
  %v735 = vsel %vm719, 1, 0
  %v736 = vsel %vm720, 1, 0
  %v737 = vsel %vm721, 1, 0
  %v738 = vsel %vm722, 1, 0
  %v739 = vsel %vm723, 1, 0
  %v740 = vsel %vm724, 1, 0
  %v741 = vsel %vm725, 1, 0
  %v742 = vsel %vm726, 1, 0
  %v743 = vsel %vm727, 1, 0
  %v744 = vcvt.s32.f32 %v728
  %v745 = vcvt.s32.f32 %v729
  %v746 = vcvt.s32.f32 %v730
  %v747 = vcvt.s32.f32 %v731
  %v748 = vcvt.s32.f32 %v732
  %v749 = vcvt.s32.f32 %v733
  %v750 = vcvt.s32.f32 %v734
  %v751 = vcvt.s32.f32 %v735
  %v752 = vcvt.s32.f32 %v736
  %v753 = vcvt.s32.f32 %v737
  %v754 = vcvt.s32.f32 %v738
  %v755 = vcvt.s32.f32 %v739
  %v756 = vcvt.s32.f32 %v740
  %v757 = vcvt.s32.f32 %v741
  %v758 = vcvt.s32.f32 %v742
  %v759 = vcvt.s32.f32 %v743
  %v760 = vld [vmem:[%s6] sm:$0xff]
  %v761 = vld [vmem:[%s6 + $0x8] sm:$0xff]
  %v762 = vld [vmem:[%s6 + $0x10] sm:$0xff]
  %v763 = vld [vmem:[%s6 + $0x18] sm:$0xff]
  %v764 = vld [vmem:[%s6 + $0x20] sm:$0xff]
  %v765 = vld [vmem:[%s6 + $0x28] sm:$0xff]
  %v766 = vld [vmem:[%s6 + $0x30] sm:$0xff]
  %v767 = vld [vmem:[%s6 + $0x38] sm:$0xff]
  %v768 = vld [vmem:[%s6 + $0x40] sm:$0xff]
  %v769 = vld [vmem:[%s6 + $0x48] sm:$0xff]
  %v770 = vld [vmem:[%s6 + $0x50] sm:$0xff]
  %v771 = vld [vmem:[%s6 + $0x58] sm:$0xff]
  %v772 = vld [vmem:[%s6 + $0x60] sm:$0xff]
  %v773 = vld [vmem:[%s6 + $0x68] sm:$0xff]
  %v774 = vld [vmem:[%s6 + $0x70] sm:$0xff]
  %v775 = vld [vmem:[%s6 + $0x78] sm:$0xff]
  %776 = vmatprep.subr.mxu0 0.0
  %777 = vmatpush1.msra.mxu0 %v656
  %778 = vmatprep.subr.mxu0 0.0
  %779 = vmatpush1.msra.mxu0 %v657
  %780 = vmatprep.subr.mxu0 0.0
  %781 = vmatpush1.msra.mxu0 %v658
  %782 = vmatprep.subr.mxu0 0.0
  %783 = vmatpush1.msra.mxu0 %v659
  %784 = vmatprep.subr.mxu0 0.0
  %785 = vmatpush1.msra.mxu0 %v660
  %786 = vmatprep.subr.mxu0 0.0
  %787 = vmatpush1.msra.mxu0 %v661
  %788 = vmatprep.subr.mxu0 0.0
  %789 = vmatpush1.msra.mxu0 %v662
  %790 = vmatprep.subr.mxu0 0.0
  %791 = vmatpush1.msra.mxu0 %v663
  %792 = vmatprep.subr.mxu0 0.0
  %793 = vmatpush1.msra.mxu0 %v664
  %794 = vmatprep.subr.mxu0 0.0
  %795 = vmatpush1.msra.mxu0 %v665
  %796 = vmatprep.subr.mxu0 0.0
  %797 = vmatpush1.msra.mxu0 %v666
  %798 = vmatprep.subr.mxu0 0.0
  %799 = vmatpush1.msra.mxu0 %v667
  %800 = vmatprep.subr.mxu0 0.0
  %801 = vmatpush1.msra.mxu0 %v668
  %802 = vmatprep.subr.mxu0 0.0
  %803 = vmatpush1.msra.mxu0 %v669
  %804 = vmatprep.subr.mxu0 0.0
  %805 = vmatpush1.msra.mxu0 %v670
  %806 = vmatprep.subr.mxu0 0.0
  %807 = vmatpush1.msra.mxu0 %v671
  %808 = vmatprep.subr.mxu0 0.0
  %809 = vmatpush1.msra.mxu0 0.0
  %810 = vmatprep.subr.mxu0 0.0
  %811 = vmatpush1.msra.mxu0 0.0
  %812 = vmatprep.subr.mxu0 0.0
  %813 = vmatpush1.msra.mxu0 0.0
  %814 = vmatprep.subr.mxu0 0.0
  %815 = vmatpush1.msra.mxu0 0.0
  %816 = vmatprep.subr.mxu0 0.0
  %817 = vmatpush1.msra.mxu0 0.0
  %818 = vmatprep.subr.mxu0 0.0
  %819 = vmatpush1.msra.mxu0 0.0
  %820 = vmatprep.subr.mxu0 0.0
  %821 = vmatpush1.msra.mxu0 0.0
  %822 = vmatprep.subr.mxu0 0.0
  %823 = vmatpush1.msra.mxu0 0.0
  %824 = vmatprep.subr.mxu0 0.0
  %825 = vmatpush1.msra.mxu0 0.0
  %826 = vmatprep.subr.mxu0 0.0
  %827 = vmatpush1.msra.mxu0 0.0
  %828 = vmatprep.subr.mxu0 0.0
  %829 = vmatpush1.msra.mxu0 0.0
  %830 = vmatprep.subr.mxu0 0.0
  %831 = vmatpush1.msra.mxu0 0.0
  %832 = vmatprep.subr.mxu0 0.0
  %833 = vmatpush1.msra.mxu0 0.0
  %834 = vmatprep.subr.mxu0 0.0
  %835 = vmatpush1.msra.mxu0 0.0
  %836 = vmatprep.subr.mxu0 0.0
  %837 = vmatpush1.msra.mxu0 0.0
  %838 = vmatprep.subr.mxu0 0.0
  %839 = vmatpush1.msra.mxu0 0.0
  %840 = vmatprep.mubr.f32.mxu0 0.0
  %841 = vmatmul.mubr.f32.gmra.mrb[0].mxu0 %v744
  %v842 = vpop.f32.mrb[0].mxu0
  %v843 = vadd.f32 0.0, %v842
  %v844 = vpop.f32.mrb[0].mxu0
  %845 = vmatprep.mubr.f32.mxu0 0.0
  %846 = vmatmul.mubr.f32.gmra.mrb[0].mxu0 %v745
  %v847 = vpop.f32.mrb[0].mxu0
  %v848 = vadd.f32 0.0, %v847
  %v849 = vpop.f32.mrb[0].mxu0
  %850 = vmatprep.mubr.f32.mxu0 0.0
  %851 = vmatmul.mubr.f32.gmra.mrb[0].mxu0 %v746
  %v852 = vpop.f32.mrb[0].mxu0
  %v853 = vadd.f32 0.0, %v852
  %v854 = vpop.f32.mrb[0].mxu0
  %855 = vmatprep.mubr.f32.mxu0 0.0
  %856 = vmatmul.mubr.f32.gmra.mrb[0].mxu0 %v747
  %v857 = vpop.f32.mrb[0].mxu0
  %v858 = vadd.f32 0.0, %v857
  %v859 = vpop.f32.mrb[0].mxu0
  %860 = vmatprep.mubr.f32.mxu0 0.0
  %861 = vmatmul.mubr.f32.gmra.mrb[0].mxu0 %v748
  %v862 = vpop.f32.mrb[0].mxu0
  %v863 = vadd.f32 0.0, %v862
  %v864 = vpop.f32.mrb[0].mxu0
  %865 = vmatprep.mubr.f32.mxu0 0.0
  %866 = vmatmul.mubr.f32.gmra.mrb[0].mxu0 %v749
  %v867 = vpop.f32.mrb[0].mxu0
  %v868 = vadd.f32 0.0, %v867
  %v869 = vpop.f32.mrb[0].mxu0
  %870 = vmatprep.mubr.f32.mxu0 0.0
  %871 = vmatmul.mubr.f32.gmra.mrb[0].mxu0 %v750
  %v872 = vpop.f32.mrb[0].mxu0
  %v873 = vadd.f32 0.0, %v872
  %v874 = vpop.f32.mrb[0].mxu0
  %875 = vmatprep.mubr.f32.mxu0 0.0
  %876 = vmatmul.mubr.f32.gmra.mrb[0].mxu0 %v751
  %v877 = vpop.f32.mrb[0].mxu0
  %v878 = vadd.f32 0.0, %v877
  %v879 = vpop.f32.mrb[0].mxu0
  %880 = vmatprep.mubr.f32.mxu0 0.0
  %881 = vmatmul.mubr.f32.gmra.mrb[0].mxu0 %v752
  %v882 = vpop.f32.mrb[0].mxu0
  %v883 = vadd.f32 0.0, %v882
  %v884 = vpop.f32.mrb[0].mxu0
  %885 = vmatprep.mubr.f32.mxu0 0.0
  %886 = vmatmul.mubr.f32.gmra.mrb[0].mxu0 %v753
  %v887 = vpop.f32.mrb[0].mxu0
  %v888 = vadd.f32 0.0, %v887
  %v889 = vpop.f32.mrb[0].mxu0
  %890 = vmatprep.mubr.f32.mxu0 0.0
  %891 = vmatmul.mubr.f32.gmra.mrb[0].mxu0 %v754
  %v892 = vpop.f32.mrb[0].mxu0
  %v893 = vadd.f32 0.0, %v892
  %v894 = vpop.f32.mrb[0].mxu0
  %895 = vmatprep.mubr.f32.mxu0 0.0
  %896 = vmatmul.mubr.f32.gmra.mrb[0].mxu0 %v755
  %v897 = vpop.f32.mrb[0].mxu0
  %v898 = vadd.f32 0.0, %v897
  %v899 = vpop.f32.mrb[0].mxu0
  %900 = vmatprep.mubr.f32.mxu0 0.0
  %901 = vmatmul.mubr.f32.gmra.mrb[0].mxu0 %v756
  %v902 = vpop.f32.mrb[0].mxu0
  %v903 = vadd.f32 0.0, %v902
  %v904 = vpop.f32.mrb[0].mxu0
  %905 = vmatprep.mubr.f32.mxu0 0.0
  %906 = vmatmul.mubr.f32.gmra.mrb[0].mxu0 %v757
  %v907 = vpop.f32.mrb[0].mxu0
  %v908 = vadd.f32 0.0, %v907
  %v909 = vpop.f32.mrb[0].mxu0
  %910 = vmatprep.mubr.f32.mxu0 0.0
  %911 = vmatmul.mubr.f32.gmra.mrb[0].mxu0 %v758
  %v912 = vpop.f32.mrb[0].mxu0
  %v913 = vadd.f32 0.0, %v912
  %v914 = vpop.f32.mrb[0].mxu0
  %915 = vmatprep.mubr.f32.mxu0 0.0
  %916 = vmatmul.mubr.f32.gmra.mrb[0].mxu0 %v759
  %v917 = vpop.f32.mrb[0].mxu0
  %v918 = vadd.f32 0.0, %v917
  %v919 = vpop.f32.mrb[0].mxu0
  %920 = vdwg.mxu0
  %v921 = vadd.f32 %v760, %v843
  %v922 = vadd.f32 %v761, %v848
  %v923 = vadd.f32 %v762, %v853
  %v924 = vadd.f32 %v763, %v858
  %v925 = vadd.f32 %v764, %v863
  %v926 = vadd.f32 %v765, %v868
  %v927 = vadd.f32 %v766, %v873
  %v928 = vadd.f32 %v767, %v878
  %v929 = vadd.f32 %v768, %v883
  %v930 = vadd.f32 %v769, %v888
  %v931 = vadd.f32 %v770, %v893
  %v932 = vadd.f32 %v771, %v898
  %v933 = vadd.f32 %v772, %v903
  %v934 = vadd.f32 %v773, %v908
  %v935 = vadd.f32 %v774, %v913
  %v936 = vadd.f32 %v775, %v918
  %937 = vst [vmem:[%s6] sm:$0xff] %v921
  %938 = vst [vmem:[%s6 + $0x8] sm:$0xff] %v922
  %939 = vst [vmem:[%s6 + $0x10] sm:$0xff] %v923
  %940 = vst [vmem:[%s6 + $0x18] sm:$0xff] %v924
  %941 = vst [vmem:[%s6 + $0x20] sm:$0xff] %v925
  %942 = vst [vmem:[%s6 + $0x28] sm:$0xff] %v926
  %943 = vst [vmem:[%s6 + $0x30] sm:$0xff] %v927
  %944 = vst [vmem:[%s6 + $0x38] sm:$0xff] %v928
  %945 = vst [vmem:[%s6 + $0x40] sm:$0xff] %v929
  %946 = vst [vmem:[%s6 + $0x48] sm:$0xff] %v930
  %947 = vst [vmem:[%s6 + $0x50] sm:$0xff] %v931
  %948 = vst [vmem:[%s6 + $0x58] sm:$0xff] %v932
  %949 = vst [vmem:[%s6 + $0x60] sm:$0xff] %v933
  %950 = vst [vmem:[%s6 + $0x68] sm:$0xff] %v934
  %951 = vst [vmem:[%s6 + $0x70] sm:$0xff] %v935
  %952 = vst [vmem:[%s6 + $0x78] sm:$0xff] %v936
  // Predicated region
  $region30: #{interaction_pp_block.4} parent=0 // pred_check
    _
  $region31: #{interaction_pp_block.4} parent=0 // pred_check_branch
    %954 = sbr.rel (0) target = $region33
  $region32: #{interaction_pp_block.4} parent=0 // pred_region
    _
  $region33: #{interaction_pp_block.4} parent=0 // pred_fallthru
    _
  // Predicated region
  $region34: #{interaction_pp_block.4} parent=0 // pred_check
    _
  $region35: #{interaction_pp_block.4} parent=0 // pred_check_branch
    %956 = sbr.rel (0) target = $region37
  $region36: #{interaction_pp_block.4} parent=0 // pred_region
    _
  $region37: #{interaction_pp_block.4} parent=0 // pred_fallthru
    _

// kernel: interaction_pp_block.5
$region0: #{interaction_pp_block.5}
  #allocation0 [shape = 'u32[]', space=smem, size = 0x4, offset = 0x4, fixed_abs, tag = 'smem constant byte address 0x4 - core index']
  #allocation1 [shape = 'u32[144,128]{1,0:T(1,128)}', space=vmem, size = 0x12000, scoped, tag = 'internal scratch']
  %s0 = inlined_call_operand.vmem [shape: f32[128,128], index: 0, kind: input, shape index: {}]
  %s1 = inlined_call_operand.vmem [shape: f32[128,128], index: 1, kind: input, shape index: {}]
  %s2 = inlined_call_operand.vmem [shape: f32[128,128], index: 2, kind: input, shape index: {}]
  %s3 = inlined_call_operand.vmem [shape: f32[128,128], index: 3, kind: input, shape index: {}]
  %s4 = inlined_call_operand.vmem [shape: f32[2,128,128], index: 4, kind: input, shape index: {}]
  %s5 = inlined_call_operand.vmem [shape: f32[2,1,128], index: 5, kind: input, shape index: {}]
  %s6 = inlined_call_operand.vmem [shape: f32[128,128], index: 6, kind: input, shape index: {}]
  %s7 = inlined_call_operand.vmem [shape: f32[1,128], index: 7, kind: input, shape index: {}]
  %s8 = inlined_call_operand.vmem [shape: f32[4,128,128], index: 8, kind: input, shape index: {}]
  %s9 = inlined_call_operand.vmem [shape: f32[4,1,128], index: 9, kind: input, shape index: {}]
  %s10 = inlined_call_operand.vmem [shape: f32[128,128], index: 10, kind: output, shape index: {}]
  %s11 = sld [smem:[#allocation0]]
  $region50: #{interaction_pp_block.5} parent=0
    _
  %s13 = ssub.s32 1, %s11
  %s14 = scalar_select 0, %s13, %s11
  // Predicated region
  $region2: #{interaction_pp_block.5} parent=0 // pred_check
    _
  $region3: #{interaction_pp_block.5} parent=0 // pred_check_branch
    %16 = sbr.rel (0) target = $region5
  $region4: #{interaction_pp_block.5} parent=0 // pred_region
    _
  $region5: #{interaction_pp_block.5} parent=0 // pred_fallthru
    _
  // Predicated region
  $region6: #{interaction_pp_block.5} parent=0 // pred_check
    _
  $region7: #{interaction_pp_block.5} parent=0 // pred_check_branch
    %18 = sbr.rel (0) target = $region9
  $region8: #{interaction_pp_block.5} parent=0 // pred_region
    _
  $region9: #{interaction_pp_block.5} parent=0 // pred_fallthru
    _
  // Predicated region
  $region10: #{interaction_pp_block.5} parent=0 // pred_check
    _
  $region11: #{interaction_pp_block.5} parent=0 // pred_check_branch
    %20 = sbr.rel (0) target = $region13
  $region12: #{interaction_pp_block.5} parent=0 // pred_region
    _
  $region13: #{interaction_pp_block.5} parent=0 // pred_fallthru
    _
  // Predicated region
  $region14: #{interaction_pp_block.5} parent=0 // pred_check
    _
  $region15: #{interaction_pp_block.5} parent=0 // pred_check_branch
    %22 = sbr.rel (0) target = $region17
  $region16: #{interaction_pp_block.5} parent=0 // pred_region
    _
  $region17: #{interaction_pp_block.5} parent=0 // pred_fallthru
    _
  // Predicated region
  $region18: #{interaction_pp_block.5} parent=0 // pred_check
    _
  $region19: #{interaction_pp_block.5} parent=0 // pred_check_branch
    %24 = sbr.rel (0) target = $region21
  $region20: #{interaction_pp_block.5} parent=0 // pred_region
    _
  $region21: #{interaction_pp_block.5} parent=0 // pred_fallthru
    _
  // Predicated region
  $region22: #{interaction_pp_block.5} parent=0 // pred_check
    _
  $region23: #{interaction_pp_block.5} parent=0 // pred_check_branch
    %26 = sbr.rel (0) target = $region25
  $region24: #{interaction_pp_block.5} parent=0 // pred_region
    _
  $region25: #{interaction_pp_block.5} parent=0 // pred_fallthru
    _
  // Predicated region
  $region26: #{interaction_pp_block.5} parent=0 // pred_check
    _
  $region27: #{interaction_pp_block.5} parent=0 // pred_check_branch
    %28 = sbr.rel (0) target = $region29
  $region28: #{interaction_pp_block.5} parent=0 // pred_region
    _
  $region29: #{interaction_pp_block.5} parent=0 // pred_fallthru
    _
  // Predicated region
  $region30: #{interaction_pp_block.5} parent=0 // pred_check
    _
  $region31: #{interaction_pp_block.5} parent=0 // pred_check_branch
    %30 = sbr.rel (0) target = $region33
  $region32: #{interaction_pp_block.5} parent=0 // pred_region
    _
  $region33: #{interaction_pp_block.5} parent=0 // pred_fallthru
    _
  // Predicated region
  $region34: #{interaction_pp_block.5} parent=0 // pred_check
    _
  $region35: #{interaction_pp_block.5} parent=0 // pred_check_branch
    %32 = sbr.rel (0) target = $region37
  $region36: #{interaction_pp_block.5} parent=0 // pred_region
    _
  $region37: #{interaction_pp_block.5} parent=0 // pred_fallthru
    _
  // Predicated region
  $region38: #{interaction_pp_block.5} parent=0 // pred_check
    _
  $region39: #{interaction_pp_block.5} parent=0 // pred_check_branch
    %34 = sbr.rel (0) target = $region41
  $region40: #{interaction_pp_block.5} parent=0 // pred_region
    _
  $region41: #{interaction_pp_block.5} parent=0 // pred_fallthru
    _
  %v35 = vld [vmem:[%s0] sm:$0xff]
  %v36 = vld [vmem:[%s0 + $0x8] sm:$0xff]
  %v37 = vld [vmem:[%s0 + $0x10] sm:$0xff]
  %v38 = vld [vmem:[%s0 + $0x18] sm:$0xff]
  %v39 = vld [vmem:[%s0 + $0x20] sm:$0xff]
  %v40 = vld [vmem:[%s0 + $0x28] sm:$0xff]
  %v41 = vld [vmem:[%s0 + $0x30] sm:$0xff]
  %v42 = vld [vmem:[%s0 + $0x38] sm:$0xff]
  %v43 = vld [vmem:[%s0 + $0x40] sm:$0xff]
  %v44 = vld [vmem:[%s0 + $0x48] sm:$0xff]
  %v45 = vld [vmem:[%s0 + $0x50] sm:$0xff]
  %v46 = vld [vmem:[%s0 + $0x58] sm:$0xff]
  %v47 = vld [vmem:[%s0 + $0x60] sm:$0xff]
  %v48 = vld [vmem:[%s0 + $0x68] sm:$0xff]
  %v49 = vld [vmem:[%s0 + $0x70] sm:$0xff]
  %v50 = vld [vmem:[%s0 + $0x78] sm:$0xff]
  %v51 = vld [vmem:[%s2] sm:$0xff]
  %v52 = vld [vmem:[%s2 + $0x8] sm:$0xff]
  %v53 = vld [vmem:[%s2 + $0x10] sm:$0xff]
  %v54 = vld [vmem:[%s2 + $0x18] sm:$0xff]
  %v55 = vld [vmem:[%s2 + $0x20] sm:$0xff]
  %v56 = vld [vmem:[%s2 + $0x28] sm:$0xff]
  %v57 = vld [vmem:[%s2 + $0x30] sm:$0xff]
  %v58 = vld [vmem:[%s2 + $0x38] sm:$0xff]
  %v59 = vld [vmem:[%s2 + $0x40] sm:$0xff]
  %v60 = vld [vmem:[%s2 + $0x48] sm:$0xff]
  %v61 = vld [vmem:[%s2 + $0x50] sm:$0xff]
  %v62 = vld [vmem:[%s2 + $0x58] sm:$0xff]
  %v63 = vld [vmem:[%s2 + $0x60] sm:$0xff]
  %v64 = vld [vmem:[%s2 + $0x68] sm:$0xff]
  %v65 = vld [vmem:[%s2 + $0x70] sm:$0xff]
  %v66 = vld [vmem:[%s2 + $0x78] sm:$0xff]
  %v67 = vld [vmem:[%s3] sm:$0xff]
  %v68 = vld [vmem:[%s3 + $0x8] sm:$0xff]
  %v69 = vld [vmem:[%s3 + $0x10] sm:$0xff]
  %v70 = vld [vmem:[%s3 + $0x18] sm:$0xff]
  %v71 = vld [vmem:[%s3 + $0x20] sm:$0xff]
  %v72 = vld [vmem:[%s3 + $0x28] sm:$0xff]
  %v73 = vld [vmem:[%s3 + $0x30] sm:$0xff]
  %v74 = vld [vmem:[%s3 + $0x38] sm:$0xff]
  %v75 = vld [vmem:[%s3 + $0x40] sm:$0xff]
  %v76 = vld [vmem:[%s3 + $0x48] sm:$0xff]
  %v77 = vld [vmem:[%s3 + $0x50] sm:$0xff]
  %v78 = vld [vmem:[%s3 + $0x58] sm:$0xff]
  %v79 = vld [vmem:[%s3 + $0x60] sm:$0xff]
  %v80 = vld [vmem:[%s3 + $0x68] sm:$0xff]
  %v81 = vld [vmem:[%s3 + $0x70] sm:$0xff]
  %v82 = vld [vmem:[%s3 + $0x78] sm:$0xff]
  %83 = vmatprep.subr.mxu0 0.0
  %84 = vmatpush1.msra.mxu0 %v67
  %85 = vmatprep.subr.mxu0 0.0
  %86 = vmatpush1.msra.mxu0 %v68
  %87 = vmatprep.subr.mxu0 0.0
  %88 = vmatpush1.msra.mxu0 %v69
  %89 = vmatprep.subr.mxu0 0.0
  %90 = vmatpush1.msra.mxu0 %v70
  %91 = vmatprep.subr.mxu0 0.0
  %92 = vmatpush1.msra.mxu0 %v71
  %93 = vmatprep.subr.mxu0 0.0
  %94 = vmatpush1.msra.mxu0 %v72
  %95 = vmatprep.subr.mxu0 0.0
  %96 = vmatpush1.msra.mxu0 %v73
  %97 = vmatprep.subr.mxu0 0.0
  %98 = vmatpush1.msra.mxu0 %v74
  %99 = vmatprep.subr.mxu0 0.0
  %100 = vmatpush1.msra.mxu0 %v75
  %101 = vmatprep.subr.mxu0 0.0
  %102 = vmatpush1.msra.mxu0 %v76
  %103 = vmatprep.subr.mxu0 0.0
  %104 = vmatpush1.msra.mxu0 %v77
  %105 = vmatprep.subr.mxu0 0.0
  %106 = vmatpush1.msra.mxu0 %v78
  %107 = vmatprep.subr.mxu0 0.0
  %108 = vmatpush1.msra.mxu0 %v79
  %109 = vmatprep.subr.mxu0 0.0
  %110 = vmatpush1.msra.mxu0 %v80
  %111 = vmatprep.subr.mxu0 0.0
  %112 = vmatpush1.msra.mxu0 %v81
  %113 = vmatprep.subr.mxu0 0.0
  %114 = vmatpush1.msra.mxu0 %v82
  %115 = vmatprep.subr.mxu0 0.0
  %116 = vmatpush1.msra.mxu0 0.0
  %117 = vmatprep.subr.mxu0 0.0
  %118 = vmatpush1.msra.mxu0 0.0
  %119 = vmatprep.subr.mxu0 0.0
  %120 = vmatpush1.msra.mxu0 0.0
  %121 = vmatprep.subr.mxu0 0.0
  %122 = vmatpush1.msra.mxu0 0.0
  %123 = vmatprep.subr.mxu0 0.0
  %124 = vmatpush1.msra.mxu0 0.0
  %125 = vmatprep.subr.mxu0 0.0
  %126 = vmatpush1.msra.mxu0 0.0
  %127 = vmatprep.subr.mxu0 0.0
  %128 = vmatpush1.msra.mxu0 0.0
  %129 = vmatprep.subr.mxu0 0.0
  %130 = vmatpush1.msra.mxu0 0.0
  %131 = vmatprep.subr.mxu0 0.0
  %132 = vmatpush1.msra.mxu0 0.0
  %133 = vmatprep.subr.mxu0 0.0
  %134 = vmatpush1.msra.mxu0 0.0
  %135 = vmatprep.subr.mxu0 0.0
  %136 = vmatpush1.msra.mxu0 0.0
  %137 = vmatprep.subr.mxu0 0.0
  %138 = vmatpush1.msra.mxu0 0.0
  %139 = vmatprep.subr.mxu0 0.0
  %140 = vmatpush1.msra.mxu0 0.0
  %141 = vmatprep.subr.mxu0 0.0
  %142 = vmatpush1.msra.mxu0 0.0
  %143 = vmatprep.subr.mxu0 0.0
  %144 = vmatpush1.msra.mxu0 0.0
  %145 = vmatprep.subr.mxu0 0.0
  %146 = vmatpush1.msra.mxu0 0.0
  %147 = vmatprep.mubr.f32.mxu0 0.0
  %148 = vmatmul.mubr.f32.gmra.mrb[0].mxu0 %v51
  %v149 = vpop.f32.mrb[0].mxu0
  %v150 = vadd.f32 0.0, %v149
  %v151 = vpop.f32.mrb[0].mxu0
  %152 = vmatprep.mubr.f32.mxu0 0.0
  %153 = vmatmul.mubr.f32.gmra.mrb[0].mxu0 %v52
  %v154 = vpop.f32.mrb[0].mxu0
  %v155 = vadd.f32 0.0, %v154
  %v156 = vpop.f32.mrb[0].mxu0
  %157 = vmatprep.mubr.f32.mxu0 0.0
  %158 = vmatmul.mubr.f32.gmra.mrb[0].mxu0 %v53
  %v159 = vpop.f32.mrb[0].mxu0
  %v160 = vadd.f32 0.0, %v159
  %v161 = vpop.f32.mrb[0].mxu0
  %162 = vmatprep.mubr.f32.mxu0 0.0
  %163 = vmatmul.mubr.f32.gmra.mrb[0].mxu0 %v54
  %v164 = vpop.f32.mrb[0].mxu0
  %v165 = vadd.f32 0.0, %v164
  %v166 = vpop.f32.mrb[0].mxu0
  %167 = vmatprep.mubr.f32.mxu0 0.0
  %168 = vmatmul.mubr.f32.gmra.mrb[0].mxu0 %v55
  %v169 = vpop.f32.mrb[0].mxu0
  %v170 = vadd.f32 0.0, %v169
  %v171 = vpop.f32.mrb[0].mxu0
  %172 = vmatprep.mubr.f32.mxu0 0.0
  %173 = vmatmul.mubr.f32.gmra.mrb[0].mxu0 %v56
  %v174 = vpop.f32.mrb[0].mxu0
  %v175 = vadd.f32 0.0, %v174
  %v176 = vpop.f32.mrb[0].mxu0
  %177 = vmatprep.mubr.f32.mxu0 0.0
  %178 = vmatmul.mubr.f32.gmra.mrb[0].mxu0 %v57
  %v179 = vpop.f32.mrb[0].mxu0
  %v180 = vadd.f32 0.0, %v179
  %v181 = vpop.f32.mrb[0].mxu0
  %182 = vmatprep.mubr.f32.mxu0 0.0
  %183 = vmatmul.mubr.f32.gmra.mrb[0].mxu0 %v58
  %v184 = vpop.f32.mrb[0].mxu0
  %v185 = vadd.f32 0.0, %v184
  %v186 = vpop.f32.mrb[0].mxu0
  %187 = vmatprep.mubr.f32.mxu0 0.0
  %188 = vmatmul.mubr.f32.gmra.mrb[0].mxu0 %v59
  %v189 = vpop.f32.mrb[0].mxu0
  %v190 = vadd.f32 0.0, %v189
  %v191 = vpop.f32.mrb[0].mxu0
  %192 = vmatprep.mubr.f32.mxu0 0.0
  %193 = vmatmul.mubr.f32.gmra.mrb[0].mxu0 %v60
  %v194 = vpop.f32.mrb[0].mxu0
  %v195 = vadd.f32 0.0, %v194
  %v196 = vpop.f32.mrb[0].mxu0
  %197 = vmatprep.mubr.f32.mxu0 0.0
  %198 = vmatmul.mubr.f32.gmra.mrb[0].mxu0 %v61
  %v199 = vpop.f32.mrb[0].mxu0
  %v200 = vadd.f32 0.0, %v199
  %v201 = vpop.f32.mrb[0].mxu0
  %202 = vmatprep.mubr.f32.mxu0 0.0
  %203 = vmatmul.mubr.f32.gmra.mrb[0].mxu0 %v62
  %v204 = vpop.f32.mrb[0].mxu0
  %v205 = vadd.f32 0.0, %v204
  %v206 = vpop.f32.mrb[0].mxu0
  %207 = vmatprep.mubr.f32.mxu0 0.0
  %208 = vmatmul.mubr.f32.gmra.mrb[0].mxu0 %v63
  %v209 = vpop.f32.mrb[0].mxu0
  %v210 = vadd.f32 0.0, %v209
  %v211 = vpop.f32.mrb[0].mxu0
  %212 = vmatprep.mubr.f32.mxu0 0.0
  %213 = vmatmul.mubr.f32.gmra.mrb[0].mxu0 %v64
  %v214 = vpop.f32.mrb[0].mxu0
  %v215 = vadd.f32 0.0, %v214
  %v216 = vpop.f32.mrb[0].mxu0
  %217 = vmatprep.mubr.f32.mxu0 0.0
  %218 = vmatmul.mubr.f32.gmra.mrb[0].mxu0 %v65
  %v219 = vpop.f32.mrb[0].mxu0
  %v220 = vadd.f32 0.0, %v219
  %v221 = vpop.f32.mrb[0].mxu0
  %222 = vmatprep.mubr.f32.mxu0 0.0
  %223 = vmatmul.mubr.f32.gmra.mrb[0].mxu0 %v66
  %v224 = vpop.f32.mrb[0].mxu0
  %v225 = vadd.f32 0.0, %v224
  %v226 = vpop.f32.mrb[0].mxu0
  %227 = vdwg.mxu0
  %v228 = vmul.f32 %v150, 0.5
  %v229 = vmul.f32 %v155, 0.5
  %v230 = vmul.f32 %v160, 0.5
  %v231 = vmul.f32 %v165, 0.5
  %v232 = vmul.f32 %v170, 0.5
  %v233 = vmul.f32 %v175, 0.5
  %v234 = vmul.f32 %v180, 0.5
  %v235 = vmul.f32 %v185, 0.5
  %v236 = vmul.f32 %v190, 0.5
  %v237 = vmul.f32 %v195, 0.5
  %v238 = vmul.f32 %v200, 0.5
  %v239 = vmul.f32 %v205, 0.5
  %v240 = vmul.f32 %v210, 0.5
  %v241 = vmul.f32 %v215, 0.5
  %v242 = vmul.f32 %v220, 0.5
  %v243 = vmul.f32 %v225, 0.5
  %v244 = vtanh.pop %v228
  %v245 = vtanh.pop %v229
  %v246 = vtanh.pop %v230
  %v247 = vtanh.pop %v231
  %v248 = vtanh.pop %v232
  %v249 = vtanh.pop %v233
  %v250 = vtanh.pop %v234
  %v251 = vtanh.pop %v235
  %v252 = vtanh.pop %v236
  %v253 = vtanh.pop %v237
  %v254 = vtanh.pop %v238
  %v255 = vtanh.pop %v239
  %v256 = vtanh.pop %v240
  %v257 = vtanh.pop %v241
  %v258 = vtanh.pop %v242
  %v259 = vtanh.pop %v243
  %v260 = vmul.f32 %v244, 0.5
  %v261 = vmul.f32 %v245, 0.5
  %v262 = vmul.f32 %v246, 0.5
  %v263 = vmul.f32 %v247, 0.5
  %v264 = vmul.f32 %v248, 0.5
  %v265 = vmul.f32 %v249, 0.5
  %v266 = vmul.f32 %v250, 0.5
  %v267 = vmul.f32 %v251, 0.5
  %v268 = vmul.f32 %v252, 0.5
  %v269 = vmul.f32 %v253, 0.5
  %v270 = vmul.f32 %v254, 0.5
  %v271 = vmul.f32 %v255, 0.5
  %v272 = vmul.f32 %v256, 0.5
  %v273 = vmul.f32 %v257, 0.5
  %v274 = vmul.f32 %v258, 0.5
  %v275 = vmul.f32 %v259, 0.5
  %v276 = vadd.f32 %v260, 0.5
  %v277 = vadd.f32 %v261, 0.5
  %v278 = vadd.f32 %v262, 0.5
  %v279 = vadd.f32 %v263, 0.5
  %v280 = vadd.f32 %v264, 0.5
  %v281 = vadd.f32 %v265, 0.5
  %v282 = vadd.f32 %v266, 0.5
  %v283 = vadd.f32 %v267, 0.5
  %v284 = vadd.f32 %v268, 0.5
  %v285 = vadd.f32 %v269, 0.5
  %v286 = vadd.f32 %v270, 0.5
  %v287 = vadd.f32 %v271, 0.5
  %v288 = vadd.f32 %v272, 0.5
  %v289 = vadd.f32 %v273, 0.5
  %v290 = vadd.f32 %v274, 0.5
  %v291 = vadd.f32 %v275, 0.5
  %v292 = vmul.f32 %v150, %v276
  %v293 = vmul.f32 %v155, %v277
  %v294 = vmul.f32 %v160, %v278
  %v295 = vmul.f32 %v165, %v279
  %v296 = vmul.f32 %v170, %v280
  %v297 = vmul.f32 %v175, %v281
  %v298 = vmul.f32 %v180, %v282
  %v299 = vmul.f32 %v185, %v283
  %v300 = vmul.f32 %v190, %v284
  %v301 = vmul.f32 %v195, %v285
  %v302 = vmul.f32 %v200, %v286
  %v303 = vmul.f32 %v205, %v287
  %v304 = vmul.f32 %v210, %v288
  %v305 = vmul.f32 %v215, %v289
  %v306 = vmul.f32 %v220, %v290
  %v307 = vmul.f32 %v225, %v291
  %v308 = vld [vmem:[%s1] sm:$0xff]
  %v309 = vld [vmem:[%s1 + $0x8] sm:$0xff]
  %v310 = vld [vmem:[%s1 + $0x10] sm:$0xff]
  %v311 = vld [vmem:[%s1 + $0x18] sm:$0xff]
  %v312 = vld [vmem:[%s1 + $0x20] sm:$0xff]
  %v313 = vld [vmem:[%s1 + $0x28] sm:$0xff]
  %v314 = vld [vmem:[%s1 + $0x30] sm:$0xff]
  %v315 = vld [vmem:[%s1 + $0x38] sm:$0xff]
  %v316 = vld [vmem:[%s1 + $0x40] sm:$0xff]
  %v317 = vld [vmem:[%s1 + $0x48] sm:$0xff]
  %v318 = vld [vmem:[%s1 + $0x50] sm:$0xff]
  %v319 = vld [vmem:[%s1 + $0x58] sm:$0xff]
  %v320 = vld [vmem:[%s1 + $0x60] sm:$0xff]
  %v321 = vld [vmem:[%s1 + $0x68] sm:$0xff]
  %v322 = vld [vmem:[%s1 + $0x70] sm:$0xff]
  %v323 = vld [vmem:[%s1 + $0x78] sm:$0xff]
  %v324 = vadd.f32 %v308, %v292
  %v325 = vadd.f32 %v309, %v293
  %v326 = vadd.f32 %v310, %v294
  %v327 = vadd.f32 %v311, %v295
  %v328 = vadd.f32 %v312, %v296
  %v329 = vadd.f32 %v313, %v297
  %v330 = vadd.f32 %v314, %v298
  %v331 = vadd.f32 %v315, %v299
  %v332 = vadd.f32 %v316, %v300
  %v333 = vadd.f32 %v317, %v301
  %v334 = vadd.f32 %v318, %v302
  %v335 = vadd.f32 %v319, %v303
  %v336 = vadd.f32 %v320, %v304
  %v337 = vadd.f32 %v321, %v305
  %v338 = vadd.f32 %v322, %v306
  %v339 = vadd.f32 %v323, %v307
  %v340 = vld [vmem:[%s4] sm:$0xff]
  %v341 = vld [vmem:[%s4 + $0x8] sm:$0xff]
  %v342 = vld [vmem:[%s4 + $0x10] sm:$0xff]
  %v343 = vld [vmem:[%s4 + $0x18] sm:$0xff]
  %v344 = vld [vmem:[%s4 + $0x20] sm:$0xff]
  %v345 = vld [vmem:[%s4 + $0x28] sm:$0xff]
  %v346 = vld [vmem:[%s4 + $0x30] sm:$0xff]
  %v347 = vld [vmem:[%s4 + $0x38] sm:$0xff]
  %v348 = vld [vmem:[%s4 + $0x40] sm:$0xff]
  %v349 = vld [vmem:[%s4 + $0x48] sm:$0xff]
  %v350 = vld [vmem:[%s4 + $0x50] sm:$0xff]
  %v351 = vld [vmem:[%s4 + $0x58] sm:$0xff]
  %v352 = vld [vmem:[%s4 + $0x60] sm:$0xff]
  %v353 = vld [vmem:[%s4 + $0x68] sm:$0xff]
  %v354 = vld [vmem:[%s4 + $0x70] sm:$0xff]
  %v355 = vld [vmem:[%s4 + $0x78] sm:$0xff]
  %v356 = vld [vmem:[%s5] sm:$0x1]
  %v358 = vlaneseq
  %v359 = vshrl.u32 %v358, 7
  %v360 = vsub.s32 0, %v359
  %v361 = vrot.slane %v356, %v360
  %363 = vmatprep.subr.mxu0 0.0
  %364 = vmatpush1.msra.mxu0 %v340
  %365 = vmatprep.subr.mxu0 0.0
  %366 = vmatpush1.msra.mxu0 %v341
  %367 = vmatprep.subr.mxu0 0.0
  %368 = vmatpush1.msra.mxu0 %v342
  %369 = vmatprep.subr.mxu0 0.0
  %370 = vmatpush1.msra.mxu0 %v343
  %371 = vmatprep.subr.mxu0 0.0
  %372 = vmatpush1.msra.mxu0 %v344
  %373 = vmatprep.subr.mxu0 0.0
  %374 = vmatpush1.msra.mxu0 %v345
  %375 = vmatprep.subr.mxu0 0.0
  %376 = vmatpush1.msra.mxu0 %v346
  %377 = vmatprep.subr.mxu0 0.0
  %378 = vmatpush1.msra.mxu0 %v347
  %379 = vmatprep.subr.mxu0 0.0
  %380 = vmatpush1.msra.mxu0 %v348
  %381 = vmatprep.subr.mxu0 0.0
  %382 = vmatpush1.msra.mxu0 %v349
  %383 = vmatprep.subr.mxu0 0.0
  %384 = vmatpush1.msra.mxu0 %v350
  %385 = vmatprep.subr.mxu0 0.0
  %386 = vmatpush1.msra.mxu0 %v351
  %387 = vmatprep.subr.mxu0 0.0
  %388 = vmatpush1.msra.mxu0 %v352
  %389 = vmatprep.subr.mxu0 0.0
  %390 = vmatpush1.msra.mxu0 %v353
  %391 = vmatprep.subr.mxu0 0.0
  %392 = vmatpush1.msra.mxu0 %v354
  %393 = vmatprep.subr.mxu0 0.0
  %394 = vmatpush1.msra.mxu0 %v355
  %395 = vmatprep.subr.mxu0 0.0
  %396 = vmatpush1.msra.mxu0 0.0
  %397 = vmatprep.subr.mxu0 0.0
  %398 = vmatpush1.msra.mxu0 0.0
  %399 = vmatprep.subr.mxu0 0.0
  %400 = vmatpush1.msra.mxu0 0.0
  %401 = vmatprep.subr.mxu0 0.0
  %402 = vmatpush1.msra.mxu0 0.0
  %403 = vmatprep.subr.mxu0 0.0
  %404 = vmatpush1.msra.mxu0 0.0
  %405 = vmatprep.subr.mxu0 0.0
  %406 = vmatpush1.msra.mxu0 0.0
  %407 = vmatprep.subr.mxu0 0.0
  %408 = vmatpush1.msra.mxu0 0.0
  %409 = vmatprep.subr.mxu0 0.0
  %410 = vmatpush1.msra.mxu0 0.0
  %411 = vmatprep.subr.mxu0 0.0
  %412 = vmatpush1.msra.mxu0 0.0
  %413 = vmatprep.subr.mxu0 0.0
  %414 = vmatpush1.msra.mxu0 0.0
  %415 = vmatprep.subr.mxu0 0.0
  %416 = vmatpush1.msra.mxu0 0.0
  %417 = vmatprep.subr.mxu0 0.0
  %418 = vmatpush1.msra.mxu0 0.0
  %419 = vmatprep.subr.mxu0 0.0
  %420 = vmatpush1.msra.mxu0 0.0
  %421 = vmatprep.subr.mxu0 0.0
  %422 = vmatpush1.msra.mxu0 0.0
  %423 = vmatprep.subr.mxu0 0.0
  %424 = vmatpush1.msra.mxu0 0.0
  %425 = vmatprep.subr.mxu0 0.0
  %426 = vmatpush1.msra.mxu0 0.0
  %427 = vmatprep.mubr.f32.mxu0 0.0
  %428 = vmatmul.mubr.f32.gmra.mrb[0].mxu0 %v324
  %v429 = vpop.f32.mrb[0].mxu0
  %v430 = vadd.f32 %v361, %v429
  %v431 = vpop.f32.mrb[0].mxu0
  %432 = vmatprep.mubr.f32.mxu0 0.0
  %433 = vmatmul.mubr.f32.gmra.mrb[0].mxu0 %v325
  %v434 = vpop.f32.mrb[0].mxu0
  %v435 = vadd.f32 %v361, %v434
  %v436 = vpop.f32.mrb[0].mxu0
  %437 = vmatprep.mubr.f32.mxu0 0.0
  %438 = vmatmul.mubr.f32.gmra.mrb[0].mxu0 %v326
  %v439 = vpop.f32.mrb[0].mxu0
  %v440 = vadd.f32 %v361, %v439
  %v441 = vpop.f32.mrb[0].mxu0
  %442 = vmatprep.mubr.f32.mxu0 0.0
  %443 = vmatmul.mubr.f32.gmra.mrb[0].mxu0 %v327
  %v444 = vpop.f32.mrb[0].mxu0
  %v445 = vadd.f32 %v361, %v444
  %v446 = vpop.f32.mrb[0].mxu0
  %447 = vmatprep.mubr.f32.mxu0 0.0
  %448 = vmatmul.mubr.f32.gmra.mrb[0].mxu0 %v328
  %v449 = vpop.f32.mrb[0].mxu0
  %v450 = vadd.f32 %v361, %v449
  %v451 = vpop.f32.mrb[0].mxu0
  %452 = vmatprep.mubr.f32.mxu0 0.0
  %453 = vmatmul.mubr.f32.gmra.mrb[0].mxu0 %v329
  %v454 = vpop.f32.mrb[0].mxu0
  %v455 = vadd.f32 %v361, %v454
  %v456 = vpop.f32.mrb[0].mxu0
  %457 = vmatprep.mubr.f32.mxu0 0.0
  %458 = vmatmul.mubr.f32.gmra.mrb[0].mxu0 %v330
  %v459 = vpop.f32.mrb[0].mxu0
  %v460 = vadd.f32 %v361, %v459
  %v461 = vpop.f32.mrb[0].mxu0
  %462 = vmatprep.mubr.f32.mxu0 0.0
  %463 = vmatmul.mubr.f32.gmra.mrb[0].mxu0 %v331
  %v464 = vpop.f32.mrb[0].mxu0
  %v465 = vadd.f32 %v361, %v464
  %v466 = vpop.f32.mrb[0].mxu0
  %467 = vmatprep.mubr.f32.mxu0 0.0
  %468 = vmatmul.mubr.f32.gmra.mrb[0].mxu0 %v332
  %v469 = vpop.f32.mrb[0].mxu0
  %v470 = vadd.f32 %v361, %v469
  %v471 = vpop.f32.mrb[0].mxu0
  %472 = vmatprep.mubr.f32.mxu0 0.0
  %473 = vmatmul.mubr.f32.gmra.mrb[0].mxu0 %v333
  %v474 = vpop.f32.mrb[0].mxu0
  %v475 = vadd.f32 %v361, %v474
  %v476 = vpop.f32.mrb[0].mxu0
  %477 = vmatprep.mubr.f32.mxu0 0.0
  %478 = vmatmul.mubr.f32.gmra.mrb[0].mxu0 %v334
  %v479 = vpop.f32.mrb[0].mxu0
  %v480 = vadd.f32 %v361, %v479
  %v481 = vpop.f32.mrb[0].mxu0
  %482 = vmatprep.mubr.f32.mxu0 0.0
  %483 = vmatmul.mubr.f32.gmra.mrb[0].mxu0 %v335
  %v484 = vpop.f32.mrb[0].mxu0
  %v485 = vadd.f32 %v361, %v484
  %v486 = vpop.f32.mrb[0].mxu0
  %487 = vmatprep.mubr.f32.mxu0 0.0
  %488 = vmatmul.mubr.f32.gmra.mrb[0].mxu0 %v336
  %v489 = vpop.f32.mrb[0].mxu0
  %v490 = vadd.f32 %v361, %v489
  %v491 = vpop.f32.mrb[0].mxu0
  %492 = vmatprep.mubr.f32.mxu0 0.0
  %493 = vmatmul.mubr.f32.gmra.mrb[0].mxu0 %v337
  %v494 = vpop.f32.mrb[0].mxu0
  %v495 = vadd.f32 %v361, %v494
  %v496 = vpop.f32.mrb[0].mxu0
  %497 = vmatprep.mubr.f32.mxu0 0.0
  %498 = vmatmul.mubr.f32.gmra.mrb[0].mxu0 %v338
  %v499 = vpop.f32.mrb[0].mxu0
  %v500 = vadd.f32 %v361, %v499
  %v501 = vpop.f32.mrb[0].mxu0
  %502 = vmatprep.mubr.f32.mxu0 0.0
  %503 = vmatmul.mubr.f32.gmra.mrb[0].mxu0 %v339
  %v504 = vpop.f32.mrb[0].mxu0
  %v505 = vadd.f32 %v361, %v504
  %v506 = vpop.f32.mrb[0].mxu0
  %507 = vdwg.mxu0
  %v508 = vmul.f32 %v430, 0.5
  %v509 = vmul.f32 %v435, 0.5
  %v510 = vmul.f32 %v440, 0.5
  %v511 = vmul.f32 %v445, 0.5
  %v512 = vmul.f32 %v450, 0.5
  %v513 = vmul.f32 %v455, 0.5
  %v514 = vmul.f32 %v460, 0.5
  %v515 = vmul.f32 %v465, 0.5
  %v516 = vmul.f32 %v470, 0.5
  %v517 = vmul.f32 %v475, 0.5
  %v518 = vmul.f32 %v480, 0.5
  %v519 = vmul.f32 %v485, 0.5
  %v520 = vmul.f32 %v490, 0.5
  %v521 = vmul.f32 %v495, 0.5
  %v522 = vmul.f32 %v500, 0.5
  %v523 = vmul.f32 %v505, 0.5
  %v524 = vtanh.pop %v508
  %v525 = vtanh.pop %v509
  %v526 = vtanh.pop %v510
  %v527 = vtanh.pop %v511
  %v528 = vtanh.pop %v512
  %v529 = vtanh.pop %v513
  %v530 = vtanh.pop %v514
  %v531 = vtanh.pop %v515
  %v532 = vtanh.pop %v516
  %v533 = vtanh.pop %v517
  %v534 = vtanh.pop %v518
  %v535 = vtanh.pop %v519
  %v536 = vtanh.pop %v520
  %v537 = vtanh.pop %v521
  %v538 = vtanh.pop %v522
  %v539 = vtanh.pop %v523
  %v540 = vmul.f32 %v524, 0.5
  %v541 = vmul.f32 %v525, 0.5
  %v542 = vmul.f32 %v526, 0.5
  %v543 = vmul.f32 %v527, 0.5
  %v544 = vmul.f32 %v528, 0.5
  %v545 = vmul.f32 %v529, 0.5
  %v546 = vmul.f32 %v530, 0.5
  %v547 = vmul.f32 %v531, 0.5
  %v548 = vmul.f32 %v532, 0.5
  %v549 = vmul.f32 %v533, 0.5
  %v550 = vmul.f32 %v534, 0.5
  %v551 = vmul.f32 %v535, 0.5
  %v552 = vmul.f32 %v536, 0.5
  %v553 = vmul.f32 %v537, 0.5
  %v554 = vmul.f32 %v538, 0.5
  %v555 = vmul.f32 %v539, 0.5
  %v556 = vadd.f32 %v540, 0.5
  %v557 = vadd.f32 %v541, 0.5
  %v558 = vadd.f32 %v542, 0.5
  %v559 = vadd.f32 %v543, 0.5
  %v560 = vadd.f32 %v544, 0.5
  %v561 = vadd.f32 %v545, 0.5
  %v562 = vadd.f32 %v546, 0.5
  %v563 = vadd.f32 %v547, 0.5
  %v564 = vadd.f32 %v548, 0.5
  %v565 = vadd.f32 %v549, 0.5
  %v566 = vadd.f32 %v550, 0.5
  %v567 = vadd.f32 %v551, 0.5
  %v568 = vadd.f32 %v552, 0.5
  %v569 = vadd.f32 %v553, 0.5
  %v570 = vadd.f32 %v554, 0.5
  %v571 = vadd.f32 %v555, 0.5
  %v572 = vmul.f32 %v430, %v556
  %v573 = vmul.f32 %v435, %v557
  %v574 = vmul.f32 %v440, %v558
  %v575 = vmul.f32 %v445, %v559
  %v576 = vmul.f32 %v450, %v560
  %v577 = vmul.f32 %v455, %v561
  %v578 = vmul.f32 %v460, %v562
  %v579 = vmul.f32 %v465, %v563
  %v580 = vmul.f32 %v470, %v564
  %v581 = vmul.f32 %v475, %v565
  %v582 = vmul.f32 %v480, %v566
  %v583 = vmul.f32 %v485, %v567
  %v584 = vmul.f32 %v490, %v568
  %v585 = vmul.f32 %v495, %v569
  %v586 = vmul.f32 %v500, %v570
  %v587 = vmul.f32 %v505, %v571
  %s588 = scalar_lea.vmem %s4, 128
  %v589 = vld [vmem:[%s588] sm:$0xff]
  %v590 = vld [vmem:[%s588 + $0x8] sm:$0xff]
  %v591 = vld [vmem:[%s588 + $0x10] sm:$0xff]
  %v592 = vld [vmem:[%s588 + $0x18] sm:$0xff]
  %v593 = vld [vmem:[%s588 + $0x20] sm:$0xff]
  %v594 = vld [vmem:[%s588 + $0x28] sm:$0xff]
  %v595 = vld [vmem:[%s588 + $0x30] sm:$0xff]
  %v596 = vld [vmem:[%s588 + $0x38] sm:$0xff]
  %v597 = vld [vmem:[%s588 + $0x40] sm:$0xff]
  %v598 = vld [vmem:[%s588 + $0x48] sm:$0xff]
  %v599 = vld [vmem:[%s588 + $0x50] sm:$0xff]
  %v600 = vld [vmem:[%s588 + $0x58] sm:$0xff]
  %v601 = vld [vmem:[%s588 + $0x60] sm:$0xff]
  %v602 = vld [vmem:[%s588 + $0x68] sm:$0xff]
  %v603 = vld [vmem:[%s588 + $0x70] sm:$0xff]
  %v604 = vld [vmem:[%s588 + $0x78] sm:$0xff]
  %s605 = scalar_lea.vmem %s5, 1
  %v606 = vld [vmem:[%s605] sm:$0x1]
  %v608 = vlaneseq
  %v609 = vshrl.u32 %v608, 7
  %v610 = vsub.s32 0, %v609
  %v611 = vrot.slane %v606, %v610
  %613 = vmatprep.subr.mxu0 0.0
  %614 = vmatpush1.msra.mxu0 %v589
  %615 = vmatprep.subr.mxu0 0.0
  %616 = vmatpush1.msra.mxu0 %v590
  %617 = vmatprep.subr.mxu0 0.0
  %618 = vmatpush1.msra.mxu0 %v591
  %619 = vmatprep.subr.mxu0 0.0
  %620 = vmatpush1.msra.mxu0 %v592
  %621 = vmatprep.subr.mxu0 0.0
  %622 = vmatpush1.msra.mxu0 %v593
  %623 = vmatprep.subr.mxu0 0.0
  %624 = vmatpush1.msra.mxu0 %v594
  %625 = vmatprep.subr.mxu0 0.0
  %626 = vmatpush1.msra.mxu0 %v595
  %627 = vmatprep.subr.mxu0 0.0
  %628 = vmatpush1.msra.mxu0 %v596
  %629 = vmatprep.subr.mxu0 0.0
  %630 = vmatpush1.msra.mxu0 %v597
  %631 = vmatprep.subr.mxu0 0.0
  %632 = vmatpush1.msra.mxu0 %v598
  %633 = vmatprep.subr.mxu0 0.0
  %634 = vmatpush1.msra.mxu0 %v599
  %635 = vmatprep.subr.mxu0 0.0
  %636 = vmatpush1.msra.mxu0 %v600
  %637 = vmatprep.subr.mxu0 0.0
  %638 = vmatpush1.msra.mxu0 %v601
  %639 = vmatprep.subr.mxu0 0.0
  %640 = vmatpush1.msra.mxu0 %v602
  %641 = vmatprep.subr.mxu0 0.0
  %642 = vmatpush1.msra.mxu0 %v603
  %643 = vmatprep.subr.mxu0 0.0
  %644 = vmatpush1.msra.mxu0 %v604
  %645 = vmatprep.subr.mxu0 0.0
  %646 = vmatpush1.msra.mxu0 0.0
  %647 = vmatprep.subr.mxu0 0.0
  %648 = vmatpush1.msra.mxu0 0.0
  %649 = vmatprep.subr.mxu0 0.0
  %650 = vmatpush1.msra.mxu0 0.0
  %651 = vmatprep.subr.mxu0 0.0
  %652 = vmatpush1.msra.mxu0 0.0
  %653 = vmatprep.subr.mxu0 0.0
  %654 = vmatpush1.msra.mxu0 0.0
  %655 = vmatprep.subr.mxu0 0.0
  %656 = vmatpush1.msra.mxu0 0.0
  %657 = vmatprep.subr.mxu0 0.0
  %658 = vmatpush1.msra.mxu0 0.0
  %659 = vmatprep.subr.mxu0 0.0
  %660 = vmatpush1.msra.mxu0 0.0
  %661 = vmatprep.subr.mxu0 0.0
  %662 = vmatpush1.msra.mxu0 0.0
  %663 = vmatprep.subr.mxu0 0.0
  %664 = vmatpush1.msra.mxu0 0.0
  %665 = vmatprep.subr.mxu0 0.0
  %666 = vmatpush1.msra.mxu0 0.0
  %667 = vmatprep.subr.mxu0 0.0
  %668 = vmatpush1.msra.mxu0 0.0
  %669 = vmatprep.subr.mxu0 0.0
  %670 = vmatpush1.msra.mxu0 0.0
  %671 = vmatprep.subr.mxu0 0.0
  %672 = vmatpush1.msra.mxu0 0.0
  %673 = vmatprep.subr.mxu0 0.0
  %674 = vmatpush1.msra.mxu0 0.0
  %675 = vmatprep.subr.mxu0 0.0
  %676 = vmatpush1.msra.mxu0 0.0
  %677 = vmatprep.mubr.f32.mxu0 0.0
  %678 = vmatmul.mubr.f32.gmra.mrb[0].mxu0 %v572
  %v679 = vpop.f32.mrb[0].mxu0
  %v680 = vadd.f32 %v611, %v679
  %v681 = vpop.f32.mrb[0].mxu0
  %682 = vmatprep.mubr.f32.mxu0 0.0
  %683 = vmatmul.mubr.f32.gmra.mrb[0].mxu0 %v573
  %v684 = vpop.f32.mrb[0].mxu0
  %v685 = vadd.f32 %v611, %v684
  %v686 = vpop.f32.mrb[0].mxu0
  %687 = vmatprep.mubr.f32.mxu0 0.0
  %688 = vmatmul.mubr.f32.gmra.mrb[0].mxu0 %v574
  %v689 = vpop.f32.mrb[0].mxu0
  %v690 = vadd.f32 %v611, %v689
  %v691 = vpop.f32.mrb[0].mxu0
  %692 = vmatprep.mubr.f32.mxu0 0.0
  %693 = vmatmul.mubr.f32.gmra.mrb[0].mxu0 %v575
  %v694 = vpop.f32.mrb[0].mxu0
  %v695 = vadd.f32 %v611, %v694
  %v696 = vpop.f32.mrb[0].mxu0
  %697 = vmatprep.mubr.f32.mxu0 0.0
  %698 = vmatmul.mubr.f32.gmra.mrb[0].mxu0 %v576
  %v699 = vpop.f32.mrb[0].mxu0
  %v700 = vadd.f32 %v611, %v699
  %v701 = vpop.f32.mrb[0].mxu0
  %702 = vmatprep.mubr.f32.mxu0 0.0
  %703 = vmatmul.mubr.f32.gmra.mrb[0].mxu0 %v577
  %v704 = vpop.f32.mrb[0].mxu0
  %v705 = vadd.f32 %v611, %v704
  %v706 = vpop.f32.mrb[0].mxu0
  %707 = vmatprep.mubr.f32.mxu0 0.0
  %708 = vmatmul.mubr.f32.gmra.mrb[0].mxu0 %v578
  %v709 = vpop.f32.mrb[0].mxu0
  %v710 = vadd.f32 %v611, %v709
  %v711 = vpop.f32.mrb[0].mxu0
  %712 = vmatprep.mubr.f32.mxu0 0.0
  %713 = vmatmul.mubr.f32.gmra.mrb[0].mxu0 %v579
  %v714 = vpop.f32.mrb[0].mxu0
  %v715 = vadd.f32 %v611, %v714
  %v716 = vpop.f32.mrb[0].mxu0
  %717 = vmatprep.mubr.f32.mxu0 0.0
  %718 = vmatmul.mubr.f32.gmra.mrb[0].mxu0 %v580
  %v719 = vpop.f32.mrb[0].mxu0
  %v720 = vadd.f32 %v611, %v719
  %v721 = vpop.f32.mrb[0].mxu0
  %722 = vmatprep.mubr.f32.mxu0 0.0
  %723 = vmatmul.mubr.f32.gmra.mrb[0].mxu0 %v581
  %v724 = vpop.f32.mrb[0].mxu0
  %v725 = vadd.f32 %v611, %v724
  %v726 = vpop.f32.mrb[0].mxu0
  %727 = vmatprep.mubr.f32.mxu0 0.0
  %728 = vmatmul.mubr.f32.gmra.mrb[0].mxu0 %v582
  %v729 = vpop.f32.mrb[0].mxu0
  %v730 = vadd.f32 %v611, %v729
  %v731 = vpop.f32.mrb[0].mxu0
  %732 = vmatprep.mubr.f32.mxu0 0.0
  %733 = vmatmul.mubr.f32.gmra.mrb[0].mxu0 %v583
  %v734 = vpop.f32.mrb[0].mxu0
  %v735 = vadd.f32 %v611, %v734
  %v736 = vpop.f32.mrb[0].mxu0
  %737 = vmatprep.mubr.f32.mxu0 0.0
  %738 = vmatmul.mubr.f32.gmra.mrb[0].mxu0 %v584
  %v739 = vpop.f32.mrb[0].mxu0
  %v740 = vadd.f32 %v611, %v739
  %v741 = vpop.f32.mrb[0].mxu0
  %742 = vmatprep.mubr.f32.mxu0 0.0
  %743 = vmatmul.mubr.f32.gmra.mrb[0].mxu0 %v585
  %v744 = vpop.f32.mrb[0].mxu0
  %v745 = vadd.f32 %v611, %v744
  %v746 = vpop.f32.mrb[0].mxu0
  %747 = vmatprep.mubr.f32.mxu0 0.0
  %748 = vmatmul.mubr.f32.gmra.mrb[0].mxu0 %v586
  %v749 = vpop.f32.mrb[0].mxu0
  %v750 = vadd.f32 %v611, %v749
  %v751 = vpop.f32.mrb[0].mxu0
  %752 = vmatprep.mubr.f32.mxu0 0.0
  %753 = vmatmul.mubr.f32.gmra.mrb[0].mxu0 %v587
  %v754 = vpop.f32.mrb[0].mxu0
  %v755 = vadd.f32 %v611, %v754
  %v756 = vpop.f32.mrb[0].mxu0
  %757 = vdwg.mxu0
  %v758 = vmul.f32 %v680, 0.5
  %v759 = vmul.f32 %v685, 0.5
  %v760 = vmul.f32 %v690, 0.5
  %v761 = vmul.f32 %v695, 0.5
  %v762 = vmul.f32 %v700, 0.5
  %v763 = vmul.f32 %v705, 0.5
  %v764 = vmul.f32 %v710, 0.5
  %v765 = vmul.f32 %v715, 0.5
  %v766 = vmul.f32 %v720, 0.5
  %v767 = vmul.f32 %v725, 0.5
  %v768 = vmul.f32 %v730, 0.5
  %v769 = vmul.f32 %v735, 0.5
  %v770 = vmul.f32 %v740, 0.5
  %v771 = vmul.f32 %v745, 0.5
  %v772 = vmul.f32 %v750, 0.5
  %v773 = vmul.f32 %v755, 0.5
  %v774 = vtanh.pop %v758
  %v775 = vtanh.pop %v759
  %v776 = vtanh.pop %v760
  %v777 = vtanh.pop %v761
  %v778 = vtanh.pop %v762
  %v779 = vtanh.pop %v763
  %v780 = vtanh.pop %v764
  %v781 = vtanh.pop %v765
  %v782 = vtanh.pop %v766
  %v783 = vtanh.pop %v767
  %v784 = vtanh.pop %v768
  %v785 = vtanh.pop %v769
  %v786 = vtanh.pop %v770
  %v787 = vtanh.pop %v771
  %v788 = vtanh.pop %v772
  %v789 = vtanh.pop %v773
  %v790 = vmul.f32 %v774, 0.5
  %v791 = vmul.f32 %v775, 0.5
  %v792 = vmul.f32 %v776, 0.5
  %v793 = vmul.f32 %v777, 0.5
  %v794 = vmul.f32 %v778, 0.5
  %v795 = vmul.f32 %v779, 0.5
  %v796 = vmul.f32 %v780, 0.5
  %v797 = vmul.f32 %v781, 0.5
  %v798 = vmul.f32 %v782, 0.5
  %v799 = vmul.f32 %v783, 0.5
  %v800 = vmul.f32 %v784, 0.5
  %v801 = vmul.f32 %v785, 0.5
  %v802 = vmul.f32 %v786, 0.5
  %v803 = vmul.f32 %v787, 0.5
  %v804 = vmul.f32 %v788, 0.5
  %v805 = vmul.f32 %v789, 0.5
  %v806 = vadd.f32 %v790, 0.5
  %v807 = vadd.f32 %v791, 0.5
  %v808 = vadd.f32 %v792, 0.5
  %v809 = vadd.f32 %v793, 0.5
  %v810 = vadd.f32 %v794, 0.5
  %v811 = vadd.f32 %v795, 0.5
  %v812 = vadd.f32 %v796, 0.5
  %v813 = vadd.f32 %v797, 0.5
  %v814 = vadd.f32 %v798, 0.5
  %v815 = vadd.f32 %v799, 0.5
  %v816 = vadd.f32 %v800, 0.5
  %v817 = vadd.f32 %v801, 0.5
  %v818 = vadd.f32 %v802, 0.5
  %v819 = vadd.f32 %v803, 0.5
  %v820 = vadd.f32 %v804, 0.5
  %v821 = vadd.f32 %v805, 0.5
  %v822 = vmul.f32 %v680, %v806
  %v823 = vmul.f32 %v685, %v807
  %v824 = vmul.f32 %v690, %v808
  %v825 = vmul.f32 %v695, %v809
  %v826 = vmul.f32 %v700, %v810
  %v827 = vmul.f32 %v705, %v811
  %v828 = vmul.f32 %v710, %v812
  %v829 = vmul.f32 %v715, %v813
  %v830 = vmul.f32 %v720, %v814
  %v831 = vmul.f32 %v725, %v815
  %v832 = vmul.f32 %v730, %v816
  %v833 = vmul.f32 %v735, %v817
  %v834 = vmul.f32 %v740, %v818
  %v835 = vmul.f32 %v745, %v819
  %v836 = vmul.f32 %v750, %v820
  %v837 = vmul.f32 %v755, %v821
  %v838 = vadd.f32 %v324, %v822
  %v839 = vadd.f32 %v325, %v823
  %v840 = vadd.f32 %v326, %v824
  %v841 = vadd.f32 %v327, %v825
  %v842 = vadd.f32 %v328, %v826
  %v843 = vadd.f32 %v329, %v827
  %v844 = vadd.f32 %v330, %v828
  %v845 = vadd.f32 %v331, %v829
  %v846 = vadd.f32 %v332, %v830
  %v847 = vadd.f32 %v333, %v831
  %v848 = vadd.f32 %v334, %v832
  %v849 = vadd.f32 %v335, %v833
  %v850 = vadd.f32 %v336, %v834
  %v851 = vadd.f32 %v337, %v835
  %v852 = vadd.f32 %v338, %v836
  %v853 = vadd.f32 %v339, %v837
  %v854 = vld [vmem:[%s6] sm:$0xff]
  %v855 = vld [vmem:[%s6 + $0x8] sm:$0xff]
  %v856 = vld [vmem:[%s6 + $0x10] sm:$0xff]
  %v857 = vld [vmem:[%s6 + $0x18] sm:$0xff]
  %v858 = vld [vmem:[%s6 + $0x20] sm:$0xff]
  %v859 = vld [vmem:[%s6 + $0x28] sm:$0xff]
  %v860 = vld [vmem:[%s6 + $0x30] sm:$0xff]
  %v861 = vld [vmem:[%s6 + $0x38] sm:$0xff]
  %v862 = vld [vmem:[%s6 + $0x40] sm:$0xff]
  %v863 = vld [vmem:[%s6 + $0x48] sm:$0xff]
  %v864 = vld [vmem:[%s6 + $0x50] sm:$0xff]
  %v865 = vld [vmem:[%s6 + $0x58] sm:$0xff]
  %v866 = vld [vmem:[%s6 + $0x60] sm:$0xff]
  %v867 = vld [vmem:[%s6 + $0x68] sm:$0xff]
  %v868 = vld [vmem:[%s6 + $0x70] sm:$0xff]
  %v869 = vld [vmem:[%s6 + $0x78] sm:$0xff]
  %v870 = vld [vmem:[%s7] sm:$0x1]
  %v872 = vlaneseq
  %v873 = vshrl.u32 %v872, 7
  %v874 = vsub.s32 0, %v873
  %v875 = vrot.slane %v870, %v874
  %877 = vmatprep.subr.mxu0 0.0
  %878 = vmatpush1.msra.mxu0 %v854
  %879 = vmatprep.subr.mxu0 0.0
  %880 = vmatpush1.msra.mxu0 %v855
  %881 = vmatprep.subr.mxu0 0.0
  %882 = vmatpush1.msra.mxu0 %v856
  %883 = vmatprep.subr.mxu0 0.0
  %884 = vmatpush1.msra.mxu0 %v857
  %885 = vmatprep.subr.mxu0 0.0
  %886 = vmatpush1.msra.mxu0 %v858
  %887 = vmatprep.subr.mxu0 0.0
  %888 = vmatpush1.msra.mxu0 %v859
  %889 = vmatprep.subr.mxu0 0.0
  %890 = vmatpush1.msra.mxu0 %v860
  %891 = vmatprep.subr.mxu0 0.0
  %892 = vmatpush1.msra.mxu0 %v861
  %893 = vmatprep.subr.mxu0 0.0
  %894 = vmatpush1.msra.mxu0 %v862
  %895 = vmatprep.subr.mxu0 0.0
  %896 = vmatpush1.msra.mxu0 %v863
  %897 = vmatprep.subr.mxu0 0.0
  %898 = vmatpush1.msra.mxu0 %v864
  %899 = vmatprep.subr.mxu0 0.0
  %900 = vmatpush1.msra.mxu0 %v865
  %901 = vmatprep.subr.mxu0 0.0
  %902 = vmatpush1.msra.mxu0 %v866
  %903 = vmatprep.subr.mxu0 0.0
  %904 = vmatpush1.msra.mxu0 %v867
  %905 = vmatprep.subr.mxu0 0.0
  %906 = vmatpush1.msra.mxu0 %v868
  %907 = vmatprep.subr.mxu0 0.0
  %908 = vmatpush1.msra.mxu0 %v869
  %909 = vmatprep.subr.mxu0 0.0
  %910 = vmatpush1.msra.mxu0 0.0
  %911 = vmatprep.subr.mxu0 0.0
  %912 = vmatpush1.msra.mxu0 0.0
  %913 = vmatprep.subr.mxu0 0.0
  %914 = vmatpush1.msra.mxu0 0.0
  %915 = vmatprep.subr.mxu0 0.0
  %916 = vmatpush1.msra.mxu0 0.0
  %917 = vmatprep.subr.mxu0 0.0
  %918 = vmatpush1.msra.mxu0 0.0
  %919 = vmatprep.subr.mxu0 0.0
  %920 = vmatpush1.msra.mxu0 0.0
  %921 = vmatprep.subr.mxu0 0.0
  %922 = vmatpush1.msra.mxu0 0.0
  %923 = vmatprep.subr.mxu0 0.0
  %924 = vmatpush1.msra.mxu0 0.0
  %925 = vmatprep.subr.mxu0 0.0
  %926 = vmatpush1.msra.mxu0 0.0
  %927 = vmatprep.subr.mxu0 0.0
  %928 = vmatpush1.msra.mxu0 0.0
  %929 = vmatprep.subr.mxu0 0.0
  %930 = vmatpush1.msra.mxu0 0.0
  %931 = vmatprep.subr.mxu0 0.0
  %932 = vmatpush1.msra.mxu0 0.0
  %933 = vmatprep.subr.mxu0 0.0
  %934 = vmatpush1.msra.mxu0 0.0
  %935 = vmatprep.subr.mxu0 0.0
  %936 = vmatpush1.msra.mxu0 0.0
  %937 = vmatprep.subr.mxu0 0.0
  %938 = vmatpush1.msra.mxu0 0.0
  %939 = vmatprep.subr.mxu0 0.0
  %940 = vmatpush1.msra.mxu0 0.0
  %941 = vmatprep.mubr.f32.mxu0 0.0
  %942 = vmatmul.mubr.f32.gmra.mrb[0].mxu0 %v838
  %v943 = vpop.f32.mrb[0].mxu0
  %v944 = vadd.f32 %v875, %v943
  %v945 = vpop.f32.mrb[0].mxu0
  %946 = vmatprep.mubr.f32.mxu0 0.0
  %947 = vmatmul.mubr.f32.gmra.mrb[0].mxu0 %v839
  %v948 = vpop.f32.mrb[0].mxu0
  %v949 = vadd.f32 %v875, %v948
  %v950 = vpop.f32.mrb[0].mxu0
  %951 = vmatprep.mubr.f32.mxu0 0.0
  %952 = vmatmul.mubr.f32.gmra.mrb[0].mxu0 %v840
  %v953 = vpop.f32.mrb[0].mxu0
  %v954 = vadd.f32 %v875, %v953
  %v955 = vpop.f32.mrb[0].mxu0
  %956 = vmatprep.mubr.f32.mxu0 0.0
  %957 = vmatmul.mubr.f32.gmra.mrb[0].mxu0 %v841
  %v958 = vpop.f32.mrb[0].mxu0
  %v959 = vadd.f32 %v875, %v958
  %v960 = vpop.f32.mrb[0].mxu0
  %961 = vmatprep.mubr.f32.mxu0 0.0
  %962 = vmatmul.mubr.f32.gmra.mrb[0].mxu0 %v842
  %v963 = vpop.f32.mrb[0].mxu0
  %v964 = vadd.f32 %v875, %v963
  %v965 = vpop.f32.mrb[0].mxu0
  %966 = vmatprep.mubr.f32.mxu0 0.0
  %967 = vmatmul.mubr.f32.gmra.mrb[0].mxu0 %v843
  %v968 = vpop.f32.mrb[0].mxu0
  %v969 = vadd.f32 %v875, %v968
  %v970 = vpop.f32.mrb[0].mxu0
  %971 = vmatprep.mubr.f32.mxu0 0.0
  %972 = vmatmul.mubr.f32.gmra.mrb[0].mxu0 %v844
  %v973 = vpop.f32.mrb[0].mxu0
  %v974 = vadd.f32 %v875, %v973
  %v975 = vpop.f32.mrb[0].mxu0
  %976 = vmatprep.mubr.f32.mxu0 0.0
  %977 = vmatmul.mubr.f32.gmra.mrb[0].mxu0 %v845
  %v978 = vpop.f32.mrb[0].mxu0
  %v979 = vadd.f32 %v875, %v978
  %v980 = vpop.f32.mrb[0].mxu0
  %981 = vmatprep.mubr.f32.mxu0 0.0
  %982 = vmatmul.mubr.f32.gmra.mrb[0].mxu0 %v846
  %v983 = vpop.f32.mrb[0].mxu0
  %v984 = vadd.f32 %v875, %v983
  %v985 = vpop.f32.mrb[0].mxu0
  %986 = vmatprep.mubr.f32.mxu0 0.0
  %987 = vmatmul.mubr.f32.gmra.mrb[0].mxu0 %v847
  %v988 = vpop.f32.mrb[0].mxu0
  %v989 = vadd.f32 %v875, %v988
  %v990 = vpop.f32.mrb[0].mxu0
  %991 = vmatprep.mubr.f32.mxu0 0.0
  %992 = vmatmul.mubr.f32.gmra.mrb[0].mxu0 %v848
  %v993 = vpop.f32.mrb[0].mxu0
  %v994 = vadd.f32 %v875, %v993
  %v995 = vpop.f32.mrb[0].mxu0
  %996 = vmatprep.mubr.f32.mxu0 0.0
  %997 = vmatmul.mubr.f32.gmra.mrb[0].mxu0 %v849
  %v998 = vpop.f32.mrb[0].mxu0
  %v999 = vadd.f32 %v875, %v998
  %v1000 = vpop.f32.mrb[0].mxu0
  %1001 = vmatprep.mubr.f32.mxu0 0.0
  %1002 = vmatmul.mubr.f32.gmra.mrb[0].mxu0 %v850
  %v1003 = vpop.f32.mrb[0].mxu0
  %v1004 = vadd.f32 %v875, %v1003
  %v1005 = vpop.f32.mrb[0].mxu0
  %1006 = vmatprep.mubr.f32.mxu0 0.0
  %1007 = vmatmul.mubr.f32.gmra.mrb[0].mxu0 %v851
  %v1008 = vpop.f32.mrb[0].mxu0
  %v1009 = vadd.f32 %v875, %v1008
  %v1010 = vpop.f32.mrb[0].mxu0
  %1011 = vmatprep.mubr.f32.mxu0 0.0
  %1012 = vmatmul.mubr.f32.gmra.mrb[0].mxu0 %v852
  %v1013 = vpop.f32.mrb[0].mxu0
  %v1014 = vadd.f32 %v875, %v1013
  %v1015 = vpop.f32.mrb[0].mxu0
  %1016 = vmatprep.mubr.f32.mxu0 0.0
  %1017 = vmatmul.mubr.f32.gmra.mrb[0].mxu0 %v853
  %v1018 = vpop.f32.mrb[0].mxu0
  %v1019 = vadd.f32 %v875, %v1018
  %v1020 = vpop.f32.mrb[0].mxu0
  %1021 = vdwg.mxu0
  %v1022 = vmul.f32 %v944, 0.5
  %v1023 = vmul.f32 %v949, 0.5
  %v1024 = vmul.f32 %v954, 0.5
  %v1025 = vmul.f32 %v959, 0.5
  %v1026 = vmul.f32 %v964, 0.5
  %v1027 = vmul.f32 %v969, 0.5
  %v1028 = vmul.f32 %v974, 0.5
  %v1029 = vmul.f32 %v979, 0.5
  %v1030 = vmul.f32 %v984, 0.5
  %v1031 = vmul.f32 %v989, 0.5
  %v1032 = vmul.f32 %v994, 0.5
  %v1033 = vmul.f32 %v999, 0.5
  %v1034 = vmul.f32 %v1004, 0.5
  %v1035 = vmul.f32 %v1009, 0.5
  %v1036 = vmul.f32 %v1014, 0.5
  %v1037 = vmul.f32 %v1019, 0.5
  %v1038 = vtanh.pop %v1022
  %v1039 = vtanh.pop %v1023
  %v1040 = vtanh.pop %v1024
  %v1041 = vtanh.pop %v1025
  %v1042 = vtanh.pop %v1026
  %v1043 = vtanh.pop %v1027
  %v1044 = vtanh.pop %v1028
  %v1045 = vtanh.pop %v1029
  %v1046 = vtanh.pop %v1030
  %v1047 = vtanh.pop %v1031
  %v1048 = vtanh.pop %v1032
  %v1049 = vtanh.pop %v1033
  %v1050 = vtanh.pop %v1034
  %v1051 = vtanh.pop %v1035
  %v1052 = vtanh.pop %v1036
  %v1053 = vtanh.pop %v1037
  %v1054 = vmul.f32 %v1038, 0.5
  %v1055 = vmul.f32 %v1039, 0.5
  %v1056 = vmul.f32 %v1040, 0.5
  %v1057 = vmul.f32 %v1041, 0.5
  %v1058 = vmul.f32 %v1042, 0.5
  %v1059 = vmul.f32 %v1043, 0.5
  %v1060 = vmul.f32 %v1044, 0.5
  %v1061 = vmul.f32 %v1045, 0.5
  %v1062 = vmul.f32 %v1046, 0.5
  %v1063 = vmul.f32 %v1047, 0.5
  %v1064 = vmul.f32 %v1048, 0.5
  %v1065 = vmul.f32 %v1049, 0.5
  %v1066 = vmul.f32 %v1050, 0.5
  %v1067 = vmul.f32 %v1051, 0.5
  %v1068 = vmul.f32 %v1052, 0.5
  %v1069 = vmul.f32 %v1053, 0.5
  %v1070 = vadd.f32 %v1054, 0.5
  %v1071 = vadd.f32 %v1055, 0.5
  %v1072 = vadd.f32 %v1056, 0.5
  %v1073 = vadd.f32 %v1057, 0.5
  %v1074 = vadd.f32 %v1058, 0.5
  %v1075 = vadd.f32 %v1059, 0.5
  %v1076 = vadd.f32 %v1060, 0.5
  %v1077 = vadd.f32 %v1061, 0.5
  %v1078 = vadd.f32 %v1062, 0.5
  %v1079 = vadd.f32 %v1063, 0.5
  %v1080 = vadd.f32 %v1064, 0.5
  %v1081 = vadd.f32 %v1065, 0.5
  %v1082 = vadd.f32 %v1066, 0.5
  %v1083 = vadd.f32 %v1067, 0.5
  %v1084 = vadd.f32 %v1068, 0.5
  %v1085 = vadd.f32 %v1069, 0.5
  %v1086 = vmul.f32 %v944, %v1070
  %v1087 = vmul.f32 %v949, %v1071
  %v1088 = vmul.f32 %v954, %v1072
  %v1089 = vmul.f32 %v959, %v1073
  %v1090 = vmul.f32 %v964, %v1074
  %v1091 = vmul.f32 %v969, %v1075
  %v1092 = vmul.f32 %v974, %v1076
  %v1093 = vmul.f32 %v979, %v1077
  %v1094 = vmul.f32 %v984, %v1078
  %v1095 = vmul.f32 %v989, %v1079
  %v1096 = vmul.f32 %v994, %v1080
  %v1097 = vmul.f32 %v999, %v1081
  %v1098 = vmul.f32 %v1004, %v1082
  %v1099 = vmul.f32 %v1009, %v1083
  %v1100 = vmul.f32 %v1014, %v1084
  %v1101 = vmul.f32 %v1019, %v1085
  %v1102 = vadd.f32 %v1086, %v35
  %v1103 = vadd.f32 %v1087, %v36
  %v1104 = vadd.f32 %v1088, %v37
  %v1105 = vadd.f32 %v1089, %v38
  %v1106 = vadd.f32 %v1090, %v39
  %v1107 = vadd.f32 %v1091, %v40
  %v1108 = vadd.f32 %v1092, %v41
  %v1109 = vadd.f32 %v1093, %v42
  %v1110 = vadd.f32 %v1094, %v43
  %v1111 = vadd.f32 %v1095, %v44
  %v1112 = vadd.f32 %v1096, %v45
  %v1113 = vadd.f32 %v1097, %v46
  %v1114 = vadd.f32 %v1098, %v47
  %v1115 = vadd.f32 %v1099, %v48
  %v1116 = vadd.f32 %v1100, %v49
  %v1117 = vadd.f32 %v1101, %v50
  %v1118 = vld [vmem:[%s8] sm:$0xff]
  %v1119 = vld [vmem:[%s8 + $0x8] sm:$0xff]
  %v1120 = vld [vmem:[%s8 + $0x10] sm:$0xff]
  %v1121 = vld [vmem:[%s8 + $0x18] sm:$0xff]
  %v1122 = vld [vmem:[%s8 + $0x20] sm:$0xff]
  %v1123 = vld [vmem:[%s8 + $0x28] sm:$0xff]
  %v1124 = vld [vmem:[%s8 + $0x30] sm:$0xff]
  %v1125 = vld [vmem:[%s8 + $0x38] sm:$0xff]
  %v1126 = vld [vmem:[%s8 + $0x40] sm:$0xff]
  %v1127 = vld [vmem:[%s8 + $0x48] sm:$0xff]
  %v1128 = vld [vmem:[%s8 + $0x50] sm:$0xff]
  %v1129 = vld [vmem:[%s8 + $0x58] sm:$0xff]
  %v1130 = vld [vmem:[%s8 + $0x60] sm:$0xff]
  %v1131 = vld [vmem:[%s8 + $0x68] sm:$0xff]
  %v1132 = vld [vmem:[%s8 + $0x70] sm:$0xff]
  %v1133 = vld [vmem:[%s8 + $0x78] sm:$0xff]
  %v1134 = vld [vmem:[%s9] sm:$0x1]
  %v1136 = vlaneseq
  %v1137 = vshrl.u32 %v1136, 7
  %v1138 = vsub.s32 0, %v1137
  %v1139 = vrot.slane %v1134, %v1138
  %1141 = vmatprep.subr.mxu0 0.0
  %1142 = vmatpush1.msra.mxu0 %v1118
  %1143 = vmatprep.subr.mxu0 0.0
  %1144 = vmatpush1.msra.mxu0 %v1119
  %1145 = vmatprep.subr.mxu0 0.0
  %1146 = vmatpush1.msra.mxu0 %v1120
  %1147 = vmatprep.subr.mxu0 0.0
  %1148 = vmatpush1.msra.mxu0 %v1121
  %1149 = vmatprep.subr.mxu0 0.0
  %1150 = vmatpush1.msra.mxu0 %v1122
  %1151 = vmatprep.subr.mxu0 0.0
  %1152 = vmatpush1.msra.mxu0 %v1123
  %1153 = vmatprep.subr.mxu0 0.0
  %1154 = vmatpush1.msra.mxu0 %v1124
  %1155 = vmatprep.subr.mxu0 0.0
  %1156 = vmatpush1.msra.mxu0 %v1125
  %1157 = vmatprep.subr.mxu0 0.0
  %1158 = vmatpush1.msra.mxu0 %v1126
  %1159 = vmatprep.subr.mxu0 0.0
  %1160 = vmatpush1.msra.mxu0 %v1127
  %1161 = vmatprep.subr.mxu0 0.0
  %1162 = vmatpush1.msra.mxu0 %v1128
  %1163 = vmatprep.subr.mxu0 0.0
  %1164 = vmatpush1.msra.mxu0 %v1129
  %1165 = vmatprep.subr.mxu0 0.0
  %1166 = vmatpush1.msra.mxu0 %v1130
  %1167 = vmatprep.subr.mxu0 0.0
  %1168 = vmatpush1.msra.mxu0 %v1131
  %1169 = vmatprep.subr.mxu0 0.0
  %1170 = vmatpush1.msra.mxu0 %v1132
  %1171 = vmatprep.subr.mxu0 0.0
  %1172 = vmatpush1.msra.mxu0 %v1133
  %1173 = vmatprep.subr.mxu0 0.0
  %1174 = vmatpush1.msra.mxu0 0.0
  %1175 = vmatprep.subr.mxu0 0.0
  %1176 = vmatpush1.msra.mxu0 0.0
  %1177 = vmatprep.subr.mxu0 0.0
  %1178 = vmatpush1.msra.mxu0 0.0
  %1179 = vmatprep.subr.mxu0 0.0
  %1180 = vmatpush1.msra.mxu0 0.0
  %1181 = vmatprep.subr.mxu0 0.0
  %1182 = vmatpush1.msra.mxu0 0.0
  %1183 = vmatprep.subr.mxu0 0.0
  %1184 = vmatpush1.msra.mxu0 0.0
  %1185 = vmatprep.subr.mxu0 0.0
  %1186 = vmatpush1.msra.mxu0 0.0
  %1187 = vmatprep.subr.mxu0 0.0
  %1188 = vmatpush1.msra.mxu0 0.0
  %1189 = vmatprep.subr.mxu0 0.0
  %1190 = vmatpush1.msra.mxu0 0.0
  %1191 = vmatprep.subr.mxu0 0.0
  %1192 = vmatpush1.msra.mxu0 0.0
  %1193 = vmatprep.subr.mxu0 0.0
  %1194 = vmatpush1.msra.mxu0 0.0
  %1195 = vmatprep.subr.mxu0 0.0
  %1196 = vmatpush1.msra.mxu0 0.0
  %1197 = vmatprep.subr.mxu0 0.0
  %1198 = vmatpush1.msra.mxu0 0.0
  %1199 = vmatprep.subr.mxu0 0.0
  %1200 = vmatpush1.msra.mxu0 0.0
  %1201 = vmatprep.subr.mxu0 0.0
  %1202 = vmatpush1.msra.mxu0 0.0
  %1203 = vmatprep.subr.mxu0 0.0
  %1204 = vmatpush1.msra.mxu0 0.0
  %1205 = vmatprep.mubr.f32.mxu0 0.0
  %1206 = vmatmul.mubr.f32.gmra.mrb[0].mxu0 %v1102
  %v1207 = vpop.f32.mrb[0].mxu0
  %v1208 = vadd.f32 %v1139, %v1207
  %v1209 = vpop.f32.mrb[0].mxu0
  %1210 = vmatprep.mubr.f32.mxu0 0.0
  %1211 = vmatmul.mubr.f32.gmra.mrb[0].mxu0 %v1103
  %v1212 = vpop.f32.mrb[0].mxu0
  %v1213 = vadd.f32 %v1139, %v1212
  %v1214 = vpop.f32.mrb[0].mxu0
  %1215 = vmatprep.mubr.f32.mxu0 0.0
  %1216 = vmatmul.mubr.f32.gmra.mrb[0].mxu0 %v1104
  %v1217 = vpop.f32.mrb[0].mxu0
  %v1218 = vadd.f32 %v1139, %v1217
  %v1219 = vpop.f32.mrb[0].mxu0
  %1220 = vmatprep.mubr.f32.mxu0 0.0
  %1221 = vmatmul.mubr.f32.gmra.mrb[0].mxu0 %v1105
  %v1222 = vpop.f32.mrb[0].mxu0
  %v1223 = vadd.f32 %v1139, %v1222
  %v1224 = vpop.f32.mrb[0].mxu0
  %1225 = vmatprep.mubr.f32.mxu0 0.0
  %1226 = vmatmul.mubr.f32.gmra.mrb[0].mxu0 %v1106
  %v1227 = vpop.f32.mrb[0].mxu0
  %v1228 = vadd.f32 %v1139, %v1227
  %v1229 = vpop.f32.mrb[0].mxu0
  %1230 = vmatprep.mubr.f32.mxu0 0.0
  %1231 = vmatmul.mubr.f32.gmra.mrb[0].mxu0 %v1107
  %v1232 = vpop.f32.mrb[0].mxu0
  %v1233 = vadd.f32 %v1139, %v1232
  %v1234 = vpop.f32.mrb[0].mxu0
  %1235 = vmatprep.mubr.f32.mxu0 0.0
  %1236 = vmatmul.mubr.f32.gmra.mrb[0].mxu0 %v1108
  %v1237 = vpop.f32.mrb[0].mxu0
  %v1238 = vadd.f32 %v1139, %v1237
  %v1239 = vpop.f32.mrb[0].mxu0
  %1240 = vmatprep.mubr.f32.mxu0 0.0
  %1241 = vmatmul.mubr.f32.gmra.mrb[0].mxu0 %v1109
  %v1242 = vpop.f32.mrb[0].mxu0
  %v1243 = vadd.f32 %v1139, %v1242
  %v1244 = vpop.f32.mrb[0].mxu0
  %1245 = vmatprep.mubr.f32.mxu0 0.0
  %1246 = vmatmul.mubr.f32.gmra.mrb[0].mxu0 %v1110
  %v1247 = vpop.f32.mrb[0].mxu0
  %v1248 = vadd.f32 %v1139, %v1247
  %v1249 = vpop.f32.mrb[0].mxu0
  %1250 = vmatprep.mubr.f32.mxu0 0.0
  %1251 = vmatmul.mubr.f32.gmra.mrb[0].mxu0 %v1111
  %v1252 = vpop.f32.mrb[0].mxu0
  %v1253 = vadd.f32 %v1139, %v1252
  %v1254 = vpop.f32.mrb[0].mxu0
  %1255 = vmatprep.mubr.f32.mxu0 0.0
  %1256 = vmatmul.mubr.f32.gmra.mrb[0].mxu0 %v1112
  %v1257 = vpop.f32.mrb[0].mxu0
  %v1258 = vadd.f32 %v1139, %v1257
  %v1259 = vpop.f32.mrb[0].mxu0
  %1260 = vmatprep.mubr.f32.mxu0 0.0
  %1261 = vmatmul.mubr.f32.gmra.mrb[0].mxu0 %v1113
  %v1262 = vpop.f32.mrb[0].mxu0
  %v1263 = vadd.f32 %v1139, %v1262
  %v1264 = vpop.f32.mrb[0].mxu0
  %1265 = vmatprep.mubr.f32.mxu0 0.0
  %1266 = vmatmul.mubr.f32.gmra.mrb[0].mxu0 %v1114
  %v1267 = vpop.f32.mrb[0].mxu0
  %v1268 = vadd.f32 %v1139, %v1267
  %v1269 = vpop.f32.mrb[0].mxu0
  %1270 = vmatprep.mubr.f32.mxu0 0.0
  %1271 = vmatmul.mubr.f32.gmra.mrb[0].mxu0 %v1115
  %v1272 = vpop.f32.mrb[0].mxu0
  %v1273 = vadd.f32 %v1139, %v1272
  %v1274 = vpop.f32.mrb[0].mxu0
  %1275 = vmatprep.mubr.f32.mxu0 0.0
  %1276 = vmatmul.mubr.f32.gmra.mrb[0].mxu0 %v1116
  %v1277 = vpop.f32.mrb[0].mxu0
  %v1278 = vadd.f32 %v1139, %v1277
  %v1279 = vpop.f32.mrb[0].mxu0
  %1280 = vmatprep.mubr.f32.mxu0 0.0
  %1281 = vmatmul.mubr.f32.gmra.mrb[0].mxu0 %v1117
  %v1282 = vpop.f32.mrb[0].mxu0
  %v1283 = vadd.f32 %v1139, %v1282
  %v1284 = vpop.f32.mrb[0].mxu0
  %1285 = vdwg.mxu0
  %v1286 = vmul.f32 %v1208, 0.5
  %v1287 = vmul.f32 %v1213, 0.5
  %v1288 = vmul.f32 %v1218, 0.5
  %v1289 = vmul.f32 %v1223, 0.5
  %v1290 = vmul.f32 %v1228, 0.5
  %v1291 = vmul.f32 %v1233, 0.5
  %v1292 = vmul.f32 %v1238, 0.5
  %v1293 = vmul.f32 %v1243, 0.5
  %v1294 = vmul.f32 %v1248, 0.5
  %v1295 = vmul.f32 %v1253, 0.5
  %v1296 = vmul.f32 %v1258, 0.5
  %v1297 = vmul.f32 %v1263, 0.5
  %v1298 = vmul.f32 %v1268, 0.5
  %v1299 = vmul.f32 %v1273, 0.5
  %v1300 = vmul.f32 %v1278, 0.5
  %v1301 = vmul.f32 %v1283, 0.5
  %v1302 = vtanh.pop %v1286
  %v1303 = vtanh.pop %v1287
  %v1304 = vtanh.pop %v1288
  %v1305 = vtanh.pop %v1289
  %v1306 = vtanh.pop %v1290
  %v1307 = vtanh.pop %v1291
  %v1308 = vtanh.pop %v1292
  %v1309 = vtanh.pop %v1293
  %v1310 = vtanh.pop %v1294
  %v1311 = vtanh.pop %v1295
  %v1312 = vtanh.pop %v1296
  %v1313 = vtanh.pop %v1297
  %v1314 = vtanh.pop %v1298
  %v1315 = vtanh.pop %v1299
  %v1316 = vtanh.pop %v1300
  %v1317 = vtanh.pop %v1301
  %v1318 = vmul.f32 %v1302, 0.5
  %v1319 = vmul.f32 %v1303, 0.5
  %v1320 = vmul.f32 %v1304, 0.5
  %v1321 = vmul.f32 %v1305, 0.5
  %v1322 = vmul.f32 %v1306, 0.5
  %v1323 = vmul.f32 %v1307, 0.5
  %v1324 = vmul.f32 %v1308, 0.5
  %v1325 = vmul.f32 %v1309, 0.5
  %v1326 = vmul.f32 %v1310, 0.5
  %v1327 = vmul.f32 %v1311, 0.5
  %v1328 = vmul.f32 %v1312, 0.5
  %v1329 = vmul.f32 %v1313, 0.5
  %v1330 = vmul.f32 %v1314, 0.5
  %v1331 = vmul.f32 %v1315, 0.5
  %v1332 = vmul.f32 %v1316, 0.5
  %v1333 = vmul.f32 %v1317, 0.5
  %v1334 = vadd.f32 %v1318, 0.5
  %v1335 = vadd.f32 %v1319, 0.5
  %v1336 = vadd.f32 %v1320, 0.5
  %v1337 = vadd.f32 %v1321, 0.5
  %v1338 = vadd.f32 %v1322, 0.5
  %v1339 = vadd.f32 %v1323, 0.5
  %v1340 = vadd.f32 %v1324, 0.5
  %v1341 = vadd.f32 %v1325, 0.5
  %v1342 = vadd.f32 %v1326, 0.5
  %v1343 = vadd.f32 %v1327, 0.5
  %v1344 = vadd.f32 %v1328, 0.5
  %v1345 = vadd.f32 %v1329, 0.5
  %v1346 = vadd.f32 %v1330, 0.5
  %v1347 = vadd.f32 %v1331, 0.5
  %v1348 = vadd.f32 %v1332, 0.5
  %v1349 = vadd.f32 %v1333, 0.5
  %v1350 = vmul.f32 %v1208, %v1334
  %v1351 = vmul.f32 %v1213, %v1335
  %v1352 = vmul.f32 %v1218, %v1336
  %v1353 = vmul.f32 %v1223, %v1337
  %v1354 = vmul.f32 %v1228, %v1338
  %v1355 = vmul.f32 %v1233, %v1339
  %v1356 = vmul.f32 %v1238, %v1340
  %v1357 = vmul.f32 %v1243, %v1341
  %v1358 = vmul.f32 %v1248, %v1342
  %v1359 = vmul.f32 %v1253, %v1343
  %v1360 = vmul.f32 %v1258, %v1344
  %v1361 = vmul.f32 %v1263, %v1345
  %v1362 = vmul.f32 %v1268, %v1346
  %v1363 = vmul.f32 %v1273, %v1347
  %v1364 = vmul.f32 %v1278, %v1348
  %v1365 = vmul.f32 %v1283, %v1349
  %s1366 = scalar_lea.vmem %s8, 128
  %v1367 = vld [vmem:[%s1366] sm:$0xff]
  %v1368 = vld [vmem:[%s1366 + $0x8] sm:$0xff]
  %v1369 = vld [vmem:[%s1366 + $0x10] sm:$0xff]
  %v1370 = vld [vmem:[%s1366 + $0x18] sm:$0xff]
  %v1371 = vld [vmem:[%s1366 + $0x20] sm:$0xff]
  %v1372 = vld [vmem:[%s1366 + $0x28] sm:$0xff]
  %v1373 = vld [vmem:[%s1366 + $0x30] sm:$0xff]
  %v1374 = vld [vmem:[%s1366 + $0x38] sm:$0xff]
  %v1375 = vld [vmem:[%s1366 + $0x40] sm:$0xff]
  %v1376 = vld [vmem:[%s1366 + $0x48] sm:$0xff]
  %v1377 = vld [vmem:[%s1366 + $0x50] sm:$0xff]
  %v1378 = vld [vmem:[%s1366 + $0x58] sm:$0xff]
  %v1379 = vld [vmem:[%s1366 + $0x60] sm:$0xff]
  %v1380 = vld [vmem:[%s1366 + $0x68] sm:$0xff]
  %v1381 = vld [vmem:[%s1366 + $0x70] sm:$0xff]
  %v1382 = vld [vmem:[%s1366 + $0x78] sm:$0xff]
  %s1383 = scalar_lea.vmem %s9, 1
  %v1384 = vld [vmem:[%s1383] sm:$0x1]
  %v1386 = vlaneseq
  %v1387 = vshrl.u32 %v1386, 7
  %v1388 = vsub.s32 0, %v1387
  %v1389 = vrot.slane %v1384, %v1388
  %1391 = vmatprep.subr.mxu0 0.0
  %1392 = vmatpush1.msra.mxu0 %v1367
  %1393 = vmatprep.subr.mxu0 0.0
  %1394 = vmatpush1.msra.mxu0 %v1368
  %1395 = vmatprep.subr.mxu0 0.0
  %1396 = vmatpush1.msra.mxu0 %v1369
  %1397 = vmatprep.subr.mxu0 0.0
  %1398 = vmatpush1.msra.mxu0 %v1370
  %1399 = vmatprep.subr.mxu0 0.0
  %1400 = vmatpush1.msra.mxu0 %v1371
  %1401 = vmatprep.subr.mxu0 0.0
  %1402 = vmatpush1.msra.mxu0 %v1372
  %1403 = vmatprep.subr.mxu0 0.0
  %1404 = vmatpush1.msra.mxu0 %v1373
  %1405 = vmatprep.subr.mxu0 0.0
  %1406 = vmatpush1.msra.mxu0 %v1374
  %1407 = vmatprep.subr.mxu0 0.0
  %1408 = vmatpush1.msra.mxu0 %v1375
  %1409 = vmatprep.subr.mxu0 0.0
  %1410 = vmatpush1.msra.mxu0 %v1376
  %1411 = vmatprep.subr.mxu0 0.0
  %1412 = vmatpush1.msra.mxu0 %v1377
  %1413 = vmatprep.subr.mxu0 0.0
  %1414 = vmatpush1.msra.mxu0 %v1378
  %1415 = vmatprep.subr.mxu0 0.0
  %1416 = vmatpush1.msra.mxu0 %v1379
  %1417 = vmatprep.subr.mxu0 0.0
  %1418 = vmatpush1.msra.mxu0 %v1380
  %1419 = vmatprep.subr.mxu0 0.0
  %1420 = vmatpush1.msra.mxu0 %v1381
  %1421 = vmatprep.subr.mxu0 0.0
  %1422 = vmatpush1.msra.mxu0 %v1382
  %1423 = vmatprep.subr.mxu0 0.0
  %1424 = vmatpush1.msra.mxu0 0.0
  %1425 = vmatprep.subr.mxu0 0.0
  %1426 = vmatpush1.msra.mxu0 0.0
  %1427 = vmatprep.subr.mxu0 0.0
  %1428 = vmatpush1.msra.mxu0 0.0
  %1429 = vmatprep.subr.mxu0 0.0
  %1430 = vmatpush1.msra.mxu0 0.0
  %1431 = vmatprep.subr.mxu0 0.0
  %1432 = vmatpush1.msra.mxu0 0.0
  %1433 = vmatprep.subr.mxu0 0.0
  %1434 = vmatpush1.msra.mxu0 0.0
  %1435 = vmatprep.subr.mxu0 0.0
  %1436 = vmatpush1.msra.mxu0 0.0
  %1437 = vmatprep.subr.mxu0 0.0
  %1438 = vmatpush1.msra.mxu0 0.0
  %1439 = vmatprep.subr.mxu0 0.0
  %1440 = vmatpush1.msra.mxu0 0.0
  %1441 = vmatprep.subr.mxu0 0.0
  %1442 = vmatpush1.msra.mxu0 0.0
  %1443 = vmatprep.subr.mxu0 0.0
  %1444 = vmatpush1.msra.mxu0 0.0
  %1445 = vmatprep.subr.mxu0 0.0
  %1446 = vmatpush1.msra.mxu0 0.0
  %1447 = vmatprep.subr.mxu0 0.0
  %1448 = vmatpush1.msra.mxu0 0.0
  %1449 = vmatprep.subr.mxu0 0.0
  %1450 = vmatpush1.msra.mxu0 0.0
  %1451 = vmatprep.subr.mxu0 0.0
  %1452 = vmatpush1.msra.mxu0 0.0
  %1453 = vmatprep.subr.mxu0 0.0
  %1454 = vmatpush1.msra.mxu0 0.0
  %1455 = vmatprep.mubr.f32.mxu0 0.0
  %1456 = vmatmul.mubr.f32.gmra.mrb[0].mxu0 %v1350
  %v1457 = vpop.f32.mrb[0].mxu0
  %v1458 = vadd.f32 %v1389, %v1457
  %v1459 = vpop.f32.mrb[0].mxu0
  %1460 = vmatprep.mubr.f32.mxu0 0.0
  %1461 = vmatmul.mubr.f32.gmra.mrb[0].mxu0 %v1351
  %v1462 = vpop.f32.mrb[0].mxu0
  %v1463 = vadd.f32 %v1389, %v1462
  %v1464 = vpop.f32.mrb[0].mxu0
  %1465 = vmatprep.mubr.f32.mxu0 0.0
  %1466 = vmatmul.mubr.f32.gmra.mrb[0].mxu0 %v1352
  %v1467 = vpop.f32.mrb[0].mxu0
  %v1468 = vadd.f32 %v1389, %v1467
  %v1469 = vpop.f32.mrb[0].mxu0
  %1470 = vmatprep.mubr.f32.mxu0 0.0
  %1471 = vmatmul.mubr.f32.gmra.mrb[0].mxu0 %v1353
  %v1472 = vpop.f32.mrb[0].mxu0
  %v1473 = vadd.f32 %v1389, %v1472
  %v1474 = vpop.f32.mrb[0].mxu0
  %1475 = vmatprep.mubr.f32.mxu0 0.0
  %1476 = vmatmul.mubr.f32.gmra.mrb[0].mxu0 %v1354
  %v1477 = vpop.f32.mrb[0].mxu0
  %v1478 = vadd.f32 %v1389, %v1477
  %v1479 = vpop.f32.mrb[0].mxu0
  %1480 = vmatprep.mubr.f32.mxu0 0.0
  %1481 = vmatmul.mubr.f32.gmra.mrb[0].mxu0 %v1355
  %v1482 = vpop.f32.mrb[0].mxu0
  %v1483 = vadd.f32 %v1389, %v1482
  %v1484 = vpop.f32.mrb[0].mxu0
  %1485 = vmatprep.mubr.f32.mxu0 0.0
  %1486 = vmatmul.mubr.f32.gmra.mrb[0].mxu0 %v1356
  %v1487 = vpop.f32.mrb[0].mxu0
  %v1488 = vadd.f32 %v1389, %v1487
  %v1489 = vpop.f32.mrb[0].mxu0
  %1490 = vmatprep.mubr.f32.mxu0 0.0
  %1491 = vmatmul.mubr.f32.gmra.mrb[0].mxu0 %v1357
  %v1492 = vpop.f32.mrb[0].mxu0
  %v1493 = vadd.f32 %v1389, %v1492
  %v1494 = vpop.f32.mrb[0].mxu0
  %1495 = vmatprep.mubr.f32.mxu0 0.0
  %1496 = vmatmul.mubr.f32.gmra.mrb[0].mxu0 %v1358
  %v1497 = vpop.f32.mrb[0].mxu0
  %v1498 = vadd.f32 %v1389, %v1497
  %v1499 = vpop.f32.mrb[0].mxu0
  %1500 = vmatprep.mubr.f32.mxu0 0.0
  %1501 = vmatmul.mubr.f32.gmra.mrb[0].mxu0 %v1359
  %v1502 = vpop.f32.mrb[0].mxu0
  %v1503 = vadd.f32 %v1389, %v1502
  %v1504 = vpop.f32.mrb[0].mxu0
  %1505 = vmatprep.mubr.f32.mxu0 0.0
  %1506 = vmatmul.mubr.f32.gmra.mrb[0].mxu0 %v1360
  %v1507 = vpop.f32.mrb[0].mxu0
  %v1508 = vadd.f32 %v1389, %v1507
  %v1509 = vpop.f32.mrb[0].mxu0
  %1510 = vmatprep.mubr.f32.mxu0 0.0
  %1511 = vmatmul.mubr.f32.gmra.mrb[0].mxu0 %v1361
  %v1512 = vpop.f32.mrb[0].mxu0
  %v1513 = vadd.f32 %v1389, %v1512
  %v1514 = vpop.f32.mrb[0].mxu0
  %1515 = vmatprep.mubr.f32.mxu0 0.0
  %1516 = vmatmul.mubr.f32.gmra.mrb[0].mxu0 %v1362
  %v1517 = vpop.f32.mrb[0].mxu0
  %v1518 = vadd.f32 %v1389, %v1517
  %v1519 = vpop.f32.mrb[0].mxu0
  %1520 = vmatprep.mubr.f32.mxu0 0.0
  %1521 = vmatmul.mubr.f32.gmra.mrb[0].mxu0 %v1363
  %v1522 = vpop.f32.mrb[0].mxu0
  %v1523 = vadd.f32 %v1389, %v1522
  %v1524 = vpop.f32.mrb[0].mxu0
  %1525 = vmatprep.mubr.f32.mxu0 0.0
  %1526 = vmatmul.mubr.f32.gmra.mrb[0].mxu0 %v1364
  %v1527 = vpop.f32.mrb[0].mxu0
  %v1528 = vadd.f32 %v1389, %v1527
  %v1529 = vpop.f32.mrb[0].mxu0
  %1530 = vmatprep.mubr.f32.mxu0 0.0
  %1531 = vmatmul.mubr.f32.gmra.mrb[0].mxu0 %v1365
  %v1532 = vpop.f32.mrb[0].mxu0
  %v1533 = vadd.f32 %v1389, %v1532
  %v1534 = vpop.f32.mrb[0].mxu0
  %1535 = vdwg.mxu0
  %v1536 = vmul.f32 %v1458, 0.5
  %v1537 = vmul.f32 %v1463, 0.5
  %v1538 = vmul.f32 %v1468, 0.5
  %v1539 = vmul.f32 %v1473, 0.5
  %v1540 = vmul.f32 %v1478, 0.5
  %v1541 = vmul.f32 %v1483, 0.5
  %v1542 = vmul.f32 %v1488, 0.5
  %v1543 = vmul.f32 %v1493, 0.5
  %v1544 = vmul.f32 %v1498, 0.5
  %v1545 = vmul.f32 %v1503, 0.5
  %v1546 = vmul.f32 %v1508, 0.5
  %v1547 = vmul.f32 %v1513, 0.5
  %v1548 = vmul.f32 %v1518, 0.5
  %v1549 = vmul.f32 %v1523, 0.5
  %v1550 = vmul.f32 %v1528, 0.5
  %v1551 = vmul.f32 %v1533, 0.5
  %v1552 = vtanh.pop %v1536
  %v1553 = vtanh.pop %v1537
  %v1554 = vtanh.pop %v1538
  %v1555 = vtanh.pop %v1539
  %v1556 = vtanh.pop %v1540
  %v1557 = vtanh.pop %v1541
  %v1558 = vtanh.pop %v1542
  %v1559 = vtanh.pop %v1543
  %v1560 = vtanh.pop %v1544
  %v1561 = vtanh.pop %v1545
  %v1562 = vtanh.pop %v1546
  %v1563 = vtanh.pop %v1547
  %v1564 = vtanh.pop %v1548
  %v1565 = vtanh.pop %v1549
  %v1566 = vtanh.pop %v1550
  %v1567 = vtanh.pop %v1551
  %v1568 = vmul.f32 %v1552, 0.5
  %v1569 = vmul.f32 %v1553, 0.5
  %v1570 = vmul.f32 %v1554, 0.5
  %v1571 = vmul.f32 %v1555, 0.5
  %v1572 = vmul.f32 %v1556, 0.5
  %v1573 = vmul.f32 %v1557, 0.5
  %v1574 = vmul.f32 %v1558, 0.5
  %v1575 = vmul.f32 %v1559, 0.5
  %v1576 = vmul.f32 %v1560, 0.5
  %v1577 = vmul.f32 %v1561, 0.5
  %v1578 = vmul.f32 %v1562, 0.5
  %v1579 = vmul.f32 %v1563, 0.5
  %v1580 = vmul.f32 %v1564, 0.5
  %v1581 = vmul.f32 %v1565, 0.5
  %v1582 = vmul.f32 %v1566, 0.5
  %v1583 = vmul.f32 %v1567, 0.5
  %v1584 = vadd.f32 %v1568, 0.5
  %v1585 = vadd.f32 %v1569, 0.5
  %v1586 = vadd.f32 %v1570, 0.5
  %v1587 = vadd.f32 %v1571, 0.5
  %v1588 = vadd.f32 %v1572, 0.5
  %v1589 = vadd.f32 %v1573, 0.5
  %v1590 = vadd.f32 %v1574, 0.5
  %v1591 = vadd.f32 %v1575, 0.5
  %v1592 = vadd.f32 %v1576, 0.5
  %v1593 = vadd.f32 %v1577, 0.5
  %v1594 = vadd.f32 %v1578, 0.5
  %v1595 = vadd.f32 %v1579, 0.5
  %v1596 = vadd.f32 %v1580, 0.5
  %v1597 = vadd.f32 %v1581, 0.5
  %v1598 = vadd.f32 %v1582, 0.5
  %v1599 = vadd.f32 %v1583, 0.5
  %v1600 = vmul.f32 %v1458, %v1584
  %v1601 = vmul.f32 %v1463, %v1585
  %v1602 = vmul.f32 %v1468, %v1586
  %v1603 = vmul.f32 %v1473, %v1587
  %v1604 = vmul.f32 %v1478, %v1588
  %v1605 = vmul.f32 %v1483, %v1589
  %v1606 = vmul.f32 %v1488, %v1590
  %v1607 = vmul.f32 %v1493, %v1591
  %v1608 = vmul.f32 %v1498, %v1592
  %v1609 = vmul.f32 %v1503, %v1593
  %v1610 = vmul.f32 %v1508, %v1594
  %v1611 = vmul.f32 %v1513, %v1595
  %v1612 = vmul.f32 %v1518, %v1596
  %v1613 = vmul.f32 %v1523, %v1597
  %v1614 = vmul.f32 %v1528, %v1598
  %v1615 = vmul.f32 %v1533, %v1599
  %v1616 = vadd.f32 %v1102, %v1600
  %v1617 = vadd.f32 %v1103, %v1601
  %v1618 = vadd.f32 %v1104, %v1602
  %v1619 = vadd.f32 %v1105, %v1603
  %v1620 = vadd.f32 %v1106, %v1604
  %v1621 = vadd.f32 %v1107, %v1605
  %v1622 = vadd.f32 %v1108, %v1606
  %v1623 = vadd.f32 %v1109, %v1607
  %v1624 = vadd.f32 %v1110, %v1608
  %v1625 = vadd.f32 %v1111, %v1609
  %v1626 = vadd.f32 %v1112, %v1610
  %v1627 = vadd.f32 %v1113, %v1611
  %v1628 = vadd.f32 %v1114, %v1612
  %v1629 = vadd.f32 %v1115, %v1613
  %v1630 = vadd.f32 %v1116, %v1614
  %v1631 = vadd.f32 %v1117, %v1615
  %s1632 = scalar_lea.vmem %s8, 256
  %v1633 = vld [vmem:[%s1632] sm:$0xff]
  %v1634 = vld [vmem:[%s1632 + $0x8] sm:$0xff]
  %v1635 = vld [vmem:[%s1632 + $0x10] sm:$0xff]
  %v1636 = vld [vmem:[%s1632 + $0x18] sm:$0xff]
  %v1637 = vld [vmem:[%s1632 + $0x20] sm:$0xff]
  %v1638 = vld [vmem:[%s1632 + $0x28] sm:$0xff]
  %v1639 = vld [vmem:[%s1632 + $0x30] sm:$0xff]
  %v1640 = vld [vmem:[%s1632 + $0x38] sm:$0xff]
  %v1641 = vld [vmem:[%s1632 + $0x40] sm:$0xff]
  %v1642 = vld [vmem:[%s1632 + $0x48] sm:$0xff]
  %v1643 = vld [vmem:[%s1632 + $0x50] sm:$0xff]
  %v1644 = vld [vmem:[%s1632 + $0x58] sm:$0xff]
  %v1645 = vld [vmem:[%s1632 + $0x60] sm:$0xff]
  %v1646 = vld [vmem:[%s1632 + $0x68] sm:$0xff]
  %v1647 = vld [vmem:[%s1632 + $0x70] sm:$0xff]
  %v1648 = vld [vmem:[%s1632 + $0x78] sm:$0xff]
  %s1649 = scalar_lea.vmem %s9, 2
  %v1650 = vld [vmem:[%s1649] sm:$0x1]
  %v1652 = vlaneseq
  %v1653 = vshrl.u32 %v1652, 7
  %v1654 = vsub.s32 0, %v1653
  %v1655 = vrot.slane %v1650, %v1654
  %1657 = vmatprep.subr.mxu0 0.0
  %1658 = vmatpush1.msra.mxu0 %v1633
  %1659 = vmatprep.subr.mxu0 0.0
  %1660 = vmatpush1.msra.mxu0 %v1634
  %1661 = vmatprep.subr.mxu0 0.0
  %1662 = vmatpush1.msra.mxu0 %v1635
  %1663 = vmatprep.subr.mxu0 0.0
  %1664 = vmatpush1.msra.mxu0 %v1636
  %1665 = vmatprep.subr.mxu0 0.0
  %1666 = vmatpush1.msra.mxu0 %v1637
  %1667 = vmatprep.subr.mxu0 0.0
  %1668 = vmatpush1.msra.mxu0 %v1638
  %1669 = vmatprep.subr.mxu0 0.0
  %1670 = vmatpush1.msra.mxu0 %v1639
  %1671 = vmatprep.subr.mxu0 0.0
  %1672 = vmatpush1.msra.mxu0 %v1640
  %1673 = vmatprep.subr.mxu0 0.0
  %1674 = vmatpush1.msra.mxu0 %v1641
  %1675 = vmatprep.subr.mxu0 0.0
  %1676 = vmatpush1.msra.mxu0 %v1642
  %1677 = vmatprep.subr.mxu0 0.0
  %1678 = vmatpush1.msra.mxu0 %v1643
  %1679 = vmatprep.subr.mxu0 0.0
  %1680 = vmatpush1.msra.mxu0 %v1644
  %1681 = vmatprep.subr.mxu0 0.0
  %1682 = vmatpush1.msra.mxu0 %v1645
  %1683 = vmatprep.subr.mxu0 0.0
  %1684 = vmatpush1.msra.mxu0 %v1646
  %1685 = vmatprep.subr.mxu0 0.0
  %1686 = vmatpush1.msra.mxu0 %v1647
  %1687 = vmatprep.subr.mxu0 0.0
  %1688 = vmatpush1.msra.mxu0 %v1648
  %1689 = vmatprep.subr.mxu0 0.0
  %1690 = vmatpush1.msra.mxu0 0.0
  %1691 = vmatprep.subr.mxu0 0.0
  %1692 = vmatpush1.msra.mxu0 0.0
  %1693 = vmatprep.subr.mxu0 0.0
  %1694 = vmatpush1.msra.mxu0 0.0
  %1695 = vmatprep.subr.mxu0 0.0
  %1696 = vmatpush1.msra.mxu0 0.0
  %1697 = vmatprep.subr.mxu0 0.0
  %1698 = vmatpush1.msra.mxu0 0.0
  %1699 = vmatprep.subr.mxu0 0.0
  %1700 = vmatpush1.msra.mxu0 0.0
  %1701 = vmatprep.subr.mxu0 0.0
  %1702 = vmatpush1.msra.mxu0 0.0
  %1703 = vmatprep.subr.mxu0 0.0
  %1704 = vmatpush1.msra.mxu0 0.0
  %1705 = vmatprep.subr.mxu0 0.0
  %1706 = vmatpush1.msra.mxu0 0.0
  %1707 = vmatprep.subr.mxu0 0.0
  %1708 = vmatpush1.msra.mxu0 0.0
  %1709 = vmatprep.subr.mxu0 0.0
  %1710 = vmatpush1.msra.mxu0 0.0
  %1711 = vmatprep.subr.mxu0 0.0
  %1712 = vmatpush1.msra.mxu0 0.0
  %1713 = vmatprep.subr.mxu0 0.0
  %1714 = vmatpush1.msra.mxu0 0.0
  %1715 = vmatprep.subr.mxu0 0.0
  %1716 = vmatpush1.msra.mxu0 0.0
  %1717 = vmatprep.subr.mxu0 0.0
  %1718 = vmatpush1.msra.mxu0 0.0
  %1719 = vmatprep.subr.mxu0 0.0
  %1720 = vmatpush1.msra.mxu0 0.0
  %1721 = vmatprep.mubr.f32.mxu0 0.0
  %1722 = vmatmul.mubr.f32.gmra.mrb[0].mxu0 %v1616
  %v1723 = vpop.f32.mrb[0].mxu0
  %v1724 = vadd.f32 %v1655, %v1723
  %v1725 = vpop.f32.mrb[0].mxu0
  %1726 = vmatprep.mubr.f32.mxu0 0.0
  %1727 = vmatmul.mubr.f32.gmra.mrb[0].mxu0 %v1617
  %v1728 = vpop.f32.mrb[0].mxu0
  %v1729 = vadd.f32 %v1655, %v1728
  %v1730 = vpop.f32.mrb[0].mxu0
  %1731 = vmatprep.mubr.f32.mxu0 0.0
  %1732 = vmatmul.mubr.f32.gmra.mrb[0].mxu0 %v1618
  %v1733 = vpop.f32.mrb[0].mxu0
  %v1734 = vadd.f32 %v1655, %v1733
  %v1735 = vpop.f32.mrb[0].mxu0
  %1736 = vmatprep.mubr.f32.mxu0 0.0
  %1737 = vmatmul.mubr.f32.gmra.mrb[0].mxu0 %v1619
  %v1738 = vpop.f32.mrb[0].mxu0
  %v1739 = vadd.f32 %v1655, %v1738
  %v1740 = vpop.f32.mrb[0].mxu0
  %1741 = vmatprep.mubr.f32.mxu0 0.0
  %1742 = vmatmul.mubr.f32.gmra.mrb[0].mxu0 %v1620
  %v1743 = vpop.f32.mrb[0].mxu0
  %v1744 = vadd.f32 %v1655, %v1743
  %v1745 = vpop.f32.mrb[0].mxu0
  %1746 = vmatprep.mubr.f32.mxu0 0.0
  %1747 = vmatmul.mubr.f32.gmra.mrb[0].mxu0 %v1621
  %v1748 = vpop.f32.mrb[0].mxu0
  %v1749 = vadd.f32 %v1655, %v1748
  %v1750 = vpop.f32.mrb[0].mxu0
  %1751 = vmatprep.mubr.f32.mxu0 0.0
  %1752 = vmatmul.mubr.f32.gmra.mrb[0].mxu0 %v1622
  %v1753 = vpop.f32.mrb[0].mxu0
  %v1754 = vadd.f32 %v1655, %v1753
  %v1755 = vpop.f32.mrb[0].mxu0
  %1756 = vmatprep.mubr.f32.mxu0 0.0
  %1757 = vmatmul.mubr.f32.gmra.mrb[0].mxu0 %v1623
  %v1758 = vpop.f32.mrb[0].mxu0
  %v1759 = vadd.f32 %v1655, %v1758
  %v1760 = vpop.f32.mrb[0].mxu0
  %1761 = vmatprep.mubr.f32.mxu0 0.0
  %1762 = vmatmul.mubr.f32.gmra.mrb[0].mxu0 %v1624
  %v1763 = vpop.f32.mrb[0].mxu0
  %v1764 = vadd.f32 %v1655, %v1763
  %v1765 = vpop.f32.mrb[0].mxu0
  %1766 = vmatprep.mubr.f32.mxu0 0.0
  %1767 = vmatmul.mubr.f32.gmra.mrb[0].mxu0 %v1625
  %v1768 = vpop.f32.mrb[0].mxu0
  %v1769 = vadd.f32 %v1655, %v1768
  %v1770 = vpop.f32.mrb[0].mxu0
  %1771 = vmatprep.mubr.f32.mxu0 0.0
  %1772 = vmatmul.mubr.f32.gmra.mrb[0].mxu0 %v1626
  %v1773 = vpop.f32.mrb[0].mxu0
  %v1774 = vadd.f32 %v1655, %v1773
  %v1775 = vpop.f32.mrb[0].mxu0
  %1776 = vmatprep.mubr.f32.mxu0 0.0
  %1777 = vmatmul.mubr.f32.gmra.mrb[0].mxu0 %v1627
  %v1778 = vpop.f32.mrb[0].mxu0
  %v1779 = vadd.f32 %v1655, %v1778
  %v1780 = vpop.f32.mrb[0].mxu0
  %1781 = vmatprep.mubr.f32.mxu0 0.0
  %1782 = vmatmul.mubr.f32.gmra.mrb[0].mxu0 %v1628
  %v1783 = vpop.f32.mrb[0].mxu0
  %v1784 = vadd.f32 %v1655, %v1783
  %v1785 = vpop.f32.mrb[0].mxu0
  %1786 = vmatprep.mubr.f32.mxu0 0.0
  %1787 = vmatmul.mubr.f32.gmra.mrb[0].mxu0 %v1629
  %v1788 = vpop.f32.mrb[0].mxu0
  %v1789 = vadd.f32 %v1655, %v1788
  %v1790 = vpop.f32.mrb[0].mxu0
  %1791 = vmatprep.mubr.f32.mxu0 0.0
  %1792 = vmatmul.mubr.f32.gmra.mrb[0].mxu0 %v1630
  %v1793 = vpop.f32.mrb[0].mxu0
  %v1794 = vadd.f32 %v1655, %v1793
  %v1795 = vpop.f32.mrb[0].mxu0
  %1796 = vmatprep.mubr.f32.mxu0 0.0
  %1797 = vmatmul.mubr.f32.gmra.mrb[0].mxu0 %v1631
  %v1798 = vpop.f32.mrb[0].mxu0
  %v1799 = vadd.f32 %v1655, %v1798
  %v1800 = vpop.f32.mrb[0].mxu0
  %1801 = vdwg.mxu0
  %v1802 = vmul.f32 %v1724, 0.5
  %v1803 = vmul.f32 %v1729, 0.5
  %v1804 = vmul.f32 %v1734, 0.5
  %v1805 = vmul.f32 %v1739, 0.5
  %v1806 = vmul.f32 %v1744, 0.5
  %v1807 = vmul.f32 %v1749, 0.5
  %v1808 = vmul.f32 %v1754, 0.5
  %v1809 = vmul.f32 %v1759, 0.5
  %v1810 = vmul.f32 %v1764, 0.5
  %v1811 = vmul.f32 %v1769, 0.5
  %v1812 = vmul.f32 %v1774, 0.5
  %v1813 = vmul.f32 %v1779, 0.5
  %v1814 = vmul.f32 %v1784, 0.5
  %v1815 = vmul.f32 %v1789, 0.5
  %v1816 = vmul.f32 %v1794, 0.5
  %v1817 = vmul.f32 %v1799, 0.5
  %v1818 = vtanh.pop %v1802
  %v1819 = vtanh.pop %v1803
  %v1820 = vtanh.pop %v1804
  %v1821 = vtanh.pop %v1805
  %v1822 = vtanh.pop %v1806
  %v1823 = vtanh.pop %v1807
  %v1824 = vtanh.pop %v1808
  %v1825 = vtanh.pop %v1809
  %v1826 = vtanh.pop %v1810
  %v1827 = vtanh.pop %v1811
  %v1828 = vtanh.pop %v1812
  %v1829 = vtanh.pop %v1813
  %v1830 = vtanh.pop %v1814
  %v1831 = vtanh.pop %v1815
  %v1832 = vtanh.pop %v1816
  %v1833 = vtanh.pop %v1817
  %v1834 = vmul.f32 %v1818, 0.5
  %v1835 = vmul.f32 %v1819, 0.5
  %v1836 = vmul.f32 %v1820, 0.5
  %v1837 = vmul.f32 %v1821, 0.5
  %v1838 = vmul.f32 %v1822, 0.5
  %v1839 = vmul.f32 %v1823, 0.5
  %v1840 = vmul.f32 %v1824, 0.5
  %v1841 = vmul.f32 %v1825, 0.5
  %v1842 = vmul.f32 %v1826, 0.5
  %v1843 = vmul.f32 %v1827, 0.5
  %v1844 = vmul.f32 %v1828, 0.5
  %v1845 = vmul.f32 %v1829, 0.5
  %v1846 = vmul.f32 %v1830, 0.5
  %v1847 = vmul.f32 %v1831, 0.5
  %v1848 = vmul.f32 %v1832, 0.5
  %v1849 = vmul.f32 %v1833, 0.5
  %v1850 = vadd.f32 %v1834, 0.5
  %v1851 = vadd.f32 %v1835, 0.5
  %v1852 = vadd.f32 %v1836, 0.5
  %v1853 = vadd.f32 %v1837, 0.5
  %v1854 = vadd.f32 %v1838, 0.5
  %v1855 = vadd.f32 %v1839, 0.5
  %v1856 = vadd.f32 %v1840, 0.5
  %v1857 = vadd.f32 %v1841, 0.5
  %v1858 = vadd.f32 %v1842, 0.5
  %v1859 = vadd.f32 %v1843, 0.5
  %v1860 = vadd.f32 %v1844, 0.5
  %v1861 = vadd.f32 %v1845, 0.5
  %v1862 = vadd.f32 %v1846, 0.5
  %v1863 = vadd.f32 %v1847, 0.5
  %v1864 = vadd.f32 %v1848, 0.5
  %v1865 = vadd.f32 %v1849, 0.5
  %v1866 = vmul.f32 %v1724, %v1850
  %v1867 = vmul.f32 %v1729, %v1851
  %v1868 = vmul.f32 %v1734, %v1852
  %v1869 = vmul.f32 %v1739, %v1853
  %v1870 = vmul.f32 %v1744, %v1854
  %v1871 = vmul.f32 %v1749, %v1855
  %v1872 = vmul.f32 %v1754, %v1856
  %v1873 = vmul.f32 %v1759, %v1857
  %v1874 = vmul.f32 %v1764, %v1858
  %v1875 = vmul.f32 %v1769, %v1859
  %v1876 = vmul.f32 %v1774, %v1860
  %v1877 = vmul.f32 %v1779, %v1861
  %v1878 = vmul.f32 %v1784, %v1862
  %v1879 = vmul.f32 %v1789, %v1863
  %v1880 = vmul.f32 %v1794, %v1864
  %v1881 = vmul.f32 %v1799, %v1865
  %s1882 = scalar_lea.vmem %s8, 384
  %v1883 = vld [vmem:[%s1882] sm:$0xff]
  %v1884 = vld [vmem:[%s1882 + $0x8] sm:$0xff]
  %v1885 = vld [vmem:[%s1882 + $0x10] sm:$0xff]
  %v1886 = vld [vmem:[%s1882 + $0x18] sm:$0xff]
  %v1887 = vld [vmem:[%s1882 + $0x20] sm:$0xff]
  %v1888 = vld [vmem:[%s1882 + $0x28] sm:$0xff]
  %v1889 = vld [vmem:[%s1882 + $0x30] sm:$0xff]
  %v1890 = vld [vmem:[%s1882 + $0x38] sm:$0xff]
  %v1891 = vld [vmem:[%s1882 + $0x40] sm:$0xff]
  %v1892 = vld [vmem:[%s1882 + $0x48] sm:$0xff]
  %v1893 = vld [vmem:[%s1882 + $0x50] sm:$0xff]
  %v1894 = vld [vmem:[%s1882 + $0x58] sm:$0xff]
  %v1895 = vld [vmem:[%s1882 + $0x60] sm:$0xff]
  %v1896 = vld [vmem:[%s1882 + $0x68] sm:$0xff]
  %v1897 = vld [vmem:[%s1882 + $0x70] sm:$0xff]
  %v1898 = vld [vmem:[%s1882 + $0x78] sm:$0xff]
  %s1899 = scalar_lea.vmem %s9, 3
  %v1900 = vld [vmem:[%s1899] sm:$0x1]
  %v1902 = vlaneseq
  %v1903 = vshrl.u32 %v1902, 7
  %v1904 = vsub.s32 0, %v1903
  %v1905 = vrot.slane %v1900, %v1904
  %1907 = vmatprep.subr.mxu0 0.0
  %1908 = vmatpush1.msra.mxu0 %v1883
  %1909 = vmatprep.subr.mxu0 0.0
  %1910 = vmatpush1.msra.mxu0 %v1884
  %1911 = vmatprep.subr.mxu0 0.0
  %1912 = vmatpush1.msra.mxu0 %v1885
  %1913 = vmatprep.subr.mxu0 0.0
  %1914 = vmatpush1.msra.mxu0 %v1886
  %1915 = vmatprep.subr.mxu0 0.0
  %1916 = vmatpush1.msra.mxu0 %v1887
  %1917 = vmatprep.subr.mxu0 0.0
  %1918 = vmatpush1.msra.mxu0 %v1888
  %1919 = vmatprep.subr.mxu0 0.0
  %1920 = vmatpush1.msra.mxu0 %v1889
  %1921 = vmatprep.subr.mxu0 0.0
  %1922 = vmatpush1.msra.mxu0 %v1890
  %1923 = vmatprep.subr.mxu0 0.0
  %1924 = vmatpush1.msra.mxu0 %v1891
  %1925 = vmatprep.subr.mxu0 0.0
  %1926 = vmatpush1.msra.mxu0 %v1892
  %1927 = vmatprep.subr.mxu0 0.0
  %1928 = vmatpush1.msra.mxu0 %v1893
  %1929 = vmatprep.subr.mxu0 0.0
  %1930 = vmatpush1.msra.mxu0 %v1894
  %1931 = vmatprep.subr.mxu0 0.0
  %1932 = vmatpush1.msra.mxu0 %v1895
  %1933 = vmatprep.subr.mxu0 0.0
  %1934 = vmatpush1.msra.mxu0 %v1896
  %1935 = vmatprep.subr.mxu0 0.0
  %1936 = vmatpush1.msra.mxu0 %v1897
  %1937 = vmatprep.subr.mxu0 0.0
  %1938 = vmatpush1.msra.mxu0 %v1898
  %1939 = vmatprep.subr.mxu0 0.0
  %1940 = vmatpush1.msra.mxu0 0.0
  %1941 = vmatprep.subr.mxu0 0.0
  %1942 = vmatpush1.msra.mxu0 0.0
  %1943 = vmatprep.subr.mxu0 0.0
  %1944 = vmatpush1.msra.mxu0 0.0
  %1945 = vmatprep.subr.mxu0 0.0
  %1946 = vmatpush1.msra.mxu0 0.0
  %1947 = vmatprep.subr.mxu0 0.0
  %1948 = vmatpush1.msra.mxu0 0.0
  %1949 = vmatprep.subr.mxu0 0.0
  %1950 = vmatpush1.msra.mxu0 0.0
  %1951 = vmatprep.subr.mxu0 0.0
  %1952 = vmatpush1.msra.mxu0 0.0
  %1953 = vmatprep.subr.mxu0 0.0
  %1954 = vmatpush1.msra.mxu0 0.0
  %1955 = vmatprep.subr.mxu0 0.0
  %1956 = vmatpush1.msra.mxu0 0.0
  %1957 = vmatprep.subr.mxu0 0.0
  %1958 = vmatpush1.msra.mxu0 0.0
  %1959 = vmatprep.subr.mxu0 0.0
  %1960 = vmatpush1.msra.mxu0 0.0
  %1961 = vmatprep.subr.mxu0 0.0
  %1962 = vmatpush1.msra.mxu0 0.0
  %1963 = vmatprep.subr.mxu0 0.0
  %1964 = vmatpush1.msra.mxu0 0.0
  %1965 = vmatprep.subr.mxu0 0.0
  %1966 = vmatpush1.msra.mxu0 0.0
  %1967 = vmatprep.subr.mxu0 0.0
  %1968 = vmatpush1.msra.mxu0 0.0
  %1969 = vmatprep.subr.mxu0 0.0
  %1970 = vmatpush1.msra.mxu0 0.0
  %1971 = vmatprep.mubr.f32.mxu0 0.0
  %1972 = vmatmul.mubr.f32.gmra.mrb[0].mxu0 %v1866
  %v1973 = vpop.f32.mrb[0].mxu0
  %v1974 = vadd.f32 %v1905, %v1973
  %v1975 = vpop.f32.mrb[0].mxu0
  %1976 = vmatprep.mubr.f32.mxu0 0.0
  %1977 = vmatmul.mubr.f32.gmra.mrb[0].mxu0 %v1867
  %v1978 = vpop.f32.mrb[0].mxu0
  %v1979 = vadd.f32 %v1905, %v1978
  %v1980 = vpop.f32.mrb[0].mxu0
  %1981 = vmatprep.mubr.f32.mxu0 0.0
  %1982 = vmatmul.mubr.f32.gmra.mrb[0].mxu0 %v1868
  %v1983 = vpop.f32.mrb[0].mxu0
  %v1984 = vadd.f32 %v1905, %v1983
  %v1985 = vpop.f32.mrb[0].mxu0
  %1986 = vmatprep.mubr.f32.mxu0 0.0
  %1987 = vmatmul.mubr.f32.gmra.mrb[0].mxu0 %v1869
  %v1988 = vpop.f32.mrb[0].mxu0
  %v1989 = vadd.f32 %v1905, %v1988
  %v1990 = vpop.f32.mrb[0].mxu0
  %1991 = vmatprep.mubr.f32.mxu0 0.0
  %1992 = vmatmul.mubr.f32.gmra.mrb[0].mxu0 %v1870
  %v1993 = vpop.f32.mrb[0].mxu0
  %v1994 = vadd.f32 %v1905, %v1993
  %v1995 = vpop.f32.mrb[0].mxu0
  %1996 = vmatprep.mubr.f32.mxu0 0.0
  %1997 = vmatmul.mubr.f32.gmra.mrb[0].mxu0 %v1871
  %v1998 = vpop.f32.mrb[0].mxu0
  %v1999 = vadd.f32 %v1905, %v1998
  %v2000 = vpop.f32.mrb[0].mxu0
  %2001 = vmatprep.mubr.f32.mxu0 0.0
  %2002 = vmatmul.mubr.f32.gmra.mrb[0].mxu0 %v1872
  %v2003 = vpop.f32.mrb[0].mxu0
  %v2004 = vadd.f32 %v1905, %v2003
  %v2005 = vpop.f32.mrb[0].mxu0
  %2006 = vmatprep.mubr.f32.mxu0 0.0
  %2007 = vmatmul.mubr.f32.gmra.mrb[0].mxu0 %v1873
  %v2008 = vpop.f32.mrb[0].mxu0
  %v2009 = vadd.f32 %v1905, %v2008
  %v2010 = vpop.f32.mrb[0].mxu0
  %2011 = vmatprep.mubr.f32.mxu0 0.0
  %2012 = vmatmul.mubr.f32.gmra.mrb[0].mxu0 %v1874
  %v2013 = vpop.f32.mrb[0].mxu0
  %v2014 = vadd.f32 %v1905, %v2013
  %v2015 = vpop.f32.mrb[0].mxu0
  %2016 = vmatprep.mubr.f32.mxu0 0.0
  %2017 = vmatmul.mubr.f32.gmra.mrb[0].mxu0 %v1875
  %v2018 = vpop.f32.mrb[0].mxu0
  %v2019 = vadd.f32 %v1905, %v2018
  %v2020 = vpop.f32.mrb[0].mxu0
  %2021 = vmatprep.mubr.f32.mxu0 0.0
  %2022 = vmatmul.mubr.f32.gmra.mrb[0].mxu0 %v1876
  %v2023 = vpop.f32.mrb[0].mxu0
  %v2024 = vadd.f32 %v1905, %v2023
  %v2025 = vpop.f32.mrb[0].mxu0
  %2026 = vmatprep.mubr.f32.mxu0 0.0
  %2027 = vmatmul.mubr.f32.gmra.mrb[0].mxu0 %v1877
  %v2028 = vpop.f32.mrb[0].mxu0
  %v2029 = vadd.f32 %v1905, %v2028
  %v2030 = vpop.f32.mrb[0].mxu0
  %2031 = vmatprep.mubr.f32.mxu0 0.0
  %2032 = vmatmul.mubr.f32.gmra.mrb[0].mxu0 %v1878
  %v2033 = vpop.f32.mrb[0].mxu0
  %v2034 = vadd.f32 %v1905, %v2033
  %v2035 = vpop.f32.mrb[0].mxu0
  %2036 = vmatprep.mubr.f32.mxu0 0.0
  %2037 = vmatmul.mubr.f32.gmra.mrb[0].mxu0 %v1879
  %v2038 = vpop.f32.mrb[0].mxu0
  %v2039 = vadd.f32 %v1905, %v2038
  %v2040 = vpop.f32.mrb[0].mxu0
  %2041 = vmatprep.mubr.f32.mxu0 0.0
  %2042 = vmatmul.mubr.f32.gmra.mrb[0].mxu0 %v1880
  %v2043 = vpop.f32.mrb[0].mxu0
  %v2044 = vadd.f32 %v1905, %v2043
  %v2045 = vpop.f32.mrb[0].mxu0
  %2046 = vmatprep.mubr.f32.mxu0 0.0
  %2047 = vmatmul.mubr.f32.gmra.mrb[0].mxu0 %v1881
  %v2048 = vpop.f32.mrb[0].mxu0
  %v2049 = vadd.f32 %v1905, %v2048
  %v2050 = vpop.f32.mrb[0].mxu0
  %2051 = vdwg.mxu0
  %v2052 = vmul.f32 %v1974, 0.5
  %v2053 = vmul.f32 %v1979, 0.5
  %v2054 = vmul.f32 %v1984, 0.5
  %v2055 = vmul.f32 %v1989, 0.5
  %v2056 = vmul.f32 %v1994, 0.5
  %v2057 = vmul.f32 %v1999, 0.5
  %v2058 = vmul.f32 %v2004, 0.5
  %v2059 = vmul.f32 %v2009, 0.5
  %v2060 = vmul.f32 %v2014, 0.5
  %v2061 = vmul.f32 %v2019, 0.5
  %v2062 = vmul.f32 %v2024, 0.5
  %v2063 = vmul.f32 %v2029, 0.5
  %v2064 = vmul.f32 %v2034, 0.5
  %v2065 = vmul.f32 %v2039, 0.5
  %v2066 = vmul.f32 %v2044, 0.5
  %v2067 = vmul.f32 %v2049, 0.5
  %v2068 = vtanh.pop %v2052
  %v2069 = vtanh.pop %v2053
  %v2070 = vtanh.pop %v2054
  %v2071 = vtanh.pop %v2055
  %v2072 = vtanh.pop %v2056
  %v2073 = vtanh.pop %v2057
  %v2074 = vtanh.pop %v2058
  %v2075 = vtanh.pop %v2059
  %v2076 = vtanh.pop %v2060
  %v2077 = vtanh.pop %v2061
  %v2078 = vtanh.pop %v2062
  %v2079 = vtanh.pop %v2063
  %v2080 = vtanh.pop %v2064
  %v2081 = vtanh.pop %v2065
  %v2082 = vtanh.pop %v2066
  %v2083 = vtanh.pop %v2067
  %v2084 = vmul.f32 %v2068, 0.5
  %v2085 = vmul.f32 %v2069, 0.5
  %v2086 = vmul.f32 %v2070, 0.5
  %v2087 = vmul.f32 %v2071, 0.5
  %v2088 = vmul.f32 %v2072, 0.5
  %v2089 = vmul.f32 %v2073, 0.5
  %v2090 = vmul.f32 %v2074, 0.5
  %v2091 = vmul.f32 %v2075, 0.5
  %v2092 = vmul.f32 %v2076, 0.5
  %v2093 = vmul.f32 %v2077, 0.5
  %v2094 = vmul.f32 %v2078, 0.5
  %v2095 = vmul.f32 %v2079, 0.5
  %v2096 = vmul.f32 %v2080, 0.5
  %v2097 = vmul.f32 %v2081, 0.5
  %v2098 = vmul.f32 %v2082, 0.5
  %v2099 = vmul.f32 %v2083, 0.5
  %v2100 = vadd.f32 %v2084, 0.5
  %v2101 = vadd.f32 %v2085, 0.5
  %v2102 = vadd.f32 %v2086, 0.5
  %v2103 = vadd.f32 %v2087, 0.5
  %v2104 = vadd.f32 %v2088, 0.5
  %v2105 = vadd.f32 %v2089, 0.5
  %v2106 = vadd.f32 %v2090, 0.5
  %v2107 = vadd.f32 %v2091, 0.5
  %v2108 = vadd.f32 %v2092, 0.5
  %v2109 = vadd.f32 %v2093, 0.5
  %v2110 = vadd.f32 %v2094, 0.5
  %v2111 = vadd.f32 %v2095, 0.5
  %v2112 = vadd.f32 %v2096, 0.5
  %v2113 = vadd.f32 %v2097, 0.5
  %v2114 = vadd.f32 %v2098, 0.5
  %v2115 = vadd.f32 %v2099, 0.5
  %v2116 = vmul.f32 %v1974, %v2100
  %v2117 = vmul.f32 %v1979, %v2101
  %v2118 = vmul.f32 %v1984, %v2102
  %v2119 = vmul.f32 %v1989, %v2103
  %v2120 = vmul.f32 %v1994, %v2104
  %v2121 = vmul.f32 %v1999, %v2105
  %v2122 = vmul.f32 %v2004, %v2106
  %v2123 = vmul.f32 %v2009, %v2107
  %v2124 = vmul.f32 %v2014, %v2108
  %v2125 = vmul.f32 %v2019, %v2109
  %v2126 = vmul.f32 %v2024, %v2110
  %v2127 = vmul.f32 %v2029, %v2111
  %v2128 = vmul.f32 %v2034, %v2112
  %v2129 = vmul.f32 %v2039, %v2113
  %v2130 = vmul.f32 %v2044, %v2114
  %v2131 = vmul.f32 %v2049, %v2115
  %v2132 = vadd.f32 %v1616, %v2116
  %v2133 = vadd.f32 %v1617, %v2117
  %v2134 = vadd.f32 %v1618, %v2118
  %v2135 = vadd.f32 %v1619, %v2119
  %v2136 = vadd.f32 %v1620, %v2120
  %v2137 = vadd.f32 %v1621, %v2121
  %v2138 = vadd.f32 %v1622, %v2122
  %v2139 = vadd.f32 %v1623, %v2123
  %v2140 = vadd.f32 %v1624, %v2124
  %v2141 = vadd.f32 %v1625, %v2125
  %v2142 = vadd.f32 %v1626, %v2126
  %v2143 = vadd.f32 %v1627, %v2127
  %v2144 = vadd.f32 %v1628, %v2128
  %v2145 = vadd.f32 %v1629, %v2129
  %v2146 = vadd.f32 %v1630, %v2130
  %v2147 = vadd.f32 %v1631, %v2131
  %2148 = vst [vmem:[%s10] sm:$0xff] %v2132
  %2149 = vst [vmem:[%s10 + $0x8] sm:$0xff] %v2133
  %2150 = vst [vmem:[%s10 + $0x10] sm:$0xff] %v2134
  %2151 = vst [vmem:[%s10 + $0x18] sm:$0xff] %v2135
  %2152 = vst [vmem:[%s10 + $0x20] sm:$0xff] %v2136
  %2153 = vst [vmem:[%s10 + $0x28] sm:$0xff] %v2137
  %2154 = vst [vmem:[%s10 + $0x30] sm:$0xff] %v2138
  %2155 = vst [vmem:[%s10 + $0x38] sm:$0xff] %v2139
  %2156 = vst [vmem:[%s10 + $0x40] sm:$0xff] %v2140
  %2157 = vst [vmem:[%s10 + $0x48] sm:$0xff] %v2141
  %2158 = vst [vmem:[%s10 + $0x50] sm:$0xff] %v2142
  %2159 = vst [vmem:[%s10 + $0x58] sm:$0xff] %v2143
  %2160 = vst [vmem:[%s10 + $0x60] sm:$0xff] %v2144
  %2161 = vst [vmem:[%s10 + $0x68] sm:$0xff] %v2145
  %2162 = vst [vmem:[%s10 + $0x70] sm:$0xff] %v2146
  %2163 = vst [vmem:[%s10 + $0x78] sm:$0xff] %v2147
  // Predicated region
  $region42: #{interaction_pp_block.5} parent=0 // pred_check
    _
  $region43: #{interaction_pp_block.5} parent=0 // pred_check_branch
    %2165 = sbr.rel (0) target = $region45
  $region44: #{interaction_pp_block.5} parent=0 // pred_region
    _
  $region45: #{interaction_pp_block.5} parent=0 // pred_fallthru
    _
  // Predicated region
  $region46: #{interaction_pp_block.5} parent=0 // pred_check
    _
  $region47: #{interaction_pp_block.5} parent=0 // pred_check_branch
    %2167 = sbr.rel (0) target = $region49
  $region48: #{interaction_pp_block.5} parent=0 // pred_region
    _
  $region49: #{interaction_pp_block.5} parent=0 // pred_fallthru
    _

</llo_original>
